<compile_context>
chip_gen: v5e
topology: v5e:2x2
jax: 0.10.0
libtpu: 0.0.40
codegen_flags: <defaults>
</compile_context>

<pallas_src>
import functools

import jax
import jax.numpy as jnp
from jax import lax
from jax.experimental import pallas as pl
from jax.experimental.pallas import tpu as pltpu


def _round_up(x, m):
    return ((x + m - 1) // m) * m


# ------------------------------------------------------------------ kernel ---

def _fused_spca_kernel(lam_ref, x_ref, bcat_ref, xtxg_t_ref, partial_ref,
                       g_scr, *, num_comp):
    """One (modality m, row-tile n) grid step of the SPCA pre-SVD forward.

    lam_ref     : SMEM (2,)         [lambda1, lambda2]
    x_ref       : VMEM (1, tn, P)   zero-padded sensor rows of modality m
    bcat_ref    : VMEM (P, 2K)      [Bp | Bn]   (constant index map -> resident)
    xtxg_t_ref  : VMEM (1, K, P)    accumulates (X^T X G)^T   (lane-dense)
    partial_ref : VMEM (1, 1, 1)    accumulates SSE_m (+ L1/L2 reg when m == 0)
    g_scr       : VMEM (P, K)       softplus(Bp) - softplus(Bn), computed at n == 0
    """
    m = pl.program_id(0)
    n = pl.program_id(1)

    @pl.when(n == 0)
    def _init():
        lam1 = lam_ref[0]
        lam2 = lam_ref[1]
        bs = jax.nn.softplus(bcat_ref[...])                       # (P, 2K), 1 traversal
        g_scr[...] = bs[:, :num_comp] - bs[:, num_comp:]          # G = sp(Bp) - sp(Bn)
        xtxg_t_ref[...] = jnp.zeros_like(xtxg_t_ref)
        # Single fused reduction for the whole regularizer; added exactly once.
        reg = jnp.sum(lam1 * bs + lam2 * (bs * bs), keepdims=True)     # (1, 1)
        partial_ref[...] = jnp.where(m == 0, reg, jnp.zeros_like(reg))[None]

    x = x_ref[0]                                                  # (tn, P)
    g = g_scr[...]                                                # (P, K)
    xg = jnp.dot(x, g, preferred_element_type=jnp.float32)        # (tn, K)
    # (X G)^T @ X, contracting the row axis: output (K, P) has P on lanes.
    contrib = lax.dot_general(xg, x, (((0,), (0,)), ((), ())),
                              preferred_element_type=jnp.float32)
    xtxg_t_ref[...] += contrib[None]
    partial_ref[...] += jnp.sum(xg * xg, keepdims=True)[None]     # SSE tile


# ----------------------------------------------------------------- wrapper ---

def fused_spca(lam, x_stacked, bcat, num_comp):
    m_mod, n_pad, p = x_stacked.shape
    row_tile = n_pad if n_pad <= 512 else 512
    assert n_pad % row_tile == 0
    grid = (m_mod, n_pad // row_tile)

    # Double-buffered X tiles + params + outputs + scratch, with headroom.
    vmem_need = 4 * (2 * row_tile * p + 2 * p * 2 * num_comp
                     + 2 * num_comp * p + p * num_comp + 64)
    vmem_limit = int(min(32 * 1024 * 1024, max(2 * vmem_need, 1 << 20)))

    return pl.pallas_call(
        functools.partial(_fused_spca_kernel, num_comp=num_comp),
        out_shape=(jax.ShapeDtypeStruct((m_mod, num_comp, p), jnp.float32),
                   jax.ShapeDtypeStruct((m_mod, 1, 1), jnp.float32)),
        grid=grid,
        in_specs=[
            pl.BlockSpec(memory_space=pltpu.MemorySpace.SMEM),           # lam (2,)
            pl.BlockSpec((1, row_tile, p), lambda m, n: (m, n, 0)),      # X row tile
            pl.BlockSpec((p, 2 * num_comp), lambda m, n: (0, 0)),        # [Bp|Bn]
        ],
        out_specs=(
            pl.BlockSpec((1, num_comp, p), lambda m, n: (m, 0, 0)),      # (X^T X G)^T
            pl.BlockSpec((1, 1, 1), lambda m, n: (m, 0, 0)),             # partial loss
        ),
        scratch_shapes=[pltpu.VMEM((p, num_comp), jnp.float32)],
        compiler_params=pltpu.CompilerParams(
            dimension_semantics=("parallel", "arbitrary"),
            vmem_limit_bytes=vmem_limit),
    )(lam, x_stacked, bcat)


# --------------------------------------------------------- one-time prep -----

def prepare_inputs(X):
    """Once-per-dataset prep (torch __init__ equivalent): zero-pad the sensor
    axis, stack modalities, precompute the parameter-independent ||X||_F^2."""
    keys = list(X.keys())
    n_max = max(int(X[k].shape[0]) for k in keys)
    n_pad = _round_up(n_max, 8) if n_max <= 512 else _round_up(n_max, 512)
    x_stacked = jnp.stack(
        [jnp.pad(X[k].astype(jnp.float32),
                 ((0, n_pad - X[k].shape[0]), (0, 0))) for k in keys],
        axis=0)                                                   # (M, n_pad, P)
    xsqnorm = jnp.sum(jnp.square(x_stacked))                      # sum_m ||X_m||_F^2
    return x_stacked, xsqnorm


# ------------------------------------------------------------- CGD forward ---

@jax.jit
def cgd_spca_forward(x_stacked, xsqnorm, Bp, Bn, lambda1, lambda2):
    """Exact SPCA forward of the torch CGD module (G_idx all-True, Xtilde == X)."""
    num_comp = Bp.shape[1]
    lam = jnp.stack([jnp.asarray(lambda1, jnp.float32),
                     jnp.asarray(lambda2, jnp.float32)])
    bcat = jnp.concatenate([Bp.astype(jnp.float32), Bn.astype(jnp.float32)], axis=1)

    xtxg_t, partial = fused_spca(lam, x_stacked, bcat, num_comp)

    # Procrustes trace: sum((X^T X G)^T * S) with S = (U Vt)^T equals the sum of
    # singular values of X^T X G (identical for its transpose), so only the
    # singular values are needed — exact and insensitive to SVD non-uniqueness.
    # TODO(synk): SVD has no clean Pallas equivalent; computed in plain JAX/XLA.
    sv = jnp.linalg.svd(xtxg_t, compute_uv=False)                 # (M, min(K, P))

    return xsqnorm + jnp.sum(partial) - 2.0 * jnp.sum(sv)


# ------------------------------------------------------------- reference -----

def _reference_loss(X, Bp, Bn, lambda1, lambda2):
    """Pure-JAX transliteration of CGD.forward for model='SPCA'."""
    bps = jax.nn.softplus(Bp)
    bns = jax.nn.softplus(Bn)
    g = bps - bns
    loss = lambda1 * jnp.sum(bps + bns) + lambda2 * jnp.sum(bps ** 2 + bns ** 2)
    for k in X:
        x = X[k].astype(jnp.float32)
        xg = x @ g
        xtxg = x.T @ xg
        u, _, vt = jnp.linalg.svd(xtxg, full_matrices=False)
        loss = loss + jnp.sum(x * x) + jnp.sum(xg * xg) - 2.0 * jnp.sum(xtxg * (u @ vt))
    return loss


# --------------------------------------------------------------------- main --

if __name__ == "__main__":
    key = jax.random.PRNGKey(0)
    k1, k2, k3, k4 = jax.random.split(key, 4)

    P = 32        # number of samples (shared across modalities)
    K = 8         # num_comp
    N_EEG = 8     # EEG sensors
    N_MEG = 6     # MEG sensors

    X = {
        "EEG": jax.random.normal(k1, (N_EEG, P), dtype=jnp.float32),
        "MEG": jax.random.normal(k2, (N_MEG, P), dtype=jnp.float32),
    }
    # torch.rand -> uniform [0, 1)
    Bp = jax.random.uniform(k3, (P, K), dtype=jnp.float32)
    Bn = jax.random.uniform(k4, (P, K), dtype=jnp.float32)
    lambda1, lambda2 = 0.1, 0.1

    # One-time data prep (hoisted out of the training step).
    x_stacked, xsqnorm = prepare_inputs(X)

    loss = cgd_spca_forward(x_stacked, xsqnorm, Bp, Bn, lambda1, lambda2)
    loss = jax.block_until_ready(loss)

    if bool(jnp.isnan(loss)):
        raise ValueError("Loss is NaN")

    ref = jax.block_until_ready(_reference_loss(X, Bp, Bn, lambda1, lambda2))
    assert abs(float(loss) - float(ref)) <= 1e-3 * max(1.0, abs(float(ref))), (
        float(loss), float(ref))

    print("KERNEL_OK")
</pallas_src>

<mosaic_0001>
module attributes {stable_mosaic.version = 11 : i64} {
  func.func @_fused_spca_kernel(%arg0: i32, %arg1: i32, %arg2: memref<2xf32, #tpu.memory_space<smem>>, %arg3: memref<1x8x32xf32, #tpu.memory_space<vmem>>, %arg4: memref<32x16xf32, #tpu.memory_space<vmem>>, %arg5: memref<1x8x32xf32, #tpu.memory_space<vmem>>, %arg6: memref<1x1x1xf32, #tpu.memory_space<vmem>>, %arg7: memref<32x8xf32, #tpu.memory_space<vmem>>) attributes {dimension_semantics = [#tpu.dimension_semantics<parallel>, #tpu.dimension_semantics<arbitrary>], iteration_bounds = array<i64: 2, 1>, scalar_prefetch = 0 : i64, scratch_operands = 1 : i64, tpu.core_type = #tpu.core_type<tc>, window_params = [{transform_indices = @transform_0, window_bounds = array<i64: 2>}, {transform_indices = @transform_1, window_bounds = array<i64: 1, 8, 32>}, {pipeline_mode = #tpu.pipeline_mode<synchronous>, transform_indices = @transform_2, window_bounds = array<i64: 32, 16>}, {transform_indices = @transform_3, window_bounds = array<i64: 1, 8, 32>}, {transform_indices = @transform_4, window_bounds = array<i64: 1, 1, 1>}]} {
    %c0_i32 = arith.constant 0 : i32
    %0 = arith.cmpi eq, %arg1, %c0_i32 : i32
    %1 = arith.extui %0 : i1 to i32
    %c0_i32_0 = arith.constant 0 : i32
    %2 = arith.cmpi ne, %1, %c0_i32_0 : i32
    scf.if %2 {
      %c0_19 = arith.constant 0 : index
      %22 = memref.load %arg2[%c0_19] : memref<2xf32, #tpu.memory_space<smem>>
      %c1 = arith.constant 1 : index
      %23 = memref.load %arg2[%c1] : memref<2xf32, #tpu.memory_space<smem>>
      %c0_20 = arith.constant 0 : index
      %c0_21 = arith.constant 0 : index
      %24 = vector.load %arg4[%c0_20, %c0_21] : memref<32x16xf32, #tpu.memory_space<vmem>>, vector<32x16xf32>
      %cst_22 = arith.constant 0.000000e+00 : f32
      %25 = vector.broadcast %cst_22 : f32 to vector<32x16xf32>
      %26 = arith.maximumf %24, %25 : vector<32x16xf32>
      %27 = vector.broadcast %cst_22 : f32 to vector<32x16xf32>
      %28 = arith.subf %24, %27 : vector<32x16xf32>
      %29 = arith.cmpf one, %28, %28 : vector<32x16xf32>
      %30 = vector.broadcast %cst_22 : f32 to vector<32x16xf32>
      %31 = arith.addf %24, %30 : vector<32x16xf32>
      %32 = math.absf %28 : vector<32x16xf32>
      %cst_23 = arith.constant 0.000000e+00 : f32
      %33 = vector.broadcast %cst_23 : f32 to vector<32x16xf32>
      %34 = arith.subf %33, %32 : vector<32x16xf32>
      %35 = math.exp %34 : vector<32x16xf32>
      %36 = math.log1p %35 : vector<32x16xf32>
      %37 = arith.addf %26, %36 : vector<32x16xf32>
      %38 = arith.select %29, %31, %37 : vector<32x16xi1>, vector<32x16xf32>
      %39 = vector.extract_strided_slice %38 {offsets = [0, 0], sizes = [32, 8], strides = [1, 1]} : vector<32x16xf32> to vector<32x8xf32>
      %40 = vector.extract_strided_slice %38 {offsets = [0, 8], sizes = [32, 8], strides = [1, 1]} : vector<32x16xf32> to vector<32x8xf32>
      %41 = arith.subf %39, %40 : vector<32x8xf32>
      %c0_24 = arith.constant 0 : index
      %c0_25 = arith.constant 0 : index
      %42 = vector.load %arg7[%c0_24, %c0_25] : memref<32x8xf32, #tpu.memory_space<vmem>>, vector<32x8xf32>
      tpu.vector_store %arg7[%c0_24, %c0_25], %41 {strides = array<i32>} : memref<32x8xf32, #tpu.memory_space<vmem>>, vector<32x8xf32>,
      %cst_26 = arith.constant 0.000000e+00 : f32
      %43 = vector.broadcast %cst_26 : f32 to vector<1x8x32xf32>
      %c0_27 = arith.constant 0 : index
      %c0_28 = arith.constant 0 : index
      %c0_29 = arith.constant 0 : index
      %44 = vector.load %arg5[%c0_27, %c0_28, %c0_29] : memref<1x8x32xf32, #tpu.memory_space<vmem>>, vector<1x8x32xf32>
      tpu.vector_store %arg5[%c0_27, %c0_28, %c0_29], %43 {strides = array<i32>} : memref<1x8x32xf32, #tpu.memory_space<vmem>>, vector<1x8x32xf32>,
      %45 = vector.broadcast %22 : f32 to vector<32x16xf32>
      %46 = arith.mulf %45, %38 : vector<32x16xf32>
      %47 = arith.mulf %38, %38 : vector<32x16xf32>
      %48 = vector.broadcast %23 : f32 to vector<32x16xf32>
      %49 = arith.mulf %48, %47 : vector<32x16xf32>
      %50 = arith.addf %46, %49 : vector<32x16xf32>
      %51 = vector.shape_cast %50 : vector<32x16xf32> to vector<1x32x16xf32>
      %cst_30 = arith.constant dense<0.000000e+00> : vector<1xf32>
      %52 = vector.multi_reduction <add>, %51, %cst_30 [1, 2] : vector<1x32x16xf32> to vector<1xf32>
      %53 = vector.shape_cast %52 : vector<1xf32> to vector<1x1x1xf32>
      %54 = vector.extract %53[0, 0, 0] : f32 from vector<1x1x1xf32>
      %55 = vector.broadcast %54 : f32 to vector<1x1xf32>
      %c0_i32_31 = arith.constant 0 : i32
      %56 = arith.cmpi eq, %arg0, %c0_i32_31 : i32
      %cst_32 = arith.constant 0.000000e+00 : f32
      %57 = vector.broadcast %cst_32 : f32 to vector<1x1xf32>
      %58 = arith.select %56, %55, %57 : vector<1x1xf32>
      %59 = vector.shape_cast %58 : vector<1x1xf32> to vector<1x1x1xf32>
      %c0_33 = arith.constant 0 : index
      %c0_34 = arith.constant 0 : index
      %c0_35 = arith.constant 0 : index
      %60 = vector.load %arg6[%c0_33, %c0_34, %c0_35] : memref<1x1x1xf32, #tpu.memory_space<vmem>>, vector<1x1x1xf32>
      tpu.vector_store %arg6[%c0_33, %c0_34, %c0_35], %59 {strides = array<i32>} : memref<1x1x1xf32, #tpu.memory_space<vmem>>, vector<1x1x1xf32>,
    } else {
    }
    %c0 = arith.constant 0 : index
    %c0_1 = arith.constant 0 : index
    %c0_2 = arith.constant 0 : index
    %3 = vector.load %arg3[%c0, %c0_1, %c0_2] : memref<1x8x32xf32, #tpu.memory_space<vmem>>, vector<1x8x32xf32>
    %4 = vector.shape_cast %3 : vector<1x8x32xf32> to vector<8x32xf32>
    %c0_3 = arith.constant 0 : index
    %c0_4 = arith.constant 0 : index
    %5 = vector.load %arg7[%c0_3, %c0_4] : memref<32x8xf32, #tpu.memory_space<vmem>>, vector<32x8xf32>
    %cst = arith.constant dense<0.000000e+00> : vector<8x8xf32>
    %6 = tpu.matmul %4, %5, %cst {dimension_numbers = #tpu.dot_dimension_numbers<[1], [0], [0], [1], [0, 0, 1, 1], [], []>} : vector<8x32xf32>, vector<32x8xf32>, vector<8x8xf32> -> vector<8x8xf32>
    %cst_5 = arith.constant dense<0.000000e+00> : vector<8x32xf32>
    %7 = tpu.matmul %6, %4, %cst_5 {dimension_numbers = #tpu.dot_dimension_numbers<[0], [0], [1], [1], [0, 1, 1, 1], [], []>} : vector<8x8xf32>, vector<8x32xf32>, vector<8x32xf32> -> vector<8x32xf32>
    %c0_6 = arith.constant 0 : index
    %c0_7 = arith.constant 0 : index
    %c0_8 = arith.constant 0 : index
    %8 = vector.load %arg5[%c0_6, %c0_7, %c0_8] : memref<1x8x32xf32, #tpu.memory_space<vmem>>, vector<1x8x32xf32>
    %9 = vector.shape_cast %7 : vector<8x32xf32> to vector<1x8x32xf32>
    %10 = arith.addf %8, %9 : vector<1x8x32xf32>
    %c0_9 = arith.constant 0 : index
    %c0_10 = arith.constant 0 : index
    %c0_11 = arith.constant 0 : index
    %11 = vector.load %arg5[%c0_9, %c0_10, %c0_11] : memref<1x8x32xf32, #tpu.memory_space<vmem>>, vector<1x8x32xf32>
    tpu.vector_store %arg5[%c0_9, %c0_10, %c0_11], %10 {strides = array<i32>} : memref<1x8x32xf32, #tpu.memory_space<vmem>>, vector<1x8x32xf32>,
    %c0_12 = arith.constant 0 : index
    %c0_13 = arith.constant 0 : index
    %c0_14 = arith.constant 0 : index
    %12 = vector.load %arg6[%c0_12, %c0_13, %c0_14] : memref<1x1x1xf32, #tpu.memory_space<vmem>>, vector<1x1x1xf32>
    %13 = arith.mulf %6, %6 : vector<8x8xf32>
    %14 = vector.shape_cast %13 : vector<8x8xf32> to vector<1x8x8xf32>
    %cst_15 = arith.constant dense<0.000000e+00> : vector<1xf32>
    %15 = vector.multi_reduction <add>, %14, %cst_15 [1, 2] : vector<1x8x8xf32> to vector<1xf32>
    %16 = vector.shape_cast %15 : vector<1xf32> to vector<1x1x1xf32>
    %17 = vector.extract %16[0, 0, 0] : f32 from vector<1x1x1xf32>
    %18 = vector.broadcast %17 : f32 to vector<1x1xf32>
    %19 = vector.shape_cast %18 : vector<1x1xf32> to vector<1x1x1xf32>
    %20 = arith.addf %12, %19 : vector<1x1x1xf32>
    %c0_16 = arith.constant 0 : index
    %c0_17 = arith.constant 0 : index
    %c0_18 = arith.constant 0 : index
    %21 = vector.load %arg6[%c0_16, %c0_17, %c0_18] : memref<1x1x1xf32, #tpu.memory_space<vmem>>, vector<1x1x1xf32>
    tpu.vector_store %arg6[%c0_16, %c0_17, %c0_18], %20 {strides = array<i32>} : memref<1x1x1xf32, #tpu.memory_space<vmem>>, vector<1x1x1xf32>,
    return
  }
  func.func @transform_0(%arg0: i32, %arg1: i32) -> i32 {
    %c0_i32 = arith.constant 0 : i32
    %c0_i32_0 = arith.constant 0 : i32
    return %c0_i32 : i32
  }
  func.func @transform_1(%arg0: i32, %arg1: i32) -> (i32, i32, i32) {
    %c0_i32 = arith.constant 0 : i32
    %c0_i32_0 = arith.constant 0 : i32
    return %arg0, %arg1, %c0_i32 : i32, i32, i32
  }
  func.func @transform_2(%arg0: i32, %arg1: i32) -> (i32, i32) {
    %c0_i32 = arith.constant 0 : i32
    %c0_i32_0 = arith.constant 0 : i32
    %c0_i32_1 = arith.constant 0 : i32
    return %c0_i32, %c0_i32_0 : i32, i32
  }
  func.func @transform_3(%arg0: i32, %arg1: i32) -> (i32, i32, i32) {
    %c0_i32 = arith.constant 0 : i32
    %c0_i32_0 = arith.constant 0 : i32
    %c0_i32_1 = arith.constant 0 : i32
    return %arg0, %c0_i32, %c0_i32_0 : i32, i32, i32
  }
  func.func @transform_4(%arg0: i32, %arg1: i32) -> (i32, i32, i32) {
    %c0_i32 = arith.constant 0 : i32
    %c0_i32_0 = arith.constant 0 : i32
    %c0_i32_1 = arith.constant 0 : i32
    return %arg0, %c0_i32, %c0_i32_0 : i32, i32, i32
  }
}

</mosaic_0001>

<llo_original>
// kernel: custom-call.22
$region0: #{custom-call.22}
  %s0 = inlined_call_operand.vmem [shape: f32[2,32,8], index: 0, kind: input, shape index: {}]
  %s1 = inlined_call_operand.vmem [shape: f32[2,32,8], index: 1, kind: output, shape index: {0}]
  %s2 = inlined_call_operand.hbm [shape: f32[2,8], index: 2, kind: output, shape index: {1}]
  %3 = xla_tuple %s1, %s2
  $region1: #{custom-call.22} parent=0
    #allocation0 [shape = 'u8[32768]{0}', space=vmem, size = 0x8000, scoped, tag = 'operand span for operand 0']
    #allocation1 [shape = 'u8[32768]{0}', space=vmem, size = 0x8000, scoped, tag = 'operand span for operand 1']
    #allocation2 [shape = 'u8[4096]{0}', space=vmem, size = 0x1000, scoped, tag = 'operand span for operand 2']
    #allocation3 [shape = 'u8[2048]{0}', space=vmem, size = 0x800, scoped, tag = 'packed  for operand 2']
    #allocation4 [shape = 's32[2]{0}', space=sflag, size = 0x8, scoped, tag = 'scoped memory for custom-call.22']
    %4 = vsyncpa [#allocation4], 0
    %s5 = scalar_lea.sflag [#allocation4], 1
    %6 = vsyncpa %s5, 0
    loop: start=0, step=1, limit=4
    $region2: #{custom-call.22} parent=1 // loop_pre_header
      _
    $region3: #{custom-call.22} parent=1 // loop_header
      %s8 = sphi 0, %s12
      %p9 = scmp.ge.s32.totalorder %s8, 4
      %s15 = sphi 0, %s34
      %s16 = sphi 0, %s30
      %s17 = sphi 0, %s26
      %s18 = sphi 0, %s15
      %s19 = sphi 0, %s16
      %s20 = sphi 0, %s17
      %s21 = sphi 0, %s18
      %s22 = sphi 0, %s19
      %s23 = sphi 0, %s20
      %s49 = sphi 0, %s51
      %s52 = sphi 0, %s49
      %s53 = sphi 0, %s52
      %s69 = sphi 0, %s53
    $region4: #{custom-call.22} parent=1 // loop_header_branch
      %11 = sbr.rel (%p9) target = $region8
    $region5: #{custom-call.22} parent=1 // loop_body
      %s13 = ssub.s32 %s8, 1
      %s14 = ssub.s32 %s8, 2
      %s24 = sadd.s32 1, %s17
      %p25 = scmp.ge.s32.totalorder %s24, 1
      %s26 = scalar_select %p25, 0, %s24
      %s27 = sadd.s32 1, %s16
      %s28 = scalar_select %p25, %s27, %s16
      %p29 = scmp.ge.s32.totalorder %s28, 1
      %s30 = scalar_select %p29, 0, %s28
      %s31 = sadd.s32 1, %s15
      %s32 = scalar_select %p29, %s31, %s15
      %p33 = scmp.ge.s32.totalorder %s32, 2
      %s34 = scalar_select %p33, 0, %s32
      %p35 = scmp.lt.s32.totalorder %s15, 0
      %s36 = ssub.s32 0, %s15
      %s37 = scalar_select %p35, %s36, %s15
      %s38 = sshrl.u32 %s37, 3
      %s39 = ssub.s32 0, %s38
      %s40 = scalar_select %p35, %s39, %s38
      %p41 = scmp.lt.s32.totalorder %s34, 0
      %s42 = ssub.s32 0, %s34
      %s43 = scalar_select %p41, %s42, %s34
      %s44 = sshrl.u32 %s43, 3
      %s45 = ssub.s32 0, %s44
      %s46 = scalar_select %p41, %s45, %s44
      %s47 = ssub.s32 %s40, %s46
      %p48 = scmp.eq.s32.totalorder %s47, 0
      %s50 = sadd.s32 %s49, 1
      %s51 = scalar_select %p48, %s49, %s50
      %p54 = pneg %p48
      %p55 = scmp.eq.s32.totalorder %s8, 1
      %p56 = por %p54, %p55
      %p57 = scmp.ne.s32.totalorder %s49, %s52
      %p58 = scmp.eq.s32.totalorder %s8, 0
      %p59 = por %p57, %p58
      %p60 = scmp.ne.s32.totalorder %s49, %s52
      %p61 = scmp.eq.s32.totalorder %s13, 1
      %p62 = por %p60, %p61
      %p63 = scmp.ne.s32.totalorder %s52, %s53
      %p64 = scmp.eq.s32.totalorder %s13, 0
      %p65 = por %p63, %p64
      %p66 = scmp.ne.s32.totalorder %s52, %s53
      %p67 = scmp.eq.s32.totalorder %s14, 1
      %p68 = por %p66, %p67
      %p70 = scmp.ne.s32.totalorder %s53, %s69
      %p71 = scmp.eq.s32.totalorder %s14, 0
      %p72 = por %p70, %p71
      %p73 = scmp.le.s32.totalorder 1, %s8
      %p74 = scmp.lt.s32.totalorder %s8, 3
      %p75 = pnand %p73, %p74
      %p76 = pneg %p75
      // Predicated region
      $region9: #{custom-call.22} parent=5 // pred_check
        _
      $region10: #{custom-call.22} parent=5 // pred_check_branch
        %78 = sbr.rel (%p75) target = $region12
      $region11: #{custom-call.22} parent=5 // pred_region
        %s79 = ssub.s32 %s8, 1
      $region12: #{custom-call.22} parent=5 // pred_fallthru
        _
      %p80 = scmp.lt.s32.totalorder %s8, 2
      // Predicated region
      $region13: #{custom-call.22} parent=5 // pred_check
        %p81 = pneg %p80
      $region14: #{custom-call.22} parent=5 // pred_check_branch
        %83 = sbr.rel (%p81) target = $region16
      $region15: #{custom-call.22} parent=5 // pred_region
        %s84 = sand.u32 %s8, 1
        %s85 = sand.u32 %s8, 1
        %s86 = smul.addr %s85, 32
        %s87 = scalar_lea.vmem [#allocation0], %s86
        %s88 = smul.u32 4, %s16
        %s89 = sadd.s32 %s17, %s88
        %s90 = smul.addr %s15, 4
        %s91 = sadd.s32 %s89, %s90
        %s92 = smul.addr %s91, 8
        %s93 = scalar_lea.vmem %s0, %s92
        // Predicated region
        $region17: #{custom-call.22} parent=15 // pred_check
          _
        $region18: #{custom-call.22} parent=15 // pred_check_branch
          %95 = sbr.rel (0) target = $region20
        $region19: #{custom-call.22} parent=15 // pred_region
          // Predicated region
          $region21: #{custom-call.22} parent=19 // pred_check
            _
          $region22: #{custom-call.22} parent=19 // pred_check_branch
            %97 = sbr.rel (0) target = $region24
          $region23: #{custom-call.22} parent=19 // pred_region
            // Predicated region
            $region36: #{custom-call.22} parent=23 // pred_check
              _
            $region37: #{custom-call.22} parent=23 // pred_check_branch
              %119 = sbr.rel (0) target = $region39
            $region38: #{custom-call.22} parent=23 // pred_region
              loop: start=0, step=1, limit=1
              $region40: #{custom-call.22} parent=38 // loop_pre_header
                _
              $region41: #{custom-call.22} parent=38 // loop_header
                %s121 = sphi 0, %s125
                %p122 = scmp.ge.s32.totalorder %s121, 1
                %s126 = sphi %s93, %s93
                %s127 = sphi %s87, %s87
              $region42: #{custom-call.22} parent=38 // loop_header_branch
                %124 = sbr.rel (%p122) target = $region46
              $region43: #{custom-call.22} parent=38 // loop_body
                %v128 = vld [vmem:[%s126] sm:$0xff]
                %129 = vst [vmem:[%s127] sm:$0xff] %v128
                %v130 = vld [vmem:[%s126 + $0x8] sm:$0xff]
                %131 = vst [vmem:[%s127 + $0x8] sm:$0xff] %v130
                %v132 = vld [vmem:[%s126 + $0x10] sm:$0xff]
                %133 = vst [vmem:[%s127 + $0x10] sm:$0xff] %v132
                %v134 = vld [vmem:[%s126 + $0x18] sm:$0xff]
                %135 = vst [vmem:[%s127 + $0x18] sm:$0xff] %v134
              $region44: #{custom-call.22} parent=38 // loop_footer
                %s125 = sadd.s32 1, %s121
              $region45: #{custom-call.22} parent=38 // loop_footer_branch
                %120 = sbr.rel target = $region41
              $region46: #{custom-call.22} parent=38 // loop_exit
                _
            $region39: #{custom-call.22} parent=23 // pred_fallthru
              _
            // Predicated region
            $region47: #{custom-call.22} parent=23 // pred_check
              _
            $region48: #{custom-call.22} parent=23 // pred_check_branch
              %137 = sbr.rel target = $region50
            $region49: #{custom-call.22} parent=23 // pred_region
              _
            $region50: #{custom-call.22} parent=23 // pred_fallthru
              _
          $region24: #{custom-call.22} parent=19 // pred_fallthru
            _
          // Predicated region
          $region25: #{custom-call.22} parent=19 // pred_check
            _
          $region26: #{custom-call.22} parent=19 // pred_check_branch
            %99 = sbr.rel target = $region28
          $region27: #{custom-call.22} parent=19 // pred_region
            %s101 = ssub.s32 256, 1
            loop: start=0, step=1, limit=1
            $region29: #{custom-call.22} parent=27 // loop_pre_header
              _
            $region30: #{custom-call.22} parent=27 // loop_header
              %s103 = sphi 0, %s107
              %p104 = scmp.ge.s32.totalorder %s103, 1
              %s108 = sphi %s93, %s93
              %s109 = sphi %s87, %s87
            $region31: #{custom-call.22} parent=27 // loop_header_branch
              %106 = sbr.rel (%p104) target = $region35
            $region32: #{custom-call.22} parent=27 // loop_body
              %v110 = vld [vmem:[%s108] sm:%s101]
              %111 = vst [vmem:[%s109] sm:%s101] %v110
              %v112 = vld [vmem:[%s108 + $0x8] sm:%s101]
              %113 = vst [vmem:[%s109 + $0x8] sm:%s101] %v112
              %v114 = vld [vmem:[%s108 + $0x10] sm:%s101]
              %115 = vst [vmem:[%s109 + $0x10] sm:%s101] %v114
              %v116 = vld [vmem:[%s108 + $0x18] sm:%s101]
              %117 = vst [vmem:[%s109 + $0x18] sm:%s101] %v116
            $region33: #{custom-call.22} parent=27 // loop_footer
              %s107 = sadd.s32 1, %s103
            $region34: #{custom-call.22} parent=27 // loop_footer_branch
              %102 = sbr.rel target = $region30
            $region35: #{custom-call.22} parent=27 // loop_exit
              _
          $region28: #{custom-call.22} parent=19 // pred_fallthru
            _
        $region20: #{custom-call.22} parent=15 // pred_fallthru
          _
        %138 = vnop
      $region16: #{custom-call.22} parent=5 // pred_fallthru
        _
      %p139 = scmp.le.s32.totalorder 1, %s8
      %p140 = scmp.lt.s32.totalorder %s8, 3
      %p141 = pnand %p139, %p140
      %p142 = pneg %p141
      // Predicated region
      $region51: #{custom-call.22} parent=5 // pred_check
        _
      $region52: #{custom-call.22} parent=5 // pred_check_branch
        %144 = sbr.rel (%p141) target = $region54
      $region53: #{custom-call.22} parent=5 // pred_region
        #allocation5 [shape = 'f32[32,128]{1,0}', space=vmem, size = 0x4000, scoped, tag = 'scratch for Householder reflectors']
        %s145 = ssub.s32 %s8, 1
        %s146 = sand.u32 %s13, 1
        %s147 = sand.u32 %s13, 1
        %s148 = smul.addr %s147, 32
        %s149 = scalar_lea.vmem [#allocation0], %s148
        %s150 = sand.u32 %s13, 1
        %s151 = sand.u32 %s13, 1
        %s152 = smul.addr %s151, 32
        %s153 = scalar_lea.vmem [#allocation0], %s152
        %s154 = sand.u32 %s13, 1
        %s155 = sand.u32 %s13, 1
        %s156 = smul.addr %s155, 32
        %s157 = scalar_lea.vmem [#allocation1], %s156
        %p158 = pneg %p65
        %p159 = pneg %p62
        %s160 = sand.u32 %s52, 1
        %s161 = scalar_lea.sflag [#allocation4], %s160
        %s162 = sand.u32 %s52, 1
        %s163 = smul.addr %s162, 2
        %s164 = scalar_lea.vmem [#allocation3], %s163
        %s165 = smul.u32 4, %s19
        %s166 = smul.u32 4, %s19
        %p167 = scmp.lt.s32.totalorder %s18, 0
        %s168 = ssub.s32 0, %s18
        %s169 = scalar_select %p167, %s168, %s18
        %s170 = sshrl.u32 %s169, 3
        %s171 = ssub.s32 0, %s170
        %s172 = scalar_select %p167, %s171, %s170
        %s173 = sand.u32 %s18, 7
        %s174 = scalar_lea.vmem [#allocation2], %s173
        %v175 = vld [vmem:[%s149] sm:$0xff]
        %176 = vst [vmem:[%s157] sm:$0xff] %v175
        %s177 = scalar_lea.vmem %s157, 8 [#allocation1]
        %s178 = scalar_lea.vmem %s149, 8 [#allocation0]
        %v179 = vld [vmem:[%s178] sm:$0xff]
        %180 = vst [vmem:[%s177] sm:$0xff] %v179
        %s181 = scalar_lea.vmem %s157, 16 [#allocation1]
        %s182 = scalar_lea.vmem %s149, 16 [#allocation0]
        %v183 = vld [vmem:[%s182] sm:$0xff]
        %184 = vst [vmem:[%s181] sm:$0xff] %v183
        %s185 = scalar_lea.vmem %s157, 24 [#allocation1]
        %s186 = scalar_lea.vmem %s149, 24 [#allocation0]
        %v187 = vld [vmem:[%s186] sm:$0xff]
        %188 = vst [vmem:[%s185] sm:$0xff] %v187
        %189 = vst [vmem:[%s174] sm:$0x1] 0.0
        loop: start=0, step=1, limit=8
        $region55: #{custom-call.22} parent=53 // loop_pre_header
          _
        $region56: #{custom-call.22} parent=53 // loop_header
          %s191 = sphi 0, %s195
          %p192 = scmp.ge.s32.totalorder %s191, 8
        $region57: #{custom-call.22} parent=53 // loop_header_branch
          %194 = sbr.rel (%p192) target = $region61
        $region58: #{custom-call.22} parent=53 // loop_body
          %v196 = vld [vmem:[%s157] sm:$0xff]
          %v197 = vlaneseq
          %v198 = vshrl.u32 %v197, 7
          %v200 = vstv %s191
          %vm201 = vcmp.gt.s32.totalorder %v198, %v200
          %v202 = vsel %vm201, %v196, 0.0
          %v203 = vmul.f32 %v202, %v202
          %s204 = scalar_lea.vmem %s157, 8 [#allocation1]
          %v205 = vld [vmem:[%s204] sm:$0xff]
          %v206 = vlaneseq
          %v207 = vshrl.u32 %v206, 7
          %v208 = vadd.s32 %v207, 8
          %v209 = vstv %s191
          %vm210 = vcmp.gt.s32.totalorder %v208, %v209
          %v211 = vsel %vm210, %v205, 0.0
          %v212 = vmul.f32 %v211, %v211
          %v213 = vadd.f32 %v203, %v212
          %s214 = scalar_lea.vmem %s157, 16 [#allocation1]
          %v215 = vld [vmem:[%s214] sm:$0xff]
          %v216 = vlaneseq
          %v217 = vshrl.u32 %v216, 7
          %v218 = vadd.s32 %v217, 16
          %v219 = vstv %s191
          %vm220 = vcmp.gt.s32.totalorder %v218, %v219
          %v221 = vsel %vm220, %v215, 0.0
          %v222 = vmul.f32 %v221, %v221
          %v223 = vadd.f32 %v213, %v222
          %s224 = scalar_lea.vmem %s157, 24 [#allocation1]
          %v225 = vld [vmem:[%s224] sm:$0xff]
          %v226 = vlaneseq
          %v227 = vshrl.u32 %v226, 7
          %v228 = vadd.s32 %v227, 24
          %v229 = vstv %s191
          %vm230 = vcmp.gt.s32.totalorder %v228, %v229
          %vm231 = vcmp.lt.s32.totalorder %v228, 32
          %vm232 = vmand %vm230, %vm231
          %v233 = vsel %vm232, %v225, 0.0
          %v234 = vmul.f32 %v233, %v233
          %v235 = vadd.f32 %v223, %v234
          %v236 = vrot.slane %v235, 4
          %v237 = vadd.f32 %v235, %v236
          %v238 = vrot.slane %v237, 2
          %v239 = vadd.f32 %v237, %v238
          %v240 = vrot.slane %v239, 1
          %v241 = vadd.f32 %v239, %v240
          %v242 = vrsqrt.pop %v241
          %v243 = vmul.f32 %v242, %v241
          %v244 = vmul.f32 %v243, %v242
          %v245 = vmul.f32 0.5, %v244
          %v246 = vsub.f32 1.5, %v245
          %v247 = vmul.f32 %v242, %v246
          %v248 = vmul.f32 %v241, %v247
          %vm249 = vcmp.eq.f32.partialorder %v241, inf
          %v250 = vsel %vm249, %v241, %v248
          %vm251 = vcmp.eq.f32.partialorder %v241, 0.0
          %v252 = vand.u32 %v241, 2147483648
          %v253 = vsel %vm251, %v252, %v250
          %vm254 = vcmp.eq.f32.partialorder %v241, 0.0
          %s255 = sshrl.u32 %s191, 3
          %s256 = sand.u32 %s191, 7
          %s257 = smul.addr %s255, 8
          %s258 = sadd.s32 %s256, %s257
          %s259 = scalar_lea.vmem %s157, %s258 [#allocation1]
          %v260 = vld [vmem:[%s259] ss:$0 sm:$0xff]
          %v261 = vand.u32 2147483647, %v260
          %v262 = vmax.f32 %v261, 0.0
          %v263 = vand.u32 2147483647, %v253
          %v264 = vmax.f32 %v262, %v263
          %v265 = vrcp.pop %v264
          %v266 = vmul.f32 %v264, %v265
          %v267 = vsub.f32 1.0, %v266
          %v268 = vmul.f32 %v265, %v267
          %v269 = vadd.f32 %v265, %v268
          %vm270 = vweird.f32 %v264
          %vm271 = vweird.f32 %v265
          %vm272 = vmor %vm270, %vm271
          %v273 = vsel %vm272, %v265, %v269
          %v274 = vand.u32 2147483647, %v264
          %vm275 = vcmp.eq.f32.partialorder %v274, 8.507059e+37
          %v276 = vand.u32 %v264, 2147483648
          %v277 = vor.u32 1.1754944e-38, %v276
          %v278 = vsel %vm275, %v277, %v273
          %v279 = vmul.f32 %v261, %v278
          %v280 = vmul.f32 %v279, %v279
          %v281 = vrcp.pop %v264
          %v282 = vmul.f32 %v264, %v281
          %v283 = vsub.f32 1.0, %v282
          %v284 = vmul.f32 %v281, %v283
          %v285 = vadd.f32 %v281, %v284
          %vm286 = vweird.f32 %v264
          %vm287 = vweird.f32 %v281
          %vm288 = vmor %vm286, %vm287
          %v289 = vsel %vm288, %v281, %v285
          %v290 = vand.u32 2147483647, %v264
          %vm291 = vcmp.eq.f32.partialorder %v290, 8.507059e+37
          %v292 = vand.u32 %v264, 2147483648
          %v293 = vor.u32 1.1754944e-38, %v292
          %v294 = vsel %vm291, %v293, %v289
          %v295 = vmul.f32 0.0, %v294
          %v296 = vmul.f32 %v295, %v295
          %v297 = vadd.f32 %v280, %v296
          %v298 = vrcp.pop %v264
          %v299 = vmul.f32 %v264, %v298
          %v300 = vsub.f32 1.0, %v299
          %v301 = vmul.f32 %v298, %v300
          %v302 = vadd.f32 %v298, %v301
          %vm303 = vweird.f32 %v264
          %vm304 = vweird.f32 %v298
          %vm305 = vmor %vm303, %vm304
          %v306 = vsel %vm305, %v298, %v302
          %v307 = vand.u32 2147483647, %v264
          %vm308 = vcmp.eq.f32.partialorder %v307, 8.507059e+37
          %v309 = vand.u32 %v264, 2147483648
          %v310 = vor.u32 1.1754944e-38, %v309
          %v311 = vsel %vm308, %v310, %v306
          %v312 = vmul.f32 %v263, %v311
          %v313 = vmul.f32 %v312, %v312
          %v314 = vadd.f32 %v297, %v313
          %vm315 = vcmp.eq.f32.partialorder %v264, 0.0
          %v316 = vrsqrt.pop %v314
          %v317 = vmul.f32 %v316, %v314
          %v318 = vmul.f32 %v317, %v316
          %v319 = vmul.f32 0.5, %v318
          %v320 = vsub.f32 1.5, %v319
          %v321 = vmul.f32 %v316, %v320
          %v322 = vmul.f32 %v314, %v321
          %vm323 = vcmp.eq.f32.partialorder %v314, inf
          %v324 = vsel %vm323, %v314, %v322
          %vm325 = vcmp.eq.f32.partialorder %v314, 0.0
          %v326 = vand.u32 %v314, 2147483648
          %v327 = vsel %vm325, %v326, %v324
          %v328 = vmul.f32 %v264, %v327
          %v329 = vsel %vm315, 0.0, %v328
          %vm330 = vcmp.lt.f32.partialorder %v260, 0.0
          %v331 = vxor.u32 %v329, 2147483648
          %v332 = vsel %vm330, %v329, %v331
          %v333 = vsub.f32 %v332, %v260
          %v334 = vrcp.pop %v332
          %v335 = vmul.f32 %v332, %v334
          %v336 = vsub.f32 1.0, %v335
          %v337 = vmul.f32 %v334, %v336
          %v338 = vadd.f32 %v334, %v337
          %vm339 = vweird.f32 %v332
          %vm340 = vweird.f32 %v334
          %vm341 = vmor %vm339, %vm340
          %v342 = vsel %vm341, %v334, %v338
          %v343 = vand.u32 2147483647, %v332
          %vm344 = vcmp.eq.f32.partialorder %v343, 8.507059e+37
          %v345 = vand.u32 %v332, 2147483648
          %v346 = vor.u32 1.1754944e-38, %v345
          %v347 = vsel %vm344, %v346, %v342
          %v348 = vmul.f32 %v333, %v347
          %v349 = vsel %vm254, %v260, %v332
          %v350 = vsel %vm254, 0.0, %v348
          %v351 = vsub.f32 %v260, %v349
          %s352 = smov %s157
          %v353 = vlaneseq
          %v354 = vshrl.u32 %v353, 7
          %v355 = vmov %v354
          %v356 = vld [vmem:[%s352] sm:$0xff]
          %v358 = vstv %s191
          %vm359 = vcmp.gt.s32.totalorder %v355, %v358
          %v360 = vsel %vm359, %v356, 0.0
          %v361 = vrcp.pop %v351
          %v362 = vmul.f32 %v351, %v361
          %v363 = vsub.f32 1.0, %v362
          %v364 = vmul.f32 %v361, %v363
          %v365 = vadd.f32 %v361, %v364
          %vm366 = vweird.f32 %v351
          %vm367 = vweird.f32 %v361
          %vm368 = vmor %vm366, %vm367
          %v369 = vsel %vm368, %v361, %v365
          %v370 = vand.u32 2147483647, %v351
          %vm371 = vcmp.eq.f32.partialorder %v370, 8.507059e+37
          %v372 = vand.u32 %v351, 2147483648
          %v373 = vor.u32 1.1754944e-38, %v372
          %v374 = vsel %vm371, %v373, %v369
          %v375 = vmul.f32 %v360, %v374
          %v376 = vsel %vm254, 0.0, %v375
          %v377 = vstv %s191
          %v378 = vlaneseq
          %v379 = vand.u32 %v378, 127
          %vm380 = vcmp.eq.s32.totalorder %v379, %v377
          %v381 = vsel %vm380, %v376, 0.0
          %382 = vadd.xlane.f32.xlu0 %v381
          %v383 = vpop.xlane.xlu0 %382
          %384 = vst [vmem:[#allocation5] sm:$0xff] %v383
          %s385 = scalar_lea.vmem %s352, 8
          %v386 = vld [vmem:[%s385] sm:$0xff]
          %v387 = vadd.s32 %v355, 8
          %v388 = vstv %s191
          %vm389 = vcmp.gt.s32.totalorder %v387, %v388
          %v390 = vsel %vm389, %v386, 0.0
          %v391 = vrcp.pop %v351
          %v392 = vmul.f32 %v351, %v391
          %v393 = vsub.f32 1.0, %v392
          %v394 = vmul.f32 %v391, %v393
          %v395 = vadd.f32 %v391, %v394
          %vm396 = vweird.f32 %v351
          %vm397 = vweird.f32 %v391
          %vm398 = vmor %vm396, %vm397
          %v399 = vsel %vm398, %v391, %v395
          %v400 = vand.u32 2147483647, %v351
          %vm401 = vcmp.eq.f32.partialorder %v400, 8.507059e+37
          %v402 = vand.u32 %v351, 2147483648
          %v403 = vor.u32 1.1754944e-38, %v402
          %v404 = vsel %vm401, %v403, %v399
          %v405 = vmul.f32 %v390, %v404
          %v406 = vsel %vm254, 0.0, %v405
          %v407 = vstv %s191
          %v408 = vlaneseq
          %v409 = vand.u32 %v408, 127
          %vm410 = vcmp.eq.s32.totalorder %v409, %v407
          %v411 = vsel %vm410, %v406, 0.0
          %412 = vadd.xlane.f32.xlu0 %v411
          %v413 = vpop.xlane.xlu0 %412
          %s414 = scalar_lea.vmem [#allocation5], 8
          %415 = vst [vmem:[%s414] sm:$0xff] %v413
          %s416 = scalar_lea.vmem %s352, 16
          %v417 = vld [vmem:[%s416] sm:$0xff]
          %v418 = vadd.s32 %v355, 16
          %v419 = vstv %s191
          %vm420 = vcmp.gt.s32.totalorder %v418, %v419
          %v421 = vsel %vm420, %v417, 0.0
          %v422 = vrcp.pop %v351
          %v423 = vmul.f32 %v351, %v422
          %v424 = vsub.f32 1.0, %v423
          %v425 = vmul.f32 %v422, %v424
          %v426 = vadd.f32 %v422, %v425
          %vm427 = vweird.f32 %v351
          %vm428 = vweird.f32 %v422
          %vm429 = vmor %vm427, %vm428
          %v430 = vsel %vm429, %v422, %v426
          %v431 = vand.u32 2147483647, %v351
          %vm432 = vcmp.eq.f32.partialorder %v431, 8.507059e+37
          %v433 = vand.u32 %v351, 2147483648
          %v434 = vor.u32 1.1754944e-38, %v433
          %v435 = vsel %vm432, %v434, %v430
          %v436 = vmul.f32 %v421, %v435
          %v437 = vsel %vm254, 0.0, %v436
          %v438 = vstv %s191
          %v439 = vlaneseq
          %v440 = vand.u32 %v439, 127
          %vm441 = vcmp.eq.s32.totalorder %v440, %v438
          %v442 = vsel %vm441, %v437, 0.0
          %443 = vadd.xlane.f32.xlu0 %v442
          %v444 = vpop.xlane.xlu0 %443
          %s445 = scalar_lea.vmem [#allocation5], 16
          %446 = vst [vmem:[%s445] sm:$0xff] %v444
          %s447 = scalar_lea.vmem %s352, 24
          %v448 = vld [vmem:[%s447] sm:$0xff]
          %v449 = vadd.s32 %v355, 24
          %v450 = vstv %s191
          %vm451 = vcmp.gt.s32.totalorder %v449, %v450
          %vm452 = vcmp.lt.s32.totalorder %v449, 32
          %vm453 = vmand %vm451, %vm452
          %v454 = vsel %vm453, %v448, 0.0
          %v455 = vrcp.pop %v351
          %v456 = vmul.f32 %v351, %v455
          %v457 = vsub.f32 1.0, %v456
          %v458 = vmul.f32 %v455, %v457
          %v459 = vadd.f32 %v455, %v458
          %vm460 = vweird.f32 %v351
          %vm461 = vweird.f32 %v455
          %vm462 = vmor %vm460, %vm461
          %v463 = vsel %vm462, %v455, %v459
          %v464 = vand.u32 2147483647, %v351
          %vm465 = vcmp.eq.f32.partialorder %v464, 8.507059e+37
          %v466 = vand.u32 %v351, 2147483648
          %v467 = vor.u32 1.1754944e-38, %v466
          %v468 = vsel %vm465, %v467, %v463
          %v469 = vmul.f32 %v454, %v468
          %v470 = vsel %vm254, 0.0, %v469
          %v471 = vstv %s191
          %v472 = vlaneseq
          %v473 = vand.u32 %v472, 127
          %vm474 = vcmp.eq.s32.totalorder %v473, %v471
          %v475 = vsel %vm474, %v470, 0.0
          %476 = vadd.xlane.f32.xlu0 %v475
          %v477 = vpop.xlane.xlu0 %476
          %s478 = scalar_lea.vmem [#allocation5], 24
          %479 = vst [vmem:[%s478] sm:$0xff] %v477
          %s480 = scalar_lea.vmem [#allocation5], %s191
          %481 = vst [vmem:[%s480] sm:$0x1] 1.0
          %v482 = vstv %s191
          %v483 = vlaneseq
          %v484 = vand.u32 %v483, 127
          %vm485 = vcmp.eq.s32.totalorder %v484, %v482
          %v486 = vsel %vm485, %v350, 0.0
          %487 = vadd.xlane.f32.xlu0 %v486
          %v488 = vpop.xlane.xlu0 %487
          %v489 = vstv %s191
          %v490 = vlaneseq
          %v491 = vand.u32 %v490, 127
          %vm492 = vcmp.eq.s32.totalorder %v491, %v489
          %v493 = vld [vmem:[%s174] ss:$0 sm:$0xff]
          %v494 = vsel %vm492, %v488, %v493
          %495 = vst [vmem:[%s174] sm:$0x1] %v494
          %s496 = smov %s157
          %s497 = smov [#allocation5]
          %v498 = vlaneseq
          %v499 = vshrl.u32 %v498, 7
          %v500 = vmov %v499
          %v502 = vld [vmem:[%s497] sm:$0xff]
          %v503 = vld [vmem:[%s496] sm:$0xff]
          %v504 = vmul.f32 %v502, %v503
          %v505 = vadd.s32 %v500, 8
          %s506 = scalar_lea.vmem %s497, 8
          %v507 = vld [vmem:[%s506] sm:$0xff]
          %s508 = scalar_lea.vmem %s496, 8
          %v509 = vld [vmem:[%s508] sm:$0xff]
          %v510 = vmul.f32 %v507, %v509
          %v511 = vadd.f32 %v504, %v510
          %v512 = vadd.s32 %v500, 16
          %s513 = scalar_lea.vmem %s497, 16
          %v514 = vld [vmem:[%s513] sm:$0xff]
          %s515 = scalar_lea.vmem %s496, 16
          %v516 = vld [vmem:[%s515] sm:$0xff]
          %v517 = vmul.f32 %v514, %v516
          %v518 = vadd.f32 %v511, %v517
          %v519 = vadd.s32 %v500, 24
          %s520 = scalar_lea.vmem %s497, 24
          %v521 = vld [vmem:[%s520] sm:$0xff]
          %s522 = scalar_lea.vmem %s496, 24
          %v523 = vld [vmem:[%s522] sm:$0xff]
          %v524 = vmul.f32 %v521, %v523
          %vm525 = vcmp.lt.s32.totalorder %v519, 32
          %v526 = vsel %vm525, %v524, 0.0
          %v527 = vadd.f32 %v518, %v526
          %v528 = vrot.slane %v527, 4
          %v529 = vadd.f32 %v527, %v528
          %v530 = vrot.slane %v529, 2
          %v531 = vadd.f32 %v529, %v530
          %v532 = vrot.slane %v531, 1
          %v533 = vadd.f32 %v531, %v532
          %s534 = smov %s496
          %s535 = smov %s497
          %v536 = vlaneseq
          %v537 = vshrl.u32 %v536, 7
          %v538 = vmov %v537
          %v539 = vmul.f32 %v533, %v488
          %v541 = vlaneseq
          %v542 = vand.u32 %v541, 127
          %v543 = vld [vmem:[%s535] sm:$0xff]
          %v544 = vmul.f32 %v543, %v539
          %v545 = vld [vmem:[%s534] sm:$0xff]
          %v546 = vstv %s191
          %vm547 = vcmp.gt.s32.totalorder %v542, %v546
          %v548 = vsub.f32 %v545, %v544
          %v549 = vsel %vm547, %v548, %v545
          %v550 = vstv %s191
          %v551 = vlaneseq
          %v552 = vand.u32 %v551, 127
          %vm553 = vcmp.eq.s32.totalorder %v552, %v550
          %v554 = vstv %s191
          %vm555 = vcmp.ge.s32.totalorder %v538, %v554
          %vm556 = vmand %vm553, %vm555
          %v557 = vsel %vm556, %v543, %v549
          %558 = vst [vmem:[%s534] sm:$0xff] %v557
          %v559 = vadd.s32 %v538, 8
          %v560 = vlaneseq
          %v561 = vand.u32 %v560, 127
          %s562 = scalar_lea.vmem %s535, 8
          %v563 = vld [vmem:[%s562] sm:$0xff]
          %v564 = vmul.f32 %v563, %v539
          %s565 = scalar_lea.vmem %s534, 8
          %v566 = vld [vmem:[%s565] sm:$0xff]
          %v567 = vstv %s191
          %vm568 = vcmp.gt.s32.totalorder %v561, %v567
          %v569 = vsub.f32 %v566, %v564
          %v570 = vsel %vm568, %v569, %v566
          %v571 = vstv %s191
          %v572 = vlaneseq
          %v573 = vand.u32 %v572, 127
          %vm574 = vcmp.eq.s32.totalorder %v573, %v571
          %v575 = vstv %s191
          %vm576 = vcmp.ge.s32.totalorder %v559, %v575
          %vm577 = vmand %vm574, %vm576
          %v578 = vsel %vm577, %v563, %v570
          %579 = vst [vmem:[%s565] sm:$0xff] %v578
          %v580 = vadd.s32 %v538, 16
          %v581 = vlaneseq
          %v582 = vand.u32 %v581, 127
          %s583 = scalar_lea.vmem %s535, 16
          %v584 = vld [vmem:[%s583] sm:$0xff]
          %v585 = vmul.f32 %v584, %v539
          %s586 = scalar_lea.vmem %s534, 16
          %v587 = vld [vmem:[%s586] sm:$0xff]
          %v588 = vstv %s191
          %vm589 = vcmp.gt.s32.totalorder %v582, %v588
          %v590 = vsub.f32 %v587, %v585
          %v591 = vsel %vm589, %v590, %v587
          %v592 = vstv %s191
          %v593 = vlaneseq
          %v594 = vand.u32 %v593, 127
          %vm595 = vcmp.eq.s32.totalorder %v594, %v592
          %v596 = vstv %s191
          %vm597 = vcmp.ge.s32.totalorder %v580, %v596
          %vm598 = vmand %vm595, %vm597
          %v599 = vsel %vm598, %v584, %v591
          %600 = vst [vmem:[%s586] sm:$0xff] %v599
          %v601 = vadd.s32 %v538, 24
          %v602 = vlaneseq
          %v603 = vand.u32 %v602, 127
          %s604 = scalar_lea.vmem %s535, 24
          %v605 = vld [vmem:[%s604] sm:$0xff]
          %v606 = vmul.f32 %v605, %v539
          %s607 = scalar_lea.vmem %s534, 24
          %v608 = vld [vmem:[%s607] sm:$0xff]
          %v609 = vstv %s191
          %vm610 = vcmp.gt.s32.totalorder %v603, %v609
          %v611 = vsub.f32 %v608, %v606
          %v612 = vsel %vm610, %v611, %v608
          %v613 = vstv %s191
          %v614 = vlaneseq
          %v615 = vand.u32 %v614, 127
          %vm616 = vcmp.eq.s32.totalorder %v615, %v613
          %v617 = vstv %s191
          %vm618 = vcmp.ge.s32.totalorder %v601, %v617
          %vm619 = vmand %vm616, %vm618
          %v620 = vsel %vm619, %v605, %v612
          %621 = vst [vmem:[%s607] sm:$0xff] %v620
          %s622 = scalar_lea.vmem %s534, %s191
          %v623 = vld [vmem:[%s622] ss:$0 sm:$0xff]
          %v624 = vstv %s191
          %v625 = vlaneseq
          %v626 = vand.u32 %v625, 127
          %vm627 = vcmp.eq.s32.totalorder %v626, %v624
          %v628 = vsel %vm627, %v349, %v623
          %629 = vst [vmem:[%s622] sm:$0x1] %v628
        $region59: #{custom-call.22} parent=53 // loop_footer
          %s195 = sadd.s32 1, %s191
        $region60: #{custom-call.22} parent=53 // loop_footer_branch
          %190 = sbr.rel target = $region56
        $region61: #{custom-call.22} parent=53 // loop_exit
          _
        %s631 = ssub.s32 4, 1
        %v632 = vld [vmem:[#allocation2] sm:%s631]
        %s634 = ssub.s32 4, 1
        %635 = vst [vmem:[%s164] sm:%s634] %v632
        %s636 = sand.u32 %s13, 1
        %s637 = sand.u32 %s13, 1
        %s638 = smul.addr %s637, 32
        %s639 = scalar_lea.vmem [#allocation1], %s638
        %s640 = sand.u32 %s52, 1
        %s641 = scalar_lea.sflag [#allocation4], %s640
        %s642 = sand.u32 %s52, 1
        %s643 = smul.addr %s642, 2
        %s644 = scalar_lea.vmem [#allocation3], %s643
        %s645 = smul.u32 4, %s19
        %s646 = sadd.s32 %s20, %s645
        %s647 = smul.addr %s18, 4
        %s648 = sadd.s32 %s646, %s647
        %s649 = smul.addr %s648, 8
        %s650 = scalar_lea.vmem %s1, %s649
        // Predicated region
        $region62: #{custom-call.22} parent=53 // pred_check
          _
        $region63: #{custom-call.22} parent=53 // pred_check_branch
          %652 = sbr.rel (0) target = $region65
        $region64: #{custom-call.22} parent=53 // pred_region
          // Predicated region
          $region66: #{custom-call.22} parent=64 // pred_check
            _
          $region67: #{custom-call.22} parent=64 // pred_check_branch
            %654 = sbr.rel (0) target = $region69
          $region68: #{custom-call.22} parent=64 // pred_region
            // Predicated region
            $region81: #{custom-call.22} parent=68 // pred_check
              _
            $region82: #{custom-call.22} parent=68 // pred_check_branch
              %676 = sbr.rel (0) target = $region84
            $region83: #{custom-call.22} parent=68 // pred_region
              loop: start=0, step=1, limit=1
              $region85: #{custom-call.22} parent=83 // loop_pre_header
                _
              $region86: #{custom-call.22} parent=83 // loop_header
                %s678 = sphi 0, %s682
                %p679 = scmp.ge.s32.totalorder %s678, 1
                %s683 = sphi %s639, %s639
                %s684 = sphi %s650, %s650
              $region87: #{custom-call.22} parent=83 // loop_header_branch
                %681 = sbr.rel (%p679) target = $region91
              $region88: #{custom-call.22} parent=83 // loop_body
                %v685 = vld [vmem:[%s683] sm:$0xff]
                %686 = vst [vmem:[%s684] sm:$0xff] %v685
                %v687 = vld [vmem:[%s683 + $0x8] sm:$0xff]
                %688 = vst [vmem:[%s684 + $0x8] sm:$0xff] %v687
                %v689 = vld [vmem:[%s683 + $0x10] sm:$0xff]
                %690 = vst [vmem:[%s684 + $0x10] sm:$0xff] %v689
                %v691 = vld [vmem:[%s683 + $0x18] sm:$0xff]
                %692 = vst [vmem:[%s684 + $0x18] sm:$0xff] %v691
              $region89: #{custom-call.22} parent=83 // loop_footer
                %s682 = sadd.s32 1, %s678
              $region90: #{custom-call.22} parent=83 // loop_footer_branch
                %677 = sbr.rel target = $region86
              $region91: #{custom-call.22} parent=83 // loop_exit
                _
            $region84: #{custom-call.22} parent=68 // pred_fallthru
              _
            // Predicated region
            $region92: #{custom-call.22} parent=68 // pred_check
              _
            $region93: #{custom-call.22} parent=68 // pred_check_branch
              %694 = sbr.rel target = $region95
            $region94: #{custom-call.22} parent=68 // pred_region
              _
            $region95: #{custom-call.22} parent=68 // pred_fallthru
              _
          $region69: #{custom-call.22} parent=64 // pred_fallthru
            _
          // Predicated region
          $region70: #{custom-call.22} parent=64 // pred_check
            _
          $region71: #{custom-call.22} parent=64 // pred_check_branch
            %656 = sbr.rel target = $region73
          $region72: #{custom-call.22} parent=64 // pred_region
            %s658 = ssub.s32 256, 1
            loop: start=0, step=1, limit=1
            $region74: #{custom-call.22} parent=72 // loop_pre_header
              _
            $region75: #{custom-call.22} parent=72 // loop_header
              %s660 = sphi 0, %s664
              %p661 = scmp.ge.s32.totalorder %s660, 1
              %s665 = sphi %s639, %s639
              %s666 = sphi %s650, %s650
            $region76: #{custom-call.22} parent=72 // loop_header_branch
              %663 = sbr.rel (%p661) target = $region80
            $region77: #{custom-call.22} parent=72 // loop_body
              %v667 = vld [vmem:[%s665] sm:%s658]
              %668 = vst [vmem:[%s666] sm:%s658] %v667
              %v669 = vld [vmem:[%s665 + $0x8] sm:%s658]
              %670 = vst [vmem:[%s666 + $0x8] sm:%s658] %v669
              %v671 = vld [vmem:[%s665 + $0x10] sm:%s658]
              %672 = vst [vmem:[%s666 + $0x10] sm:%s658] %v671
              %v673 = vld [vmem:[%s665 + $0x18] sm:%s658]
              %674 = vst [vmem:[%s666 + $0x18] sm:%s658] %v673
            $region78: #{custom-call.22} parent=72 // loop_footer
              %s664 = sadd.s32 1, %s660
            $region79: #{custom-call.22} parent=72 // loop_footer_branch
              %659 = sbr.rel target = $region75
            $region80: #{custom-call.22} parent=72 // loop_exit
              _
          $region73: #{custom-call.22} parent=64 // pred_fallthru
            _
        $region65: #{custom-call.22} parent=53 // pred_fallthru
          _
        %695 = vnop
        // Predicated region
        $region96: #{custom-call.22} parent=53 // pred_check
          %p696 = pneg %p62
        $region97: #{custom-call.22} parent=53 // pred_check_branch
          %698 = sbr.rel (%p696) target = $region99
        $region98: #{custom-call.22} parent=53 // pred_region
          %p699 = scmp.lt.s32.totalorder %s18, 0
          %s700 = ssub.s32 0, %s18
          %s701 = scalar_select %p699, %s700, %s18
          %s702 = sshrl.u32 %s701, 3
          %s703 = ssub.s32 0, %s702
          %s704 = scalar_select %p699, %s703, %s702
          %706 = vsyncadd %s641, 0
          %s707 = smul.addr %s704, 2
          %s708 = scalar_lea.hbm %s2, %s707
          %s710 = sshll.u32 %s644, 4
          %s711 = int_to_ptr.vmem [resolvable:$true] %s710
          %s712 = sshll.u32 %s708, 4
          %s713 = int_to_ptr.hbm [resolvable:$true] %s712
          %715 = dma.vmem_to_hbm [thread:$0]  %s711, 32, %s713, %s641
        $region99: #{custom-call.22} parent=53 // pred_fallthru
          _
      $region54: #{custom-call.22} parent=5 // pred_fallthru
        _
      %p716 = scmp.le.s32.totalorder 2, %s8
      // Predicated region
      $region100: #{custom-call.22} parent=5 // pred_check
        %p717 = pneg %p716
      $region101: #{custom-call.22} parent=5 // pred_check_branch
        %719 = sbr.rel (%p717) target = $region103
      $region102: #{custom-call.22} parent=5 // pred_region
        %s720 = ssub.s32 %s8, 2
        %s721 = sand.u32 %s14, 1
        %s722 = sand.u32 %s14, 1
        %s723 = smul.addr %s722, 32
        %s724 = scalar_lea.vmem [#allocation1], %s723
        // Predicated region
        $region104: #{custom-call.22} parent=102 // pred_check
          %p725 = pneg %p68
        $region105: #{custom-call.22} parent=102 // pred_check_branch
          %727 = sbr.rel (%p725) target = $region107
        $region106: #{custom-call.22} parent=102 // pred_region
          %s728 = sand.u32 %s53, 1
          %s729 = scalar_lea.sflag [#allocation4], %s728
          %s730 = sand.u32 %s53, 1
          %s731 = smul.addr %s730, 2
          %s732 = scalar_lea.vmem [#allocation3], %s731
          %734 = dma.done %s729, 32
        $region107: #{custom-call.22} parent=102 // pred_fallthru
          _
      $region103: #{custom-call.22} parent=5 // pred_fallthru
        _
    $region6: #{custom-call.22} parent=1 // loop_footer
      %s12 = sadd.s32 1, %s8
    $region7: #{custom-call.22} parent=1 // loop_footer_branch
      %7 = sbr.rel target = $region3
    $region8: #{custom-call.22} parent=1 // loop_exit
      _
    %735 = vsyncpa [#allocation4], 1
    %s736 = scalar_lea.sflag [#allocation4], 1
    %737 = vsyncpa %s736, 1

// kernel: custom-call.55
$region0: #{custom-call.55}
  %s0 = inlined_call_operand.vmem [shape: f32[2,16,8], index: 0, kind: input, shape index: {}]
  %s1 = inlined_call_operand.vmem [shape: f32[2,16,8], index: 1, kind: output, shape index: {0}]
  %s2 = inlined_call_operand.vmem [shape: f32[2,8], index: 2, kind: output, shape index: {1}]
  %3 = xla_tuple %s1, %s2
  $region1: #{custom-call.55} parent=0
    #allocation0 [shape = 'u8[16384]{0}', space=vmem, size = 0x4000, scoped, tag = 'operand span for operand 0']
    #allocation1 [shape = 'u8[16384]{0}', space=vmem, size = 0x4000, scoped, tag = 'operand span for operand 1']
    #allocation2 [shape = 'u8[4096]{0}', space=vmem, size = 0x1000, scoped, tag = 'operand span for operand 2']
    #allocation3 [shape = 'u8[2048]{0}', space=vmem, size = 0x800, scoped, tag = 'packed  for operand 2']
    loop: start=0, step=1, limit=4
    $region2: #{custom-call.55} parent=1 // loop_pre_header
      _
    $region3: #{custom-call.55} parent=1 // loop_header
      %s5 = sphi 0, %s9
      %p6 = scmp.ge.s32.totalorder %s5, 4
      %s12 = sphi 0, %s31
      %s13 = sphi 0, %s27
      %s14 = sphi 0, %s23
      %s15 = sphi 0, %s12
      %s16 = sphi 0, %s13
      %s17 = sphi 0, %s14
      %s18 = sphi 0, %s15
      %s19 = sphi 0, %s16
      %s20 = sphi 0, %s17
      %s46 = sphi 0, %s48
      %s49 = sphi 0, %s46
      %s50 = sphi 0, %s49
      %s66 = sphi 0, %s50
    $region4: #{custom-call.55} parent=1 // loop_header_branch
      %8 = sbr.rel (%p6) target = $region8
    $region5: #{custom-call.55} parent=1 // loop_body
      %s10 = ssub.s32 %s5, 1
      %s11 = ssub.s32 %s5, 2
      %s21 = sadd.s32 1, %s14
      %p22 = scmp.ge.s32.totalorder %s21, 1
      %s23 = scalar_select %p22, 0, %s21
      %s24 = sadd.s32 1, %s13
      %s25 = scalar_select %p22, %s24, %s13
      %p26 = scmp.ge.s32.totalorder %s25, 1
      %s27 = scalar_select %p26, 0, %s25
      %s28 = sadd.s32 1, %s12
      %s29 = scalar_select %p26, %s28, %s12
      %p30 = scmp.ge.s32.totalorder %s29, 2
      %s31 = scalar_select %p30, 0, %s29
      %p32 = scmp.lt.s32.totalorder %s12, 0
      %s33 = ssub.s32 0, %s12
      %s34 = scalar_select %p32, %s33, %s12
      %s35 = sshrl.u32 %s34, 3
      %s36 = ssub.s32 0, %s35
      %s37 = scalar_select %p32, %s36, %s35
      %p38 = scmp.lt.s32.totalorder %s31, 0
      %s39 = ssub.s32 0, %s31
      %s40 = scalar_select %p38, %s39, %s31
      %s41 = sshrl.u32 %s40, 3
      %s42 = ssub.s32 0, %s41
      %s43 = scalar_select %p38, %s42, %s41
      %s44 = ssub.s32 %s37, %s43
      %p45 = scmp.eq.s32.totalorder %s44, 0
      %s47 = sadd.s32 %s46, 1
      %s48 = scalar_select %p45, %s46, %s47
      %p51 = pneg %p45
      %p52 = scmp.eq.s32.totalorder %s5, 1
      %p53 = por %p51, %p52
      %p54 = scmp.ne.s32.totalorder %s46, %s49
      %p55 = scmp.eq.s32.totalorder %s5, 0
      %p56 = por %p54, %p55
      %p57 = scmp.ne.s32.totalorder %s46, %s49
      %p58 = scmp.eq.s32.totalorder %s10, 1
      %p59 = por %p57, %p58
      %p60 = scmp.ne.s32.totalorder %s49, %s50
      %p61 = scmp.eq.s32.totalorder %s10, 0
      %p62 = por %p60, %p61
      %p63 = scmp.ne.s32.totalorder %s49, %s50
      %p64 = scmp.eq.s32.totalorder %s11, 1
      %p65 = por %p63, %p64
      %p67 = scmp.ne.s32.totalorder %s50, %s66
      %p68 = scmp.eq.s32.totalorder %s11, 0
      %p69 = por %p67, %p68
      %p70 = scmp.le.s32.totalorder 1, %s5
      %p71 = scmp.lt.s32.totalorder %s5, 3
      %p72 = pnand %p70, %p71
      %p73 = pneg %p72
      // Predicated region
      $region9: #{custom-call.55} parent=5 // pred_check
        _
      $region10: #{custom-call.55} parent=5 // pred_check_branch
        %75 = sbr.rel (%p72) target = $region12
      $region11: #{custom-call.55} parent=5 // pred_region
        %s76 = ssub.s32 %s5, 1
      $region12: #{custom-call.55} parent=5 // pred_fallthru
        _
      %p77 = scmp.lt.s32.totalorder %s5, 2
      // Predicated region
      $region13: #{custom-call.55} parent=5 // pred_check
        %p78 = pneg %p77
      $region14: #{custom-call.55} parent=5 // pred_check_branch
        %80 = sbr.rel (%p78) target = $region16
      $region15: #{custom-call.55} parent=5 // pred_region
        %s81 = sand.u32 %s5, 1
        %s82 = sand.u32 %s5, 1
        %s83 = smul.addr %s82, 16
        %s84 = scalar_lea.vmem [#allocation0], %s83
        %s85 = smul.u32 2, %s13
        %s86 = sadd.s32 %s14, %s85
        %s87 = smul.addr %s12, 2
        %s88 = sadd.s32 %s86, %s87
        %s89 = smul.addr %s88, 8
        %s90 = scalar_lea.vmem %s0, %s89
        // Predicated region
        $region17: #{custom-call.55} parent=15 // pred_check
          _
        $region18: #{custom-call.55} parent=15 // pred_check_branch
          %92 = sbr.rel (0) target = $region20
        $region19: #{custom-call.55} parent=15 // pred_region
          // Predicated region
          $region21: #{custom-call.55} parent=19 // pred_check
            _
          $region22: #{custom-call.55} parent=19 // pred_check_branch
            %94 = sbr.rel (0) target = $region24
          $region23: #{custom-call.55} parent=19 // pred_region
            // Predicated region
            $region36: #{custom-call.55} parent=23 // pred_check
              _
            $region37: #{custom-call.55} parent=23 // pred_check_branch
              %112 = sbr.rel (0) target = $region39
            $region38: #{custom-call.55} parent=23 // pred_region
              loop: start=0, step=1, limit=1
              $region40: #{custom-call.55} parent=38 // loop_pre_header
                _
              $region41: #{custom-call.55} parent=38 // loop_header
                %s114 = sphi 0, %s118
                %p115 = scmp.ge.s32.totalorder %s114, 1
                %s119 = sphi %s90, %s90
                %s120 = sphi %s84, %s84
              $region42: #{custom-call.55} parent=38 // loop_header_branch
                %117 = sbr.rel (%p115) target = $region46
              $region43: #{custom-call.55} parent=38 // loop_body
                %v121 = vld [vmem:[%s119] sm:$0xff]
                %122 = vst [vmem:[%s120] sm:$0xff] %v121
                %v123 = vld [vmem:[%s119 + $0x8] sm:$0xff]
                %124 = vst [vmem:[%s120 + $0x8] sm:$0xff] %v123
              $region44: #{custom-call.55} parent=38 // loop_footer
                %s118 = sadd.s32 1, %s114
              $region45: #{custom-call.55} parent=38 // loop_footer_branch
                %113 = sbr.rel target = $region41
              $region46: #{custom-call.55} parent=38 // loop_exit
                _
            $region39: #{custom-call.55} parent=23 // pred_fallthru
              _
            // Predicated region
            $region47: #{custom-call.55} parent=23 // pred_check
              _
            $region48: #{custom-call.55} parent=23 // pred_check_branch
              %126 = sbr.rel target = $region50
            $region49: #{custom-call.55} parent=23 // pred_region
              _
            $region50: #{custom-call.55} parent=23 // pred_fallthru
              _
          $region24: #{custom-call.55} parent=19 // pred_fallthru
            _
          // Predicated region
          $region25: #{custom-call.55} parent=19 // pred_check
            _
          $region26: #{custom-call.55} parent=19 // pred_check_branch
            %96 = sbr.rel target = $region28
          $region27: #{custom-call.55} parent=19 // pred_region
            %s98 = ssub.s32 256, 1
            loop: start=0, step=1, limit=1
            $region29: #{custom-call.55} parent=27 // loop_pre_header
              _
            $region30: #{custom-call.55} parent=27 // loop_header
              %s100 = sphi 0, %s104
              %p101 = scmp.ge.s32.totalorder %s100, 1
              %s105 = sphi %s90, %s90
              %s106 = sphi %s84, %s84
            $region31: #{custom-call.55} parent=27 // loop_header_branch
              %103 = sbr.rel (%p101) target = $region35
            $region32: #{custom-call.55} parent=27 // loop_body
              %v107 = vld [vmem:[%s105] sm:%s98]
              %108 = vst [vmem:[%s106] sm:%s98] %v107
              %v109 = vld [vmem:[%s105 + $0x8] sm:%s98]
              %110 = vst [vmem:[%s106 + $0x8] sm:%s98] %v109
            $region33: #{custom-call.55} parent=27 // loop_footer
              %s104 = sadd.s32 1, %s100
            $region34: #{custom-call.55} parent=27 // loop_footer_branch
              %99 = sbr.rel target = $region30
            $region35: #{custom-call.55} parent=27 // loop_exit
              _
          $region28: #{custom-call.55} parent=19 // pred_fallthru
            _
        $region20: #{custom-call.55} parent=15 // pred_fallthru
          _
        %127 = vnop
      $region16: #{custom-call.55} parent=5 // pred_fallthru
        _
      %p128 = scmp.le.s32.totalorder 1, %s5
      %p129 = scmp.lt.s32.totalorder %s5, 3
      %p130 = pnand %p128, %p129
      %p131 = pneg %p130
      // Predicated region
      $region51: #{custom-call.55} parent=5 // pred_check
        _
      $region52: #{custom-call.55} parent=5 // pred_check_branch
        %133 = sbr.rel (%p130) target = $region54
      $region53: #{custom-call.55} parent=5 // pred_region
        #allocation4 [shape = 'f32[16,128]{1,0}', space=vmem, size = 0x2000, scoped, tag = 'scratch for Householder reflectors']
        %s134 = ssub.s32 %s5, 1
        %s135 = sand.u32 %s10, 1
        %s136 = sand.u32 %s10, 1
        %s137 = smul.addr %s136, 16
        %s138 = scalar_lea.vmem [#allocation0], %s137
        %s139 = sand.u32 %s10, 1
        %s140 = sand.u32 %s10, 1
        %s141 = smul.addr %s140, 16
        %s142 = scalar_lea.vmem [#allocation0], %s141
        %s143 = sand.u32 %s10, 1
        %s144 = sand.u32 %s10, 1
        %s145 = smul.addr %s144, 16
        %s146 = scalar_lea.vmem [#allocation1], %s145
        %p147 = pneg %p62
        %p148 = pneg %p59
        %s149 = sand.u32 %s49, 1
        %s150 = sand.u32 %s49, 1
        %s151 = smul.addr %s150, 2
        %s152 = scalar_lea.vmem [#allocation3], %s151
        %s153 = smul.u32 2, %s16
        %s154 = smul.u32 2, %s16
        %p155 = scmp.lt.s32.totalorder %s15, 0
        %s156 = ssub.s32 0, %s15
        %s157 = scalar_select %p155, %s156, %s15
        %s158 = sshrl.u32 %s157, 3
        %s159 = ssub.s32 0, %s158
        %s160 = scalar_select %p155, %s159, %s158
        %s161 = sand.u32 %s15, 7
        %s162 = scalar_lea.vmem [#allocation2], %s161
        %v163 = vld [vmem:[%s138] sm:$0xff]
        %164 = vst [vmem:[%s146] sm:$0xff] %v163
        %s165 = scalar_lea.vmem %s146, 8 [#allocation1]
        %s166 = scalar_lea.vmem %s138, 8 [#allocation0]
        %v167 = vld [vmem:[%s166] sm:$0xff]
        %168 = vst [vmem:[%s165] sm:$0xff] %v167
        %169 = vst [vmem:[%s162] sm:$0x1] 0.0
        loop: start=0, step=1, limit=8
        $region55: #{custom-call.55} parent=53 // loop_pre_header
          _
        $region56: #{custom-call.55} parent=53 // loop_header
          %s171 = sphi 0, %s175
          %p172 = scmp.ge.s32.totalorder %s171, 8
        $region57: #{custom-call.55} parent=53 // loop_header_branch
          %174 = sbr.rel (%p172) target = $region61
        $region58: #{custom-call.55} parent=53 // loop_body
          %v176 = vld [vmem:[%s146] sm:$0xff]
          %v177 = vlaneseq
          %v178 = vshrl.u32 %v177, 7
          %v180 = vstv %s171
          %vm181 = vcmp.gt.s32.totalorder %v178, %v180
          %v182 = vsel %vm181, %v176, 0.0
          %v183 = vmul.f32 %v182, %v182
          %s184 = scalar_lea.vmem %s146, 8 [#allocation1]
          %v185 = vld [vmem:[%s184] sm:$0xff]
          %v186 = vlaneseq
          %v187 = vshrl.u32 %v186, 7
          %v188 = vadd.s32 %v187, 8
          %v189 = vstv %s171
          %vm190 = vcmp.gt.s32.totalorder %v188, %v189
          %vm191 = vcmp.lt.s32.totalorder %v188, 16
          %vm192 = vmand %vm190, %vm191
          %v193 = vsel %vm192, %v185, 0.0
          %v194 = vmul.f32 %v193, %v193
          %v195 = vadd.f32 %v183, %v194
          %v196 = vrot.slane %v195, 4
          %v197 = vadd.f32 %v195, %v196
          %v198 = vrot.slane %v197, 2
          %v199 = vadd.f32 %v197, %v198
          %v200 = vrot.slane %v199, 1
          %v201 = vadd.f32 %v199, %v200
          %v202 = vrsqrt.pop %v201
          %v203 = vmul.f32 %v202, %v201
          %v204 = vmul.f32 %v203, %v202
          %v205 = vmul.f32 0.5, %v204
          %v206 = vsub.f32 1.5, %v205
          %v207 = vmul.f32 %v202, %v206
          %v208 = vmul.f32 %v201, %v207
          %vm209 = vcmp.eq.f32.partialorder %v201, inf
          %v210 = vsel %vm209, %v201, %v208
          %vm211 = vcmp.eq.f32.partialorder %v201, 0.0
          %v212 = vand.u32 %v201, 2147483648
          %v213 = vsel %vm211, %v212, %v210
          %vm214 = vcmp.eq.f32.partialorder %v201, 0.0
          %s215 = sshrl.u32 %s171, 3
          %s216 = sand.u32 %s171, 7
          %s217 = smul.addr %s215, 8
          %s218 = sadd.s32 %s216, %s217
          %s219 = scalar_lea.vmem %s146, %s218 [#allocation1]
          %v220 = vld [vmem:[%s219] ss:$0 sm:$0xff]
          %v221 = vand.u32 2147483647, %v220
          %v222 = vmax.f32 %v221, 0.0
          %v223 = vand.u32 2147483647, %v213
          %v224 = vmax.f32 %v222, %v223
          %v225 = vrcp.pop %v224
          %v226 = vmul.f32 %v224, %v225
          %v227 = vsub.f32 1.0, %v226
          %v228 = vmul.f32 %v225, %v227
          %v229 = vadd.f32 %v225, %v228
          %vm230 = vweird.f32 %v224
          %vm231 = vweird.f32 %v225
          %vm232 = vmor %vm230, %vm231
          %v233 = vsel %vm232, %v225, %v229
          %v234 = vand.u32 2147483647, %v224
          %vm235 = vcmp.eq.f32.partialorder %v234, 8.507059e+37
          %v236 = vand.u32 %v224, 2147483648
          %v237 = vor.u32 1.1754944e-38, %v236
          %v238 = vsel %vm235, %v237, %v233
          %v239 = vmul.f32 %v221, %v238
          %v240 = vmul.f32 %v239, %v239
          %v241 = vrcp.pop %v224
          %v242 = vmul.f32 %v224, %v241
          %v243 = vsub.f32 1.0, %v242
          %v244 = vmul.f32 %v241, %v243
          %v245 = vadd.f32 %v241, %v244
          %vm246 = vweird.f32 %v224
          %vm247 = vweird.f32 %v241
          %vm248 = vmor %vm246, %vm247
          %v249 = vsel %vm248, %v241, %v245
          %v250 = vand.u32 2147483647, %v224
          %vm251 = vcmp.eq.f32.partialorder %v250, 8.507059e+37
          %v252 = vand.u32 %v224, 2147483648
          %v253 = vor.u32 1.1754944e-38, %v252
          %v254 = vsel %vm251, %v253, %v249
          %v255 = vmul.f32 0.0, %v254
          %v256 = vmul.f32 %v255, %v255
          %v257 = vadd.f32 %v240, %v256
          %v258 = vrcp.pop %v224
          %v259 = vmul.f32 %v224, %v258
          %v260 = vsub.f32 1.0, %v259
          %v261 = vmul.f32 %v258, %v260
          %v262 = vadd.f32 %v258, %v261
          %vm263 = vweird.f32 %v224
          %vm264 = vweird.f32 %v258
          %vm265 = vmor %vm263, %vm264
          %v266 = vsel %vm265, %v258, %v262
          %v267 = vand.u32 2147483647, %v224
          %vm268 = vcmp.eq.f32.partialorder %v267, 8.507059e+37
          %v269 = vand.u32 %v224, 2147483648
          %v270 = vor.u32 1.1754944e-38, %v269
          %v271 = vsel %vm268, %v270, %v266
          %v272 = vmul.f32 %v223, %v271
          %v273 = vmul.f32 %v272, %v272
          %v274 = vadd.f32 %v257, %v273
          %vm275 = vcmp.eq.f32.partialorder %v224, 0.0
          %v276 = vrsqrt.pop %v274
          %v277 = vmul.f32 %v276, %v274
          %v278 = vmul.f32 %v277, %v276
          %v279 = vmul.f32 0.5, %v278
          %v280 = vsub.f32 1.5, %v279
          %v281 = vmul.f32 %v276, %v280
          %v282 = vmul.f32 %v274, %v281
          %vm283 = vcmp.eq.f32.partialorder %v274, inf
          %v284 = vsel %vm283, %v274, %v282
          %vm285 = vcmp.eq.f32.partialorder %v274, 0.0
          %v286 = vand.u32 %v274, 2147483648
          %v287 = vsel %vm285, %v286, %v284
          %v288 = vmul.f32 %v224, %v287
          %v289 = vsel %vm275, 0.0, %v288
          %vm290 = vcmp.lt.f32.partialorder %v220, 0.0
          %v291 = vxor.u32 %v289, 2147483648
          %v292 = vsel %vm290, %v289, %v291
          %v293 = vsub.f32 %v292, %v220
          %v294 = vrcp.pop %v292
          %v295 = vmul.f32 %v292, %v294
          %v296 = vsub.f32 1.0, %v295
          %v297 = vmul.f32 %v294, %v296
          %v298 = vadd.f32 %v294, %v297
          %vm299 = vweird.f32 %v292
          %vm300 = vweird.f32 %v294
          %vm301 = vmor %vm299, %vm300
          %v302 = vsel %vm301, %v294, %v298
          %v303 = vand.u32 2147483647, %v292
          %vm304 = vcmp.eq.f32.partialorder %v303, 8.507059e+37
          %v305 = vand.u32 %v292, 2147483648
          %v306 = vor.u32 1.1754944e-38, %v305
          %v307 = vsel %vm304, %v306, %v302
          %v308 = vmul.f32 %v293, %v307
          %v309 = vsel %vm214, %v220, %v292
          %v310 = vsel %vm214, 0.0, %v308
          %v311 = vsub.f32 %v220, %v309
          %s312 = smov %s146
          %v313 = vlaneseq
          %v314 = vshrl.u32 %v313, 7
          %v315 = vmov %v314
          %v316 = vld [vmem:[%s312] sm:$0xff]
          %v318 = vstv %s171
          %vm319 = vcmp.gt.s32.totalorder %v315, %v318
          %v320 = vsel %vm319, %v316, 0.0
          %v321 = vrcp.pop %v311
          %v322 = vmul.f32 %v311, %v321
          %v323 = vsub.f32 1.0, %v322
          %v324 = vmul.f32 %v321, %v323
          %v325 = vadd.f32 %v321, %v324
          %vm326 = vweird.f32 %v311
          %vm327 = vweird.f32 %v321
          %vm328 = vmor %vm326, %vm327
          %v329 = vsel %vm328, %v321, %v325
          %v330 = vand.u32 2147483647, %v311
          %vm331 = vcmp.eq.f32.partialorder %v330, 8.507059e+37
          %v332 = vand.u32 %v311, 2147483648
          %v333 = vor.u32 1.1754944e-38, %v332
          %v334 = vsel %vm331, %v333, %v329
          %v335 = vmul.f32 %v320, %v334
          %v336 = vsel %vm214, 0.0, %v335
          %v337 = vstv %s171
          %v338 = vlaneseq
          %v339 = vand.u32 %v338, 127
          %vm340 = vcmp.eq.s32.totalorder %v339, %v337
          %v341 = vsel %vm340, %v336, 0.0
          %342 = vadd.xlane.f32.xlu0 %v341
          %v343 = vpop.xlane.xlu0 %342
          %344 = vst [vmem:[#allocation4] sm:$0xff] %v343
          %s345 = scalar_lea.vmem %s312, 8
          %v346 = vld [vmem:[%s345] sm:$0xff]
          %v347 = vadd.s32 %v315, 8
          %v348 = vstv %s171
          %vm349 = vcmp.gt.s32.totalorder %v347, %v348
          %vm350 = vcmp.lt.s32.totalorder %v347, 16
          %vm351 = vmand %vm349, %vm350
          %v352 = vsel %vm351, %v346, 0.0
          %v353 = vrcp.pop %v311
          %v354 = vmul.f32 %v311, %v353
          %v355 = vsub.f32 1.0, %v354
          %v356 = vmul.f32 %v353, %v355
          %v357 = vadd.f32 %v353, %v356
          %vm358 = vweird.f32 %v311
          %vm359 = vweird.f32 %v353
          %vm360 = vmor %vm358, %vm359
          %v361 = vsel %vm360, %v353, %v357
          %v362 = vand.u32 2147483647, %v311
          %vm363 = vcmp.eq.f32.partialorder %v362, 8.507059e+37
          %v364 = vand.u32 %v311, 2147483648
          %v365 = vor.u32 1.1754944e-38, %v364
          %v366 = vsel %vm363, %v365, %v361
          %v367 = vmul.f32 %v352, %v366
          %v368 = vsel %vm214, 0.0, %v367
          %v369 = vstv %s171
          %v370 = vlaneseq
          %v371 = vand.u32 %v370, 127
          %vm372 = vcmp.eq.s32.totalorder %v371, %v369
          %v373 = vsel %vm372, %v368, 0.0
          %374 = vadd.xlane.f32.xlu0 %v373
          %v375 = vpop.xlane.xlu0 %374
          %s376 = scalar_lea.vmem [#allocation4], 8
          %377 = vst [vmem:[%s376] sm:$0xff] %v375
          %s378 = scalar_lea.vmem [#allocation4], %s171
          %379 = vst [vmem:[%s378] sm:$0x1] 1.0
          %v380 = vstv %s171
          %v381 = vlaneseq
          %v382 = vand.u32 %v381, 127
          %vm383 = vcmp.eq.s32.totalorder %v382, %v380
          %v384 = vsel %vm383, %v310, 0.0
          %385 = vadd.xlane.f32.xlu0 %v384
          %v386 = vpop.xlane.xlu0 %385
          %v387 = vstv %s171
          %v388 = vlaneseq
          %v389 = vand.u32 %v388, 127
          %vm390 = vcmp.eq.s32.totalorder %v389, %v387
          %v391 = vld [vmem:[%s162] ss:$0 sm:$0xff]
          %v392 = vsel %vm390, %v386, %v391
          %393 = vst [vmem:[%s162] sm:$0x1] %v392
          %s394 = smov %s146
          %s395 = smov [#allocation4]
          %v396 = vlaneseq
          %v397 = vshrl.u32 %v396, 7
          %v398 = vmov %v397
          %v400 = vld [vmem:[%s395] sm:$0xff]
          %v401 = vld [vmem:[%s394] sm:$0xff]
          %v402 = vmul.f32 %v400, %v401
          %v403 = vadd.s32 %v398, 8
          %s404 = scalar_lea.vmem %s395, 8
          %v405 = vld [vmem:[%s404] sm:$0xff]
          %s406 = scalar_lea.vmem %s394, 8
          %v407 = vld [vmem:[%s406] sm:$0xff]
          %v408 = vmul.f32 %v405, %v407
          %vm409 = vcmp.lt.s32.totalorder %v403, 16
          %v410 = vsel %vm409, %v408, 0.0
          %v411 = vadd.f32 %v402, %v410
          %v412 = vrot.slane %v411, 4
          %v413 = vadd.f32 %v411, %v412
          %v414 = vrot.slane %v413, 2
          %v415 = vadd.f32 %v413, %v414
          %v416 = vrot.slane %v415, 1
          %v417 = vadd.f32 %v415, %v416
          %s418 = smov %s394
          %s419 = smov %s395
          %v420 = vlaneseq
          %v421 = vshrl.u32 %v420, 7
          %v422 = vmov %v421
          %v423 = vmul.f32 %v417, %v386
          %v425 = vlaneseq
          %v426 = vand.u32 %v425, 127
          %v427 = vld [vmem:[%s419] sm:$0xff]
          %v428 = vmul.f32 %v427, %v423
          %v429 = vld [vmem:[%s418] sm:$0xff]
          %v430 = vstv %s171
          %vm431 = vcmp.gt.s32.totalorder %v426, %v430
          %v432 = vsub.f32 %v429, %v428
          %v433 = vsel %vm431, %v432, %v429
          %v434 = vstv %s171
          %v435 = vlaneseq
          %v436 = vand.u32 %v435, 127
          %vm437 = vcmp.eq.s32.totalorder %v436, %v434
          %v438 = vstv %s171
          %vm439 = vcmp.ge.s32.totalorder %v422, %v438
          %vm440 = vmand %vm437, %vm439
          %v441 = vsel %vm440, %v427, %v433
          %442 = vst [vmem:[%s418] sm:$0xff] %v441
          %v443 = vadd.s32 %v422, 8
          %v444 = vlaneseq
          %v445 = vand.u32 %v444, 127
          %s446 = scalar_lea.vmem %s419, 8
          %v447 = vld [vmem:[%s446] sm:$0xff]
          %v448 = vmul.f32 %v447, %v423
          %s449 = scalar_lea.vmem %s418, 8
          %v450 = vld [vmem:[%s449] sm:$0xff]
          %v451 = vstv %s171
          %vm452 = vcmp.gt.s32.totalorder %v445, %v451
          %v453 = vsub.f32 %v450, %v448
          %v454 = vsel %vm452, %v453, %v450
          %v455 = vstv %s171
          %v456 = vlaneseq
          %v457 = vand.u32 %v456, 127
          %vm458 = vcmp.eq.s32.totalorder %v457, %v455
          %v459 = vstv %s171
          %vm460 = vcmp.ge.s32.totalorder %v443, %v459
          %vm461 = vmand %vm458, %vm460
          %v462 = vsel %vm461, %v447, %v454
          %463 = vst [vmem:[%s449] sm:$0xff] %v462
          %s464 = scalar_lea.vmem %s418, %s171
          %v465 = vld [vmem:[%s464] ss:$0 sm:$0xff]
          %v466 = vstv %s171
          %v467 = vlaneseq
          %v468 = vand.u32 %v467, 127
          %vm469 = vcmp.eq.s32.totalorder %v468, %v466
          %v470 = vsel %vm469, %v309, %v465
          %471 = vst [vmem:[%s464] sm:$0x1] %v470
        $region59: #{custom-call.55} parent=53 // loop_footer
          %s175 = sadd.s32 1, %s171
        $region60: #{custom-call.55} parent=53 // loop_footer_branch
          %170 = sbr.rel target = $region56
        $region61: #{custom-call.55} parent=53 // loop_exit
          _
        %s473 = ssub.s32 4, 1
        %v474 = vld [vmem:[#allocation2] sm:%s473]
        %s476 = ssub.s32 4, 1
        %477 = vst [vmem:[%s152] sm:%s476] %v474
        %s478 = sand.u32 %s10, 1
        %s479 = sand.u32 %s10, 1
        %s480 = smul.addr %s479, 16
        %s481 = scalar_lea.vmem [#allocation1], %s480
        %s482 = sand.u32 %s49, 1
        %s483 = sand.u32 %s49, 1
        %s484 = smul.addr %s483, 2
        %s485 = scalar_lea.vmem [#allocation3], %s484
        %s486 = smul.u32 2, %s16
        %s487 = sadd.s32 %s17, %s486
        %s488 = smul.addr %s15, 2
        %s489 = sadd.s32 %s487, %s488
        %s490 = smul.addr %s489, 8
        %s491 = scalar_lea.vmem %s1, %s490
        // Predicated region
        $region62: #{custom-call.55} parent=53 // pred_check
          _
        $region63: #{custom-call.55} parent=53 // pred_check_branch
          %493 = sbr.rel (0) target = $region65
        $region64: #{custom-call.55} parent=53 // pred_region
          // Predicated region
          $region66: #{custom-call.55} parent=64 // pred_check
            _
          $region67: #{custom-call.55} parent=64 // pred_check_branch
            %495 = sbr.rel (0) target = $region69
          $region68: #{custom-call.55} parent=64 // pred_region
            // Predicated region
            $region81: #{custom-call.55} parent=68 // pred_check
              _
            $region82: #{custom-call.55} parent=68 // pred_check_branch
              %513 = sbr.rel (0) target = $region84
            $region83: #{custom-call.55} parent=68 // pred_region
              loop: start=0, step=1, limit=1
              $region85: #{custom-call.55} parent=83 // loop_pre_header
                _
              $region86: #{custom-call.55} parent=83 // loop_header
                %s515 = sphi 0, %s519
                %p516 = scmp.ge.s32.totalorder %s515, 1
                %s520 = sphi %s481, %s481
                %s521 = sphi %s491, %s491
              $region87: #{custom-call.55} parent=83 // loop_header_branch
                %518 = sbr.rel (%p516) target = $region91
              $region88: #{custom-call.55} parent=83 // loop_body
                %v522 = vld [vmem:[%s520] sm:$0xff]
                %523 = vst [vmem:[%s521] sm:$0xff] %v522
                %v524 = vld [vmem:[%s520 + $0x8] sm:$0xff]
                %525 = vst [vmem:[%s521 + $0x8] sm:$0xff] %v524
              $region89: #{custom-call.55} parent=83 // loop_footer
                %s519 = sadd.s32 1, %s515
              $region90: #{custom-call.55} parent=83 // loop_footer_branch
                %514 = sbr.rel target = $region86
              $region91: #{custom-call.55} parent=83 // loop_exit
                _
            $region84: #{custom-call.55} parent=68 // pred_fallthru
              _
            // Predicated region
            $region92: #{custom-call.55} parent=68 // pred_check
              _
            $region93: #{custom-call.55} parent=68 // pred_check_branch
              %527 = sbr.rel target = $region95
            $region94: #{custom-call.55} parent=68 // pred_region
              _
            $region95: #{custom-call.55} parent=68 // pred_fallthru
              _
          $region69: #{custom-call.55} parent=64 // pred_fallthru
            _
          // Predicated region
          $region70: #{custom-call.55} parent=64 // pred_check
            _
          $region71: #{custom-call.55} parent=64 // pred_check_branch
            %497 = sbr.rel target = $region73
          $region72: #{custom-call.55} parent=64 // pred_region
            %s499 = ssub.s32 256, 1
            loop: start=0, step=1, limit=1
            $region74: #{custom-call.55} parent=72 // loop_pre_header
              _
            $region75: #{custom-call.55} parent=72 // loop_header
              %s501 = sphi 0, %s505
              %p502 = scmp.ge.s32.totalorder %s501, 1
              %s506 = sphi %s481, %s481
              %s507 = sphi %s491, %s491
            $region76: #{custom-call.55} parent=72 // loop_header_branch
              %504 = sbr.rel (%p502) target = $region80
            $region77: #{custom-call.55} parent=72 // loop_body
              %v508 = vld [vmem:[%s506] sm:%s499]
              %509 = vst [vmem:[%s507] sm:%s499] %v508
              %v510 = vld [vmem:[%s506 + $0x8] sm:%s499]
              %511 = vst [vmem:[%s507 + $0x8] sm:%s499] %v510
            $region78: #{custom-call.55} parent=72 // loop_footer
              %s505 = sadd.s32 1, %s501
            $region79: #{custom-call.55} parent=72 // loop_footer_branch
              %500 = sbr.rel target = $region75
            $region80: #{custom-call.55} parent=72 // loop_exit
              _
          $region73: #{custom-call.55} parent=64 // pred_fallthru
            _
        $region65: #{custom-call.55} parent=53 // pred_fallthru
          _
        %528 = vnop
        // Predicated region
        $region96: #{custom-call.55} parent=53 // pred_check
          %p529 = pneg %p59
        $region97: #{custom-call.55} parent=53 // pred_check_branch
          %531 = sbr.rel (%p529) target = $region99
        $region98: #{custom-call.55} parent=53 // pred_region
          %p532 = scmp.lt.s32.totalorder %s15, 0
          %s533 = ssub.s32 0, %s15
          %s534 = scalar_select %p532, %s533, %s15
          %s535 = sshrl.u32 %s534, 3
          %s536 = ssub.s32 0, %s535
          %s537 = scalar_select %p532, %s536, %s535
          %s538 = smul.addr %s537, 2
          %s539 = scalar_lea.vmem %s2, %s538
          // Predicated region
          $region100: #{custom-call.55} parent=98 // pred_check
            _
          $region101: #{custom-call.55} parent=98 // pred_check_branch
            %541 = sbr.rel (0) target = $region103
          $region102: #{custom-call.55} parent=98 // pred_region
            // Predicated region
            $region104: #{custom-call.55} parent=102 // pred_check
              _
            $region105: #{custom-call.55} parent=102 // pred_check_branch
              %543 = sbr.rel target = $region107
            $region106: #{custom-call.55} parent=102 // pred_region
              // Predicated region
              $region119: #{custom-call.55} parent=106 // pred_check
                _
              $region120: #{custom-call.55} parent=106 // pred_check_branch
                %559 = sbr.rel (0) target = $region122
              $region121: #{custom-call.55} parent=106 // pred_region
                %s561 = ssub.s32 4, 1
                loop: start=0, step=1, limit=1
                $region123: #{custom-call.55} parent=121 // loop_pre_header
                  _
                $region124: #{custom-call.55} parent=121 // loop_header
                  %s563 = sphi 0, %s567
                  %p564 = scmp.ge.s32.totalorder %s563, 1
                  %s568 = sphi %s485, %s485
                  %s569 = sphi %s539, %s539
                $region125: #{custom-call.55} parent=121 // loop_header_branch
                  %566 = sbr.rel (%p564) target = $region129
                $region126: #{custom-call.55} parent=121 // loop_body
                  %v570 = vld [vmem:[%s568] sm:%s561]
                  %571 = vst [vmem:[%s569] sm:%s561] %v570
                $region127: #{custom-call.55} parent=121 // loop_footer
                  %s567 = sadd.s32 1, %s563
                $region128: #{custom-call.55} parent=121 // loop_footer_branch
                  %562 = sbr.rel target = $region124
                $region129: #{custom-call.55} parent=121 // loop_exit
                  _
              $region122: #{custom-call.55} parent=106 // pred_fallthru
                _
            $region107: #{custom-call.55} parent=102 // pred_fallthru
              _
            // Predicated region
            $region108: #{custom-call.55} parent=102 // pred_check
              _
            $region109: #{custom-call.55} parent=102 // pred_check_branch
              %545 = sbr.rel (0) target = $region111
            $region110: #{custom-call.55} parent=102 // pred_region
              %s547 = ssub.s32 4, 1
              loop: start=0, step=1, limit=1
              $region112: #{custom-call.55} parent=110 // loop_pre_header
                _
              $region113: #{custom-call.55} parent=110 // loop_header
                %s549 = sphi 0, %s553
                %p550 = scmp.ge.s32.totalorder %s549, 1
                %s554 = sphi %s485, %s485
                %s555 = sphi %s539, %s539
              $region114: #{custom-call.55} parent=110 // loop_header_branch
                %552 = sbr.rel (%p550) target = $region118
              $region115: #{custom-call.55} parent=110 // loop_body
                %v556 = vld [vmem:[%s554] sm:%s547]
                %557 = vst [vmem:[%s555] sm:%s547] %v556
              $region116: #{custom-call.55} parent=110 // loop_footer
                %s553 = sadd.s32 1, %s549
              $region117: #{custom-call.55} parent=110 // loop_footer_branch
                %548 = sbr.rel target = $region113
              $region118: #{custom-call.55} parent=110 // loop_exit
                _
            $region111: #{custom-call.55} parent=102 // pred_fallthru
              _
          $region103: #{custom-call.55} parent=98 // pred_fallthru
            _
          %572 = vnop
        $region99: #{custom-call.55} parent=53 // pred_fallthru
          _
      $region54: #{custom-call.55} parent=5 // pred_fallthru
        _
      %p573 = scmp.le.s32.totalorder 2, %s5
      // Predicated region
      $region130: #{custom-call.55} parent=5 // pred_check
        %p574 = pneg %p573
      $region131: #{custom-call.55} parent=5 // pred_check_branch
        %576 = sbr.rel (%p574) target = $region133
      $region132: #{custom-call.55} parent=5 // pred_region
        %s577 = ssub.s32 %s5, 2
        %s578 = sand.u32 %s11, 1
        %s579 = sand.u32 %s11, 1
        %s580 = smul.addr %s579, 16
        %s581 = scalar_lea.vmem [#allocation1], %s580
        // Predicated region
        $region134: #{custom-call.55} parent=132 // pred_check
          %p582 = pneg %p65
        $region135: #{custom-call.55} parent=132 // pred_check_branch
          %584 = sbr.rel (%p582) target = $region137
        $region136: #{custom-call.55} parent=132 // pred_region
          %s585 = sand.u32 %s50, 1
          %s586 = sand.u32 %s50, 1
          %s587 = smul.addr %s586, 2
          %s588 = scalar_lea.vmem [#allocation3], %s587
        $region137: #{custom-call.55} parent=132 // pred_fallthru
          _
      $region133: #{custom-call.55} parent=5 // pred_fallthru
        _
    $region6: #{custom-call.55} parent=1 // loop_footer
      %s9 = sadd.s32 1, %s5
    $region7: #{custom-call.55} parent=1 // loop_footer_branch
      %4 = sbr.rel target = $region3
    $region8: #{custom-call.55} parent=1 // loop_exit
      _

// kernel: custom-call.56
$region0: #{custom-call.56}
  %s0 = inlined_call_operand.vmem [shape: f32[2,8,8], index: 0, kind: input, shape index: {}]
  %s1 = inlined_call_operand.vmem [shape: f32[2,8,8], index: 1, kind: output, shape index: {}]
  $region1: #{custom-call.56} parent=0
    #allocation0 [shape = 'u8[8192]{0}', space=vmem, size = 0x2000, scoped, tag = 'operand span for operand 0']
    #allocation1 [shape = 'u8[8192]{0}', space=vmem, size = 0x2000, scoped, tag = 'operand span for operand 1']
    loop: start=0, step=1, limit=4
    $region2: #{custom-call.56} parent=1 // loop_pre_header
      _
    $region3: #{custom-call.56} parent=1 // loop_header
      %s3 = sphi 0, %s7
      %p4 = scmp.ge.s32.totalorder %s3, 4
    $region4: #{custom-call.56} parent=1 // loop_header_branch
      %6 = sbr.rel (%p4) target = $region8
    $region5: #{custom-call.56} parent=1 // loop_body
      %s8 = ssub.s32 %s3, 1
      %s9 = ssub.s32 %s3, 2
      %s10 = sadd.s32 %s3, 1
      %p11 = scmp.le.s32.totalorder 1, %s3
      %p12 = scmp.lt.s32.totalorder %s3, 3
      %p13 = pnand %p11, %p12
      %p14 = pneg %p13
      // Predicated region
      $region9: #{custom-call.56} parent=5 // pred_check
        _
      $region10: #{custom-call.56} parent=5 // pred_check_branch
        %16 = sbr.rel (%p13) target = $region12
      $region11: #{custom-call.56} parent=5 // pred_region
        %s17 = ssub.s32 %s3, 1
      $region12: #{custom-call.56} parent=5 // pred_fallthru
        _
      %p18 = scmp.lt.s32.totalorder %s3, 2
      // Predicated region
      $region13: #{custom-call.56} parent=5 // pred_check
        %p19 = pneg %p18
      $region14: #{custom-call.56} parent=5 // pred_check_branch
        %21 = sbr.rel (%p19) target = $region16
      $region15: #{custom-call.56} parent=5 // pred_region
        %s22 = sand.u32 %s3, 1
        %s23 = sand.u32 %s3, 1
        %s24 = smul.addr %s23, 8
        %s25 = scalar_lea.vmem [#allocation0], %s24
        %s26 = smul.addr %s3, 8
        %s27 = scalar_lea.vmem %s0, %s26
        // Predicated region
        $region17: #{custom-call.56} parent=15 // pred_check
          _
        $region18: #{custom-call.56} parent=15 // pred_check_branch
          %29 = sbr.rel (0) target = $region20
        $region19: #{custom-call.56} parent=15 // pred_region
          // Predicated region
          $region21: #{custom-call.56} parent=19 // pred_check
            _
          $region22: #{custom-call.56} parent=19 // pred_check_branch
            %31 = sbr.rel (0) target = $region24
          $region23: #{custom-call.56} parent=19 // pred_region
            // Predicated region
            $region36: #{custom-call.56} parent=23 // pred_check
              _
            $region37: #{custom-call.56} parent=23 // pred_check_branch
              %47 = sbr.rel (0) target = $region39
            $region38: #{custom-call.56} parent=23 // pred_region
              loop: start=0, step=1, limit=1
              $region40: #{custom-call.56} parent=38 // loop_pre_header
                _
              $region41: #{custom-call.56} parent=38 // loop_header
                %s49 = sphi 0, %s53
                %p50 = scmp.ge.s32.totalorder %s49, 1
                %s54 = sphi %s27, %s27
                %s55 = sphi %s25, %s25
              $region42: #{custom-call.56} parent=38 // loop_header_branch
                %52 = sbr.rel (%p50) target = $region46
              $region43: #{custom-call.56} parent=38 // loop_body
                %v56 = vld [vmem:[%s54] sm:$0xff]
                %57 = vst [vmem:[%s55] sm:$0xff] %v56
              $region44: #{custom-call.56} parent=38 // loop_footer
                %s53 = sadd.s32 1, %s49
              $region45: #{custom-call.56} parent=38 // loop_footer_branch
                %48 = sbr.rel target = $region41
              $region46: #{custom-call.56} parent=38 // loop_exit
                _
            $region39: #{custom-call.56} parent=23 // pred_fallthru
              _
            // Predicated region
            $region47: #{custom-call.56} parent=23 // pred_check
              _
            $region48: #{custom-call.56} parent=23 // pred_check_branch
              %59 = sbr.rel target = $region50
            $region49: #{custom-call.56} parent=23 // pred_region
              _
            $region50: #{custom-call.56} parent=23 // pred_fallthru
              _
          $region24: #{custom-call.56} parent=19 // pred_fallthru
            _
          // Predicated region
          $region25: #{custom-call.56} parent=19 // pred_check
            _
          $region26: #{custom-call.56} parent=19 // pred_check_branch
            %33 = sbr.rel target = $region28
          $region27: #{custom-call.56} parent=19 // pred_region
            %s35 = ssub.s32 256, 1
            loop: start=0, step=1, limit=1
            $region29: #{custom-call.56} parent=27 // loop_pre_header
              _
            $region30: #{custom-call.56} parent=27 // loop_header
              %s37 = sphi 0, %s41
              %p38 = scmp.ge.s32.totalorder %s37, 1
              %s42 = sphi %s27, %s27
              %s43 = sphi %s25, %s25
            $region31: #{custom-call.56} parent=27 // loop_header_branch
              %40 = sbr.rel (%p38) target = $region35
            $region32: #{custom-call.56} parent=27 // loop_body
              %v44 = vld [vmem:[%s42] sm:%s35]
              %45 = vst [vmem:[%s43] sm:%s35] %v44
            $region33: #{custom-call.56} parent=27 // loop_footer
              %s41 = sadd.s32 1, %s37
            $region34: #{custom-call.56} parent=27 // loop_footer_branch
              %36 = sbr.rel target = $region30
            $region35: #{custom-call.56} parent=27 // loop_exit
              _
          $region28: #{custom-call.56} parent=19 // pred_fallthru
            _
        $region20: #{custom-call.56} parent=15 // pred_fallthru
          _
        %60 = vnop
      $region16: #{custom-call.56} parent=5 // pred_fallthru
        _
      %p61 = scmp.le.s32.totalorder 1, %s3
      %p62 = scmp.lt.s32.totalorder %s3, 3
      %p63 = pnand %p61, %p62
      %p64 = pneg %p63
      // Predicated region
      $region51: #{custom-call.56} parent=5 // pred_check
        _
      $region52: #{custom-call.56} parent=5 // pred_check_branch
        %66 = sbr.rel (%p63) target = $region54
      $region53: #{custom-call.56} parent=5 // pred_region
        %s67 = ssub.s32 %s3, 1
        %s68 = sand.u32 %s8, 1
        %s69 = sand.u32 %s8, 1
        %s70 = smul.addr %s69, 8
        %s71 = scalar_lea.vmem [#allocation0], %s70
        %s72 = sand.u32 %s8, 1
        %s73 = sand.u32 %s8, 1
        %s74 = smul.addr %s73, 8
        %s75 = scalar_lea.vmem [#allocation0], %s74
        %s76 = sand.u32 %s8, 1
        %s77 = sand.u32 %s8, 1
        %s78 = smul.addr %s77, 8
        %s79 = scalar_lea.vmem [#allocation1], %s78
        %v80 = vlaneseq
        %v81 = vand.u32 %v80, 127
        %v82 = vlaneseq
        %v83 = vshrl.u32 %v82, 7
        %vm85 = vcmp.eq.s32.totalorder %v81, %v83
        %v86 = vld [vmem:[%s71] sm:$0xff]
        %v87 = vlaneseq
        %v88 = vand.u32 %v87, 127
        %vm89 = vcmp.eq.s32.totalorder %v88, 0
        %v90 = vsel %vm89, %v86, 1.0
        %v91 = vsel %vm85, %v90, 0.0
        %s92 = scalar_lea.vmem %s71, 1 [#allocation0]
        %v93 = vld [vmem:[%s92] ss:$0 sm:$0xff]
        %vm94 = vcmask 64512
        %v95 = vsel %vm94, %v93, 0.0
        %v96 = vlaneseq
        %v97 = vand.u32 %v96, 127
        %vm98 = vcmp.eq.s32.totalorder %v97, 1
        %v99 = vmul.f32 %v95, %v91
        %100 = vadd.xlane.f32.xlu0 %v99
        %v101 = vpop.xlane.xlu0 %100
        %v102 = vsel %vm98, %v101, %v91
        %s103 = scalar_lea.vmem %s71, 2 [#allocation0]
        %v104 = vld [vmem:[%s103] ss:$0 sm:$0xff]
        %vm105 = vcmask 64512
        %v106 = vsel %vm105, %v104, 0.0
        %v107 = vlaneseq
        %v108 = vand.u32 %v107, 127
        %vm109 = vcmp.eq.s32.totalorder %v108, 2
        %v110 = vmul.f32 %v106, %v102
        %111 = vadd.xlane.f32.xlu0 %v110
        %v112 = vpop.xlane.xlu0 %111
        %v113 = vsel %vm109, %v112, %v102
        %s114 = scalar_lea.vmem %s71, 3 [#allocation0]
        %v115 = vld [vmem:[%s114] ss:$0 sm:$0xff]
        %vm116 = vcmask 64512
        %v117 = vsel %vm116, %v115, 0.0
        %v118 = vlaneseq
        %v119 = vand.u32 %v118, 127
        %vm120 = vcmp.eq.s32.totalorder %v119, 3
        %v121 = vmul.f32 %v117, %v113
        %122 = vadd.xlane.f32.xlu0 %v121
        %v123 = vpop.xlane.xlu0 %122
        %v124 = vsel %vm120, %v123, %v113
        %s125 = scalar_lea.vmem %s71, 4 [#allocation0]
        %v126 = vld [vmem:[%s125] ss:$0 sm:$0xff]
        %vm127 = vcmask 64512
        %v128 = vsel %vm127, %v126, 0.0
        %v129 = vlaneseq
        %v130 = vand.u32 %v129, 127
        %vm131 = vcmp.eq.s32.totalorder %v130, 4
        %v132 = vmul.f32 %v128, %v124
        %133 = vadd.xlane.f32.xlu0 %v132
        %v134 = vpop.xlane.xlu0 %133
        %v135 = vsel %vm131, %v134, %v124
        %s136 = scalar_lea.vmem %s71, 5 [#allocation0]
        %v137 = vld [vmem:[%s136] ss:$0 sm:$0xff]
        %vm138 = vcmask 64512
        %v139 = vsel %vm138, %v137, 0.0
        %v140 = vlaneseq
        %v141 = vand.u32 %v140, 127
        %vm142 = vcmp.eq.s32.totalorder %v141, 5
        %v143 = vmul.f32 %v139, %v135
        %144 = vadd.xlane.f32.xlu0 %v143
        %v145 = vpop.xlane.xlu0 %144
        %v146 = vsel %vm142, %v145, %v135
        %s147 = scalar_lea.vmem %s71, 6 [#allocation0]
        %v148 = vld [vmem:[%s147] ss:$0 sm:$0xff]
        %vm149 = vcmask 64512
        %v150 = vsel %vm149, %v148, 0.0
        %v151 = vlaneseq
        %v152 = vand.u32 %v151, 127
        %vm153 = vcmp.eq.s32.totalorder %v152, 6
        %v154 = vmul.f32 %v150, %v146
        %155 = vadd.xlane.f32.xlu0 %v154
        %v156 = vpop.xlane.xlu0 %155
        %v157 = vsel %vm153, %v156, %v146
        %s158 = scalar_lea.vmem %s71, 7 [#allocation0]
        %v159 = vld [vmem:[%s158] ss:$0 sm:$0xff]
        %vm160 = vcmask 64512
        %v161 = vsel %vm160, %v159, 0.0
        %v162 = vlaneseq
        %v163 = vand.u32 %v162, 127
        %vm164 = vcmp.eq.s32.totalorder %v163, 7
        %v165 = vmul.f32 %v161, %v157
        %166 = vadd.xlane.f32.xlu0 %v165
        %v167 = vpop.xlane.xlu0 %166
        %v168 = vsel %vm164, %v167, %v157
        %169 = vst [vmem:[%s79] sm:$0xff] %v168
        %s170 = sand.u32 %s8, 1
        %s171 = sand.u32 %s8, 1
        %s172 = smul.addr %s171, 8
        %s173 = scalar_lea.vmem [#allocation1], %s172
        %s174 = smul.addr %s8, 8
        %s175 = scalar_lea.vmem %s1, %s174
        // Predicated region
        $region55: #{custom-call.56} parent=53 // pred_check
          _
        $region56: #{custom-call.56} parent=53 // pred_check_branch
          %177 = sbr.rel (0) target = $region58
        $region57: #{custom-call.56} parent=53 // pred_region
          // Predicated region
          $region59: #{custom-call.56} parent=57 // pred_check
            _
          $region60: #{custom-call.56} parent=57 // pred_check_branch
            %179 = sbr.rel (0) target = $region62
          $region61: #{custom-call.56} parent=57 // pred_region
            // Predicated region
            $region74: #{custom-call.56} parent=61 // pred_check
              _
            $region75: #{custom-call.56} parent=61 // pred_check_branch
              %195 = sbr.rel (0) target = $region77
            $region76: #{custom-call.56} parent=61 // pred_region
              loop: start=0, step=1, limit=1
              $region78: #{custom-call.56} parent=76 // loop_pre_header
                _
              $region79: #{custom-call.56} parent=76 // loop_header
                %s197 = sphi 0, %s201
                %p198 = scmp.ge.s32.totalorder %s197, 1
                %s202 = sphi %s173, %s173
                %s203 = sphi %s175, %s175
              $region80: #{custom-call.56} parent=76 // loop_header_branch
                %200 = sbr.rel (%p198) target = $region84
              $region81: #{custom-call.56} parent=76 // loop_body
                %v204 = vld [vmem:[%s202] sm:$0xff]
                %205 = vst [vmem:[%s203] sm:$0xff] %v204
              $region82: #{custom-call.56} parent=76 // loop_footer
                %s201 = sadd.s32 1, %s197
              $region83: #{custom-call.56} parent=76 // loop_footer_branch
                %196 = sbr.rel target = $region79
              $region84: #{custom-call.56} parent=76 // loop_exit
                _
            $region77: #{custom-call.56} parent=61 // pred_fallthru
              _
            // Predicated region
            $region85: #{custom-call.56} parent=61 // pred_check
              _
            $region86: #{custom-call.56} parent=61 // pred_check_branch
              %207 = sbr.rel target = $region88
            $region87: #{custom-call.56} parent=61 // pred_region
              _
            $region88: #{custom-call.56} parent=61 // pred_fallthru
              _
          $region62: #{custom-call.56} parent=57 // pred_fallthru
            _
          // Predicated region
          $region63: #{custom-call.56} parent=57 // pred_check
            _
          $region64: #{custom-call.56} parent=57 // pred_check_branch
            %181 = sbr.rel target = $region66
          $region65: #{custom-call.56} parent=57 // pred_region
            %s183 = ssub.s32 256, 1
            loop: start=0, step=1, limit=1
            $region67: #{custom-call.56} parent=65 // loop_pre_header
              _
            $region68: #{custom-call.56} parent=65 // loop_header
              %s185 = sphi 0, %s189
              %p186 = scmp.ge.s32.totalorder %s185, 1
              %s190 = sphi %s173, %s173
              %s191 = sphi %s175, %s175
            $region69: #{custom-call.56} parent=65 // loop_header_branch
              %188 = sbr.rel (%p186) target = $region73
            $region70: #{custom-call.56} parent=65 // loop_body
              %v192 = vld [vmem:[%s190] sm:%s183]
              %193 = vst [vmem:[%s191] sm:%s183] %v192
            $region71: #{custom-call.56} parent=65 // loop_footer
              %s189 = sadd.s32 1, %s185
            $region72: #{custom-call.56} parent=65 // loop_footer_branch
              %184 = sbr.rel target = $region68
            $region73: #{custom-call.56} parent=65 // loop_exit
              _
          $region66: #{custom-call.56} parent=57 // pred_fallthru
            _
        $region58: #{custom-call.56} parent=53 // pred_fallthru
          _
        %208 = vnop
      $region54: #{custom-call.56} parent=5 // pred_fallthru
        _
      %p209 = scmp.le.s32.totalorder 2, %s3
      // Predicated region
      $region89: #{custom-call.56} parent=5 // pred_check
        %p210 = pneg %p209
      $region90: #{custom-call.56} parent=5 // pred_check_branch
        %212 = sbr.rel (%p210) target = $region92
      $region91: #{custom-call.56} parent=5 // pred_region
        %s213 = ssub.s32 %s3, 2
        %s214 = sand.u32 %s9, 1
        %s215 = sand.u32 %s9, 1
        %s216 = smul.addr %s215, 8
        %s217 = scalar_lea.vmem [#allocation1], %s216
      $region92: #{custom-call.56} parent=5 // pred_fallthru
        _
    $region6: #{custom-call.56} parent=1 // loop_footer
      %s7 = sadd.s32 1, %s3
    $region7: #{custom-call.56} parent=1 // loop_footer_branch
      %2 = sbr.rel target = $region3
    $region8: #{custom-call.56} parent=1 // loop_exit
      _

// kernel: custom-call.48
$region0: #{custom-call.48}
  %s0 = inlined_call_operand.hbm [shape: pred[2], index: 0, kind: output, shape index: {}]

// kernel: custom-call.53
$region0: #{custom-call.53}
  %s0 = inlined_call_operand.vmem [shape: f32[2,8,8], index: 0, kind: input, shape index: {}]
  %s1 = inlined_call_operand.vmem [shape: f32[2,8,8], index: 1, kind: output, shape index: {}]
  $region1: #{custom-call.53} parent=0
    #allocation0 [shape = 'u8[8192]{0}', space=vmem, size = 0x2000, scoped, tag = 'operand span for operand 0']
    #allocation1 [shape = 'u8[8192]{0}', space=vmem, size = 0x2000, scoped, tag = 'operand span for operand 1']
    loop: start=0, step=1, limit=4
    $region2: #{custom-call.53} parent=1 // loop_pre_header
      _
    $region3: #{custom-call.53} parent=1 // loop_header
      %s3 = sphi 0, %s7
      %p4 = scmp.ge.s32.totalorder %s3, 4
      %s10 = sphi 0, %s29
      %s11 = sphi 0, %s25
      %s12 = sphi 0, %s21
      %s13 = sphi 0, %s10
      %s14 = sphi 0, %s11
      %s15 = sphi 0, %s12
      %s16 = sphi 0, %s13
      %s17 = sphi 0, %s14
      %s18 = sphi 0, %s15
    $region4: #{custom-call.53} parent=1 // loop_header_branch
      %6 = sbr.rel (%p4) target = $region8
    $region5: #{custom-call.53} parent=1 // loop_body
      %s8 = ssub.s32 %s3, 1
      %s9 = ssub.s32 %s3, 2
      %s19 = sadd.s32 1, %s12
      %p20 = scmp.ge.s32.totalorder %s19, 1
      %s21 = scalar_select %p20, 0, %s19
      %s22 = sadd.s32 1, %s11
      %s23 = scalar_select %p20, %s22, %s11
      %p24 = scmp.ge.s32.totalorder %s23, 1
      %s25 = scalar_select %p24, 0, %s23
      %s26 = sadd.s32 1, %s10
      %s27 = scalar_select %p24, %s26, %s10
      %p28 = scmp.ge.s32.totalorder %s27, 2
      %s29 = scalar_select %p28, 0, %s27
      %p30 = scmp.le.s32.totalorder 1, %s3
      %p31 = scmp.lt.s32.totalorder %s3, 3
      %p32 = pnand %p30, %p31
      %p33 = pneg %p32
      // Predicated region
      $region9: #{custom-call.53} parent=5 // pred_check
        _
      $region10: #{custom-call.53} parent=5 // pred_check_branch
        %35 = sbr.rel (%p32) target = $region12
      $region11: #{custom-call.53} parent=5 // pred_region
        %s36 = ssub.s32 %s3, 1
      $region12: #{custom-call.53} parent=5 // pred_fallthru
        _
      %p37 = scmp.lt.s32.totalorder %s3, 2
      // Predicated region
      $region13: #{custom-call.53} parent=5 // pred_check
        %p38 = pneg %p37
      $region14: #{custom-call.53} parent=5 // pred_check_branch
        %40 = sbr.rel (%p38) target = $region16
      $region15: #{custom-call.53} parent=5 // pred_region
        %s41 = sand.u32 %s3, 1
        %s42 = sand.u32 %s3, 1
        %s43 = smul.addr %s42, 8
        %s44 = scalar_lea.vmem [#allocation0], %s43
        %s45 = sadd.s32 %s12, %s11
        %s46 = sadd.s32 %s45, %s10
        %s47 = smul.addr %s46, 8
        %s48 = scalar_lea.vmem %s0, %s47
        // Predicated region
        $region17: #{custom-call.53} parent=15 // pred_check
          _
        $region18: #{custom-call.53} parent=15 // pred_check_branch
          %50 = sbr.rel (0) target = $region20
        $region19: #{custom-call.53} parent=15 // pred_region
          // Predicated region
          $region21: #{custom-call.53} parent=19 // pred_check
            _
          $region22: #{custom-call.53} parent=19 // pred_check_branch
            %52 = sbr.rel (0) target = $region24
          $region23: #{custom-call.53} parent=19 // pred_region
            // Predicated region
            $region36: #{custom-call.53} parent=23 // pred_check
              _
            $region37: #{custom-call.53} parent=23 // pred_check_branch
              %68 = sbr.rel (0) target = $region39
            $region38: #{custom-call.53} parent=23 // pred_region
              loop: start=0, step=1, limit=1
              $region40: #{custom-call.53} parent=38 // loop_pre_header
                _
              $region41: #{custom-call.53} parent=38 // loop_header
                %s70 = sphi 0, %s74
                %p71 = scmp.ge.s32.totalorder %s70, 1
                %s75 = sphi %s48, %s48
                %s76 = sphi %s44, %s44
              $region42: #{custom-call.53} parent=38 // loop_header_branch
                %73 = sbr.rel (%p71) target = $region46
              $region43: #{custom-call.53} parent=38 // loop_body
                %v77 = vld [vmem:[%s75] sm:$0xff]
                %78 = vst [vmem:[%s76] sm:$0xff] %v77
              $region44: #{custom-call.53} parent=38 // loop_footer
                %s74 = sadd.s32 1, %s70
              $region45: #{custom-call.53} parent=38 // loop_footer_branch
                %69 = sbr.rel target = $region41
              $region46: #{custom-call.53} parent=38 // loop_exit
                _
            $region39: #{custom-call.53} parent=23 // pred_fallthru
              _
            // Predicated region
            $region47: #{custom-call.53} parent=23 // pred_check
              _
            $region48: #{custom-call.53} parent=23 // pred_check_branch
              %80 = sbr.rel target = $region50
            $region49: #{custom-call.53} parent=23 // pred_region
              _
            $region50: #{custom-call.53} parent=23 // pred_fallthru
              _
          $region24: #{custom-call.53} parent=19 // pred_fallthru
            _
          // Predicated region
          $region25: #{custom-call.53} parent=19 // pred_check
            _
          $region26: #{custom-call.53} parent=19 // pred_check_branch
            %54 = sbr.rel target = $region28
          $region27: #{custom-call.53} parent=19 // pred_region
            %s56 = ssub.s32 256, 1
            loop: start=0, step=1, limit=1
            $region29: #{custom-call.53} parent=27 // loop_pre_header
              _
            $region30: #{custom-call.53} parent=27 // loop_header
              %s58 = sphi 0, %s62
              %p59 = scmp.ge.s32.totalorder %s58, 1
              %s63 = sphi %s48, %s48
              %s64 = sphi %s44, %s44
            $region31: #{custom-call.53} parent=27 // loop_header_branch
              %61 = sbr.rel (%p59) target = $region35
            $region32: #{custom-call.53} parent=27 // loop_body
              %v65 = vld [vmem:[%s63] sm:%s56]
              %66 = vst [vmem:[%s64] sm:%s56] %v65
            $region33: #{custom-call.53} parent=27 // loop_footer
              %s62 = sadd.s32 1, %s58
            $region34: #{custom-call.53} parent=27 // loop_footer_branch
              %57 = sbr.rel target = $region30
            $region35: #{custom-call.53} parent=27 // loop_exit
              _
          $region28: #{custom-call.53} parent=19 // pred_fallthru
            _
        $region20: #{custom-call.53} parent=15 // pred_fallthru
          _
        %81 = vnop
      $region16: #{custom-call.53} parent=5 // pred_fallthru
        _
      %p82 = scmp.le.s32.totalorder 1, %s3
      %p83 = scmp.lt.s32.totalorder %s3, 3
      %p84 = pnand %p82, %p83
      %p85 = pneg %p84
      // Predicated region
      $region51: #{custom-call.53} parent=5 // pred_check
        _
      $region52: #{custom-call.53} parent=5 // pred_check_branch
        %87 = sbr.rel (%p84) target = $region54
      $region53: #{custom-call.53} parent=5 // pred_region
        %s88 = ssub.s32 %s3, 1
        %s89 = sand.u32 %s8, 1
        %s90 = sand.u32 %s8, 1
        %s91 = smul.addr %s90, 8
        %s92 = scalar_lea.vmem [#allocation0], %s91
        %s93 = sand.u32 %s8, 1
        %s94 = sand.u32 %s8, 1
        %s95 = smul.addr %s94, 8
        %s96 = scalar_lea.vmem [#allocation0], %s95
        %s97 = sand.u32 %s8, 1
        %s98 = sand.u32 %s8, 1
        %s99 = smul.addr %s98, 8
        %s100 = scalar_lea.vmem [#allocation1], %s99
        %101 = vst [vmem:[%s100] sm:$0xff] 0.0
        %vm102 = vcmask 7168
        %v103 = vld [vmem:[%s100] ss:$0 sm:$0xff]
        %v104 = vld [vmem:[%s92] ss:$0 sm:$0xff]
        %v105 = vmul.f32 %v103, %v103
        %106 = vadd.xlane.f32.xlu0 %v105
        %v107 = vpop.xlane.xlu0 %106
        %v108 = vsub.f32 %v104, %v107
        %v109 = vrsqrt.pop %v108
        %v110 = vmul.f32 %v109, %v108
        %v111 = vmul.f32 %v110, %v109
        %v112 = vmul.f32 0.5, %v111
        %v113 = vsub.f32 1.5, %v112
        %v114 = vmul.f32 %v109, %v113
        %vm115 = vweird.f32 %v108
        %vm116 = vweird.f32 %v109
        %vm117 = vmor %vm115, %vm116
        %v118 = vsel %vm117, %v109, %v114
        %v119 = vld [vmem:[%s92] sm:$0xff]
        %v120 = vld [vmem:[%s100] sm:$0xff]
        %v121 = vmul.f32 %v120, %v103
        %122 = vadd.xlane.f32.xlu0 %v121
        %v123 = vpop.xlane.xlu0 %122
        %v124 = vsub.f32 %v119, %v123
        %v125 = vmul.f32 %v124, %v118
        %v126 = vsel %vm102, %v125, 0.0
        %v127 = vadd.f32 %v120, %v126
        %128 = vst [vmem:[%s100] sm:$0xff] %v127
        %vm129 = vcmask 15368
        %s130 = scalar_lea.vmem %s100, 1 [#allocation1]
        %v131 = vld [vmem:[%s130] ss:$0 sm:$0xff]
        %s132 = scalar_lea.vmem %s92, 1 [#allocation0]
        %v133 = vld [vmem:[%s132] ss:$0 sm:$0xff]
        %v134 = vmul.f32 %v131, %v131
        %135 = vadd.xlane.f32.xlu0 %v134
        %v136 = vpop.xlane.xlu0 %135
        %v137 = vsub.f32 %v133, %v136
        %v138 = vrsqrt.pop %v137
        %v139 = vmul.f32 %v138, %v137
        %v140 = vmul.f32 %v139, %v138
        %v141 = vmul.f32 0.5, %v140
        %v142 = vsub.f32 1.5, %v141
        %v143 = vmul.f32 %v138, %v142
        %vm144 = vweird.f32 %v137
        %vm145 = vweird.f32 %v138
        %vm146 = vmor %vm144, %vm145
        %v147 = vsel %vm146, %v138, %v143
        %v148 = vld [vmem:[%s92] sm:$0xff]
        %v149 = vld [vmem:[%s100] sm:$0xff]
        %v150 = vmul.f32 %v149, %v131
        %151 = vadd.xlane.f32.xlu0 %v150
        %v152 = vpop.xlane.xlu0 %151
        %v153 = vsub.f32 %v148, %v152
        %v154 = vmul.f32 %v153, %v147
        %vm155 = vcmask 1047553
        %vm156 = vmand %vm129, %vm155
        %v157 = vsel %vm156, %v154, 0.0
        %v158 = vadd.f32 %v149, %v157
        %159 = vst [vmem:[%s100] sm:$0xff] %v158
        %vm160 = vcmask 23568
        %s161 = scalar_lea.vmem %s100, 2 [#allocation1]
        %v162 = vld [vmem:[%s161] ss:$0 sm:$0xff]
        %s163 = scalar_lea.vmem %s92, 2 [#allocation0]
        %v164 = vld [vmem:[%s163] ss:$0 sm:$0xff]
        %v165 = vmul.f32 %v162, %v162
        %166 = vadd.xlane.f32.xlu0 %v165
        %v167 = vpop.xlane.xlu0 %166
        %v168 = vsub.f32 %v164, %v167
        %v169 = vrsqrt.pop %v168
        %v170 = vmul.f32 %v169, %v168
        %v171 = vmul.f32 %v170, %v169
        %v172 = vmul.f32 0.5, %v171
        %v173 = vsub.f32 1.5, %v172
        %v174 = vmul.f32 %v169, %v173
        %vm175 = vweird.f32 %v168
        %vm176 = vweird.f32 %v169
        %vm177 = vmor %vm175, %vm176
        %v178 = vsel %vm177, %v169, %v174
        %v179 = vld [vmem:[%s92] sm:$0xff]
        %v180 = vld [vmem:[%s100] sm:$0xff]
        %v181 = vmul.f32 %v180, %v162
        %182 = vadd.xlane.f32.xlu0 %v181
        %v183 = vpop.xlane.xlu0 %182
        %v184 = vsub.f32 %v179, %v183
        %v185 = vmul.f32 %v184, %v178
        %vm186 = vcmask 1047554
        %vm187 = vmand %vm160, %vm186
        %v188 = vsel %vm187, %v185, 0.0
        %v189 = vadd.f32 %v180, %v188
        %190 = vst [vmem:[%s100] sm:$0xff] %v189
        %vm191 = vcmask 31768
        %s192 = scalar_lea.vmem %s100, 3 [#allocation1]
        %v193 = vld [vmem:[%s192] ss:$0 sm:$0xff]
        %s194 = scalar_lea.vmem %s92, 3 [#allocation0]
        %v195 = vld [vmem:[%s194] ss:$0 sm:$0xff]
        %v196 = vmul.f32 %v193, %v193
        %197 = vadd.xlane.f32.xlu0 %v196
        %v198 = vpop.xlane.xlu0 %197
        %v199 = vsub.f32 %v195, %v198
        %v200 = vrsqrt.pop %v199
        %v201 = vmul.f32 %v200, %v199
        %v202 = vmul.f32 %v201, %v200
        %v203 = vmul.f32 0.5, %v202
        %v204 = vsub.f32 1.5, %v203
        %v205 = vmul.f32 %v200, %v204
        %vm206 = vweird.f32 %v199
        %vm207 = vweird.f32 %v200
        %vm208 = vmor %vm206, %vm207
        %v209 = vsel %vm208, %v200, %v205
        %v210 = vld [vmem:[%s92] sm:$0xff]
        %v211 = vld [vmem:[%s100] sm:$0xff]
        %v212 = vmul.f32 %v211, %v193
        %213 = vadd.xlane.f32.xlu0 %v212
        %v214 = vpop.xlane.xlu0 %213
        %v215 = vsub.f32 %v210, %v214
        %v216 = vmul.f32 %v215, %v209
        %vm217 = vcmask 1047555
        %vm218 = vmand %vm191, %vm217
        %v219 = vsel %vm218, %v216, 0.0
        %v220 = vadd.f32 %v211, %v219
        %221 = vst [vmem:[%s100] sm:$0xff] %v220
        %vm222 = vcmask 39968
        %s223 = scalar_lea.vmem %s100, 4 [#allocation1]
        %v224 = vld [vmem:[%s223] ss:$0 sm:$0xff]
        %s225 = scalar_lea.vmem %s92, 4 [#allocation0]
        %v226 = vld [vmem:[%s225] ss:$0 sm:$0xff]
        %v227 = vmul.f32 %v224, %v224
        %228 = vadd.xlane.f32.xlu0 %v227
        %v229 = vpop.xlane.xlu0 %228
        %v230 = vsub.f32 %v226, %v229
        %v231 = vrsqrt.pop %v230
        %v232 = vmul.f32 %v231, %v230
        %v233 = vmul.f32 %v232, %v231
        %v234 = vmul.f32 0.5, %v233
        %v235 = vsub.f32 1.5, %v234
        %v236 = vmul.f32 %v231, %v235
        %vm237 = vweird.f32 %v230
        %vm238 = vweird.f32 %v231
        %vm239 = vmor %vm237, %vm238
        %v240 = vsel %vm239, %v231, %v236
        %v241 = vld [vmem:[%s92] sm:$0xff]
        %v242 = vld [vmem:[%s100] sm:$0xff]
        %v243 = vmul.f32 %v242, %v224
        %244 = vadd.xlane.f32.xlu0 %v243
        %v245 = vpop.xlane.xlu0 %244
        %v246 = vsub.f32 %v241, %v245
        %v247 = vmul.f32 %v246, %v240
        %vm248 = vcmask 1047556
        %vm249 = vmand %vm222, %vm248
        %v250 = vsel %vm249, %v247, 0.0
        %v251 = vadd.f32 %v242, %v250
        %252 = vst [vmem:[%s100] sm:$0xff] %v251
        %vm253 = vcmask 48168
        %s254 = scalar_lea.vmem %s100, 5 [#allocation1]
        %v255 = vld [vmem:[%s254] ss:$0 sm:$0xff]
        %s256 = scalar_lea.vmem %s92, 5 [#allocation0]
        %v257 = vld [vmem:[%s256] ss:$0 sm:$0xff]
        %v258 = vmul.f32 %v255, %v255
        %259 = vadd.xlane.f32.xlu0 %v258
        %v260 = vpop.xlane.xlu0 %259
        %v261 = vsub.f32 %v257, %v260
        %v262 = vrsqrt.pop %v261
        %v263 = vmul.f32 %v262, %v261
        %v264 = vmul.f32 %v263, %v262
        %v265 = vmul.f32 0.5, %v264
        %v266 = vsub.f32 1.5, %v265
        %v267 = vmul.f32 %v262, %v266
        %vm268 = vweird.f32 %v261
        %vm269 = vweird.f32 %v262
        %vm270 = vmor %vm268, %vm269
        %v271 = vsel %vm270, %v262, %v267
        %v272 = vld [vmem:[%s92] sm:$0xff]
        %v273 = vld [vmem:[%s100] sm:$0xff]
        %v274 = vmul.f32 %v273, %v255
        %275 = vadd.xlane.f32.xlu0 %v274
        %v276 = vpop.xlane.xlu0 %275
        %v277 = vsub.f32 %v272, %v276
        %v278 = vmul.f32 %v277, %v271
        %vm279 = vcmask 1047557
        %vm280 = vmand %vm253, %vm279
        %v281 = vsel %vm280, %v278, 0.0
        %v282 = vadd.f32 %v273, %v281
        %283 = vst [vmem:[%s100] sm:$0xff] %v282
        %vm284 = vcmask 56368
        %s285 = scalar_lea.vmem %s100, 6 [#allocation1]
        %v286 = vld [vmem:[%s285] ss:$0 sm:$0xff]
        %s287 = scalar_lea.vmem %s92, 6 [#allocation0]
        %v288 = vld [vmem:[%s287] ss:$0 sm:$0xff]
        %v289 = vmul.f32 %v286, %v286
        %290 = vadd.xlane.f32.xlu0 %v289
        %v291 = vpop.xlane.xlu0 %290
        %v292 = vsub.f32 %v288, %v291
        %v293 = vrsqrt.pop %v292
        %v294 = vmul.f32 %v293, %v292
        %v295 = vmul.f32 %v294, %v293
        %v296 = vmul.f32 0.5, %v295
        %v297 = vsub.f32 1.5, %v296
        %v298 = vmul.f32 %v293, %v297
        %vm299 = vweird.f32 %v292
        %vm300 = vweird.f32 %v293
        %vm301 = vmor %vm299, %vm300
        %v302 = vsel %vm301, %v293, %v298
        %v303 = vld [vmem:[%s92] sm:$0xff]
        %v304 = vld [vmem:[%s100] sm:$0xff]
        %v305 = vmul.f32 %v304, %v286
        %306 = vadd.xlane.f32.xlu0 %v305
        %v307 = vpop.xlane.xlu0 %306
        %v308 = vsub.f32 %v303, %v307
        %v309 = vmul.f32 %v308, %v302
        %vm310 = vcmask 1047558
        %vm311 = vmand %vm284, %vm310
        %v312 = vsel %vm311, %v309, 0.0
        %v313 = vadd.f32 %v304, %v312
        %314 = vst [vmem:[%s100] sm:$0xff] %v313
        %vm315 = vcmask 64568
        %s316 = scalar_lea.vmem %s100, 7 [#allocation1]
        %v317 = vld [vmem:[%s316] ss:$0 sm:$0xff]
        %s318 = scalar_lea.vmem %s92, 7 [#allocation0]
        %v319 = vld [vmem:[%s318] ss:$0 sm:$0xff]
        %v320 = vmul.f32 %v317, %v317
        %321 = vadd.xlane.f32.xlu0 %v320
        %v322 = vpop.xlane.xlu0 %321
        %v323 = vsub.f32 %v319, %v322
        %v324 = vrsqrt.pop %v323
        %v325 = vmul.f32 %v324, %v323
        %v326 = vmul.f32 %v325, %v324
        %v327 = vmul.f32 0.5, %v326
        %v328 = vsub.f32 1.5, %v327
        %v329 = vmul.f32 %v324, %v328
        %vm330 = vweird.f32 %v323
        %vm331 = vweird.f32 %v324
        %vm332 = vmor %vm330, %vm331
        %v333 = vsel %vm332, %v324, %v329
        %v334 = vld [vmem:[%s92] sm:$0xff]
        %v335 = vld [vmem:[%s100] sm:$0xff]
        %v336 = vmul.f32 %v335, %v317
        %337 = vadd.xlane.f32.xlu0 %v336
        %v338 = vpop.xlane.xlu0 %337
        %v339 = vsub.f32 %v334, %v338
        %v340 = vmul.f32 %v339, %v333
        %vm341 = vcmask 1047559
        %vm342 = vmand %vm315, %vm341
        %v343 = vsel %vm342, %v340, 0.0
        %v344 = vadd.f32 %v335, %v343
        %345 = vst [vmem:[%s100] sm:$0xff] %v344
        %s346 = sand.u32 %s8, 1
        %s347 = sand.u32 %s8, 1
        %s348 = smul.addr %s347, 8
        %s349 = scalar_lea.vmem [#allocation1], %s348
        %s350 = sadd.s32 %s15, %s14
        %s351 = sadd.s32 %s350, %s13
        %s352 = smul.addr %s351, 8
        %s353 = scalar_lea.vmem %s1, %s352
        // Predicated region
        $region55: #{custom-call.53} parent=53 // pred_check
          _
        $region56: #{custom-call.53} parent=53 // pred_check_branch
          %355 = sbr.rel (0) target = $region58
        $region57: #{custom-call.53} parent=53 // pred_region
          // Predicated region
          $region59: #{custom-call.53} parent=57 // pred_check
            _
          $region60: #{custom-call.53} parent=57 // pred_check_branch
            %357 = sbr.rel (0) target = $region62
          $region61: #{custom-call.53} parent=57 // pred_region
            // Predicated region
            $region74: #{custom-call.53} parent=61 // pred_check
              _
            $region75: #{custom-call.53} parent=61 // pred_check_branch
              %373 = sbr.rel (0) target = $region77
            $region76: #{custom-call.53} parent=61 // pred_region
              loop: start=0, step=1, limit=1
              $region78: #{custom-call.53} parent=76 // loop_pre_header
                _
              $region79: #{custom-call.53} parent=76 // loop_header
                %s375 = sphi 0, %s379
                %p376 = scmp.ge.s32.totalorder %s375, 1
                %s380 = sphi %s349, %s349
                %s381 = sphi %s353, %s353
              $region80: #{custom-call.53} parent=76 // loop_header_branch
                %378 = sbr.rel (%p376) target = $region84
              $region81: #{custom-call.53} parent=76 // loop_body
                %v382 = vld [vmem:[%s380] sm:$0xff]
                %383 = vst [vmem:[%s381] sm:$0xff] %v382
              $region82: #{custom-call.53} parent=76 // loop_footer
                %s379 = sadd.s32 1, %s375
              $region83: #{custom-call.53} parent=76 // loop_footer_branch
                %374 = sbr.rel target = $region79
              $region84: #{custom-call.53} parent=76 // loop_exit
                _
            $region77: #{custom-call.53} parent=61 // pred_fallthru
              _
            // Predicated region
            $region85: #{custom-call.53} parent=61 // pred_check
              _
            $region86: #{custom-call.53} parent=61 // pred_check_branch
              %385 = sbr.rel target = $region88
            $region87: #{custom-call.53} parent=61 // pred_region
              _
            $region88: #{custom-call.53} parent=61 // pred_fallthru
              _
          $region62: #{custom-call.53} parent=57 // pred_fallthru
            _
          // Predicated region
          $region63: #{custom-call.53} parent=57 // pred_check
            _
          $region64: #{custom-call.53} parent=57 // pred_check_branch
            %359 = sbr.rel target = $region66
          $region65: #{custom-call.53} parent=57 // pred_region
            %s361 = ssub.s32 256, 1
            loop: start=0, step=1, limit=1
            $region67: #{custom-call.53} parent=65 // loop_pre_header
              _
            $region68: #{custom-call.53} parent=65 // loop_header
              %s363 = sphi 0, %s367
              %p364 = scmp.ge.s32.totalorder %s363, 1
              %s368 = sphi %s349, %s349
              %s369 = sphi %s353, %s353
            $region69: #{custom-call.53} parent=65 // loop_header_branch
              %366 = sbr.rel (%p364) target = $region73
            $region70: #{custom-call.53} parent=65 // loop_body
              %v370 = vld [vmem:[%s368] sm:%s361]
              %371 = vst [vmem:[%s369] sm:%s361] %v370
            $region71: #{custom-call.53} parent=65 // loop_footer
              %s367 = sadd.s32 1, %s363
            $region72: #{custom-call.53} parent=65 // loop_footer_branch
              %362 = sbr.rel target = $region68
            $region73: #{custom-call.53} parent=65 // loop_exit
              _
          $region66: #{custom-call.53} parent=57 // pred_fallthru
            _
        $region58: #{custom-call.53} parent=53 // pred_fallthru
          _
        %386 = vnop
      $region54: #{custom-call.53} parent=5 // pred_fallthru
        _
      %p387 = scmp.le.s32.totalorder 2, %s3
      // Predicated region
      $region89: #{custom-call.53} parent=5 // pred_check
        %p388 = pneg %p387
      $region90: #{custom-call.53} parent=5 // pred_check_branch
        %390 = sbr.rel (%p388) target = $region92
      $region91: #{custom-call.53} parent=5 // pred_region
        %s391 = ssub.s32 %s3, 2
        %s392 = sand.u32 %s9, 1
        %s393 = sand.u32 %s9, 1
        %s394 = smul.addr %s393, 8
        %s395 = scalar_lea.vmem [#allocation1], %s394
      $region92: #{custom-call.53} parent=5 // pred_fallthru
        _
    $region6: #{custom-call.53} parent=1 // loop_footer
      %s7 = sadd.s32 1, %s3
    $region7: #{custom-call.53} parent=1 // loop_footer_branch
      %2 = sbr.rel target = $region3
    $region8: #{custom-call.53} parent=1 // loop_exit
      _

// kernel: custom-call.54
$region0: #{custom-call.54}
  %s0 = inlined_call_operand.vmem [shape: f32[2,1,8,8], index: 0, kind: input, shape index: {}]
  %s1 = inlined_call_operand.vmem [shape: f32[2,1,8,8], index: 1, kind: output, shape index: {}]
  $region1: #{custom-call.54} parent=0
    #allocation0 [shape = 'u8[8192]{0}', space=vmem, size = 0x2000, scoped, tag = 'operand span for operand 0']
    #allocation1 [shape = 'u8[8192]{0}', space=vmem, size = 0x2000, scoped, tag = 'operand span for operand 1']
    loop: start=0, step=1, limit=4
    $region2: #{custom-call.54} parent=1 // loop_pre_header
      _
    $region3: #{custom-call.54} parent=1 // loop_header
      %s3 = sphi 0, %s7
      %p4 = scmp.ge.s32.totalorder %s3, 4
      %s10 = sphi 0, %s36
      %s11 = sphi 0, %s32
      %s12 = sphi 0, %s28
      %s13 = sphi 0, %s24
      %s14 = sphi 0, %s10
      %s15 = sphi 0, %s11
      %s16 = sphi 0, %s12
      %s17 = sphi 0, %s13
      %s18 = sphi 0, %s14
      %s19 = sphi 0, %s15
      %s20 = sphi 0, %s16
      %s21 = sphi 0, %s17
    $region4: #{custom-call.54} parent=1 // loop_header_branch
      %6 = sbr.rel (%p4) target = $region8
    $region5: #{custom-call.54} parent=1 // loop_body
      %s8 = ssub.s32 %s3, 1
      %s9 = ssub.s32 %s3, 2
      %s22 = sadd.s32 1, %s13
      %p23 = scmp.ge.s32.totalorder %s22, 1
      %s24 = scalar_select %p23, 0, %s22
      %s25 = sadd.s32 1, %s12
      %s26 = scalar_select %p23, %s25, %s12
      %p27 = scmp.ge.s32.totalorder %s26, 1
      %s28 = scalar_select %p27, 0, %s26
      %s29 = sadd.s32 1, %s11
      %s30 = scalar_select %p27, %s29, %s11
      %p31 = scmp.ge.s32.totalorder %s30, 1
      %s32 = scalar_select %p31, 0, %s30
      %s33 = sadd.s32 1, %s10
      %s34 = scalar_select %p31, %s33, %s10
      %p35 = scmp.ge.s32.totalorder %s34, 2
      %s36 = scalar_select %p35, 0, %s34
      %p37 = scmp.le.s32.totalorder 1, %s3
      %p38 = scmp.lt.s32.totalorder %s3, 3
      %p39 = pnand %p37, %p38
      %p40 = pneg %p39
      // Predicated region
      $region9: #{custom-call.54} parent=5 // pred_check
        _
      $region10: #{custom-call.54} parent=5 // pred_check_branch
        %42 = sbr.rel (%p39) target = $region12
      $region11: #{custom-call.54} parent=5 // pred_region
        %s43 = ssub.s32 %s3, 1
      $region12: #{custom-call.54} parent=5 // pred_fallthru
        _
      %p44 = scmp.lt.s32.totalorder %s3, 2
      // Predicated region
      $region13: #{custom-call.54} parent=5 // pred_check
        %p45 = pneg %p44
      $region14: #{custom-call.54} parent=5 // pred_check_branch
        %47 = sbr.rel (%p45) target = $region16
      $region15: #{custom-call.54} parent=5 // pred_region
        %s48 = sand.u32 %s3, 1
        %s49 = sand.u32 %s3, 1
        %s50 = smul.addr %s49, 8
        %s51 = scalar_lea.vmem [#allocation0], %s50
        %s52 = sadd.s32 %s13, %s12
        %s53 = sadd.s32 %s52, %s11
        %s54 = sadd.s32 %s53, %s10
        %s55 = smul.addr %s54, 8
        %s56 = scalar_lea.vmem %s0, %s55
        // Predicated region
        $region17: #{custom-call.54} parent=15 // pred_check
          _
        $region18: #{custom-call.54} parent=15 // pred_check_branch
          %58 = sbr.rel (0) target = $region20
        $region19: #{custom-call.54} parent=15 // pred_region
          // Predicated region
          $region21: #{custom-call.54} parent=19 // pred_check
            _
          $region22: #{custom-call.54} parent=19 // pred_check_branch
            %60 = sbr.rel (0) target = $region24
          $region23: #{custom-call.54} parent=19 // pred_region
            // Predicated region
            $region36: #{custom-call.54} parent=23 // pred_check
              _
            $region37: #{custom-call.54} parent=23 // pred_check_branch
              %76 = sbr.rel (0) target = $region39
            $region38: #{custom-call.54} parent=23 // pred_region
              loop: start=0, step=1, limit=1
              $region40: #{custom-call.54} parent=38 // loop_pre_header
                _
              $region41: #{custom-call.54} parent=38 // loop_header
                %s78 = sphi 0, %s82
                %p79 = scmp.ge.s32.totalorder %s78, 1
                %s83 = sphi %s56, %s56
                %s84 = sphi %s51, %s51
              $region42: #{custom-call.54} parent=38 // loop_header_branch
                %81 = sbr.rel (%p79) target = $region46
              $region43: #{custom-call.54} parent=38 // loop_body
                %v85 = vld [vmem:[%s83] sm:$0xff]
                %86 = vst [vmem:[%s84] sm:$0xff] %v85
              $region44: #{custom-call.54} parent=38 // loop_footer
                %s82 = sadd.s32 1, %s78
              $region45: #{custom-call.54} parent=38 // loop_footer_branch
                %77 = sbr.rel target = $region41
              $region46: #{custom-call.54} parent=38 // loop_exit
                _
            $region39: #{custom-call.54} parent=23 // pred_fallthru
              _
            // Predicated region
            $region47: #{custom-call.54} parent=23 // pred_check
              _
            $region48: #{custom-call.54} parent=23 // pred_check_branch
              %88 = sbr.rel target = $region50
            $region49: #{custom-call.54} parent=23 // pred_region
              _
            $region50: #{custom-call.54} parent=23 // pred_fallthru
              _
          $region24: #{custom-call.54} parent=19 // pred_fallthru
            _
          // Predicated region
          $region25: #{custom-call.54} parent=19 // pred_check
            _
          $region26: #{custom-call.54} parent=19 // pred_check_branch
            %62 = sbr.rel target = $region28
          $region27: #{custom-call.54} parent=19 // pred_region
            %s64 = ssub.s32 256, 1
            loop: start=0, step=1, limit=1
            $region29: #{custom-call.54} parent=27 // loop_pre_header
              _
            $region30: #{custom-call.54} parent=27 // loop_header
              %s66 = sphi 0, %s70
              %p67 = scmp.ge.s32.totalorder %s66, 1
              %s71 = sphi %s56, %s56
              %s72 = sphi %s51, %s51
            $region31: #{custom-call.54} parent=27 // loop_header_branch
              %69 = sbr.rel (%p67) target = $region35
            $region32: #{custom-call.54} parent=27 // loop_body
              %v73 = vld [vmem:[%s71] sm:%s64]
              %74 = vst [vmem:[%s72] sm:%s64] %v73
            $region33: #{custom-call.54} parent=27 // loop_footer
              %s70 = sadd.s32 1, %s66
            $region34: #{custom-call.54} parent=27 // loop_footer_branch
              %65 = sbr.rel target = $region30
            $region35: #{custom-call.54} parent=27 // loop_exit
              _
          $region28: #{custom-call.54} parent=19 // pred_fallthru
            _
        $region20: #{custom-call.54} parent=15 // pred_fallthru
          _
        %89 = vnop
      $region16: #{custom-call.54} parent=5 // pred_fallthru
        _
      %p90 = scmp.le.s32.totalorder 1, %s3
      %p91 = scmp.lt.s32.totalorder %s3, 3
      %p92 = pnand %p90, %p91
      %p93 = pneg %p92
      // Predicated region
      $region51: #{custom-call.54} parent=5 // pred_check
        _
      $region52: #{custom-call.54} parent=5 // pred_check_branch
        %95 = sbr.rel (%p92) target = $region54
      $region53: #{custom-call.54} parent=5 // pred_region
        #allocation2 [shape = 'f32[8,8]{1,0}', space=vmem, size = 0x1000, scoped, tag = 'rescaled input a']
        %s96 = ssub.s32 %s3, 1
        %s97 = sand.u32 %s8, 1
        %s98 = sand.u32 %s8, 1
        %s99 = smul.addr %s98, 8
        %s100 = scalar_lea.vmem [#allocation0], %s99
        %s101 = sand.u32 %s8, 1
        %s102 = sand.u32 %s8, 1
        %s103 = smul.addr %s102, 8
        %s104 = scalar_lea.vmem [#allocation0], %s103
        %s105 = sand.u32 %s8, 1
        %s106 = sand.u32 %s8, 1
        %s107 = smul.addr %s106, 8
        %s108 = scalar_lea.vmem [#allocation1], %s107
        %v109 = vlaneseq
        %v110 = vand.u32 %v109, 127
        %vm111 = vcmp.lt.s32.totalorder %v110, 8
        %v112 = vlaneseq
        %v113 = vshrl.u32 %v112, 7
        %vm115 = vcmp.eq.s32.totalorder %v113, %v110
        %v116 = vld [vmem:[%s100] sm:$0xff]
        %v117 = vsel %vm115, %v116, 0.0
        %118 = vadd.xlane.f32.xlu0 %v117
        %v119 = vpop.xlane.xlu0 %118
        %vm120 = vcmp.ge.s32.totalorder %v113, %v110
        %vm121 = vmand %vm120, %vm111
        %v122 = vsel %vm121, %v116, 0.0
        %v123 = vrcp.pop %v119
        %v124 = vmul.f32 %v119, %v123
        %v125 = vsub.f32 1.0, %v124
        %v126 = vmul.f32 %v123, %v125
        %v127 = vadd.f32 %v123, %v126
        %vm128 = vweird.f32 %v119
        %vm129 = vweird.f32 %v123
        %vm130 = vmor %vm128, %vm129
        %v131 = vsel %vm130, %v123, %v127
        %v132 = vand.u32 2147483647, %v119
        %vm133 = vcmp.eq.f32.partialorder %v132, 8.507059e+37
        %v134 = vand.u32 %v119, 2147483648
        %v135 = vor.u32 1.1754944e-38, %v134
        %v136 = vsel %vm133, %v135, %v131
        %v137 = vmul.f32 %v122, %v136
        %138 = vst [vmem:[#allocation2] sm:$0xff] %v137
        %v139 = vlaneseq
        %v140 = vand.u32 %v139, 127
        %v141 = vlaneseq
        %v142 = vshrl.u32 %v141, 7
        %vm144 = vcmp.eq.s32.totalorder %v140, %v142
        %v145 = vlaneseq
        %v146 = vand.u32 %v145, 127
        %vm147 = vcmp.eq.s32.totalorder %v146, 0
        %v148 = vsel %vm147, 1.0, -1.0
        %v149 = vsel %vm144, %v148, 0.0
        %s150 = scalar_lea.vmem [#allocation2], 1
        %v151 = vld [vmem:[%s150] ss:$0 sm:$0xff]
        %v152 = vxor.u32 %v151, 2147483648
        %v153 = vlaneseq
        %v154 = vand.u32 %v153, 127
        %vm155 = vcmp.eq.s32.totalorder %v154, 1
        %v156 = vmul.f32 %v152, %v149
        %157 = vadd.xlane.f32.xlu0 %v156
        %v158 = vpop.xlane.xlu0 %157
        %v159 = vsel %vm155, %v158, %v149
        %s160 = scalar_lea.vmem [#allocation2], 2
        %v161 = vld [vmem:[%s160] ss:$0 sm:$0xff]
        %v162 = vxor.u32 %v161, 2147483648
        %v163 = vlaneseq
        %v164 = vand.u32 %v163, 127
        %vm165 = vcmp.eq.s32.totalorder %v164, 2
        %v166 = vmul.f32 %v162, %v159
        %167 = vadd.xlane.f32.xlu0 %v166
        %v168 = vpop.xlane.xlu0 %167
        %v169 = vsel %vm165, %v168, %v159
        %s170 = scalar_lea.vmem [#allocation2], 3
        %v171 = vld [vmem:[%s170] ss:$0 sm:$0xff]
        %v172 = vxor.u32 %v171, 2147483648
        %v173 = vlaneseq
        %v174 = vand.u32 %v173, 127
        %vm175 = vcmp.eq.s32.totalorder %v174, 3
        %v176 = vmul.f32 %v172, %v169
        %177 = vadd.xlane.f32.xlu0 %v176
        %v178 = vpop.xlane.xlu0 %177
        %v179 = vsel %vm175, %v178, %v169
        %s180 = scalar_lea.vmem [#allocation2], 4
        %v181 = vld [vmem:[%s180] ss:$0 sm:$0xff]
        %v182 = vxor.u32 %v181, 2147483648
        %v183 = vlaneseq
        %v184 = vand.u32 %v183, 127
        %vm185 = vcmp.eq.s32.totalorder %v184, 4
        %v186 = vmul.f32 %v182, %v179
        %187 = vadd.xlane.f32.xlu0 %v186
        %v188 = vpop.xlane.xlu0 %187
        %v189 = vsel %vm185, %v188, %v179
        %s190 = scalar_lea.vmem [#allocation2], 5
        %v191 = vld [vmem:[%s190] ss:$0 sm:$0xff]
        %v192 = vxor.u32 %v191, 2147483648
        %v193 = vlaneseq
        %v194 = vand.u32 %v193, 127
        %vm195 = vcmp.eq.s32.totalorder %v194, 5
        %v196 = vmul.f32 %v192, %v189
        %197 = vadd.xlane.f32.xlu0 %v196
        %v198 = vpop.xlane.xlu0 %197
        %v199 = vsel %vm195, %v198, %v189
        %s200 = scalar_lea.vmem [#allocation2], 6
        %v201 = vld [vmem:[%s200] ss:$0 sm:$0xff]
        %v202 = vxor.u32 %v201, 2147483648
        %v203 = vlaneseq
        %v204 = vand.u32 %v203, 127
        %vm205 = vcmp.eq.s32.totalorder %v204, 6
        %v206 = vmul.f32 %v202, %v199
        %207 = vadd.xlane.f32.xlu0 %v206
        %v208 = vpop.xlane.xlu0 %207
        %v209 = vsel %vm205, %v208, %v199
        %s210 = scalar_lea.vmem [#allocation2], 7
        %v211 = vld [vmem:[%s210] ss:$0 sm:$0xff]
        %v212 = vxor.u32 %v211, 2147483648
        %v213 = vlaneseq
        %v214 = vand.u32 %v213, 127
        %vm215 = vcmp.eq.s32.totalorder %v214, 7
        %v216 = vmul.f32 %v212, %v209
        %217 = vadd.xlane.f32.xlu0 %v216
        %v218 = vpop.xlane.xlu0 %217
        %v219 = vsel %vm215, %v218, %v209
        %v220 = vrcp.pop %v119
        %v221 = vmul.f32 %v119, %v220
        %v222 = vsub.f32 1.0, %v221
        %v223 = vmul.f32 %v220, %v222
        %v224 = vadd.f32 %v220, %v223
        %vm225 = vweird.f32 %v119
        %vm226 = vweird.f32 %v220
        %vm227 = vmor %vm225, %vm226
        %v228 = vsel %vm227, %v220, %v224
        %v229 = vand.u32 2147483647, %v119
        %vm230 = vcmp.eq.f32.partialorder %v229, 8.507059e+37
        %v231 = vand.u32 %v119, 2147483648
        %v232 = vor.u32 1.1754944e-38, %v231
        %v233 = vsel %vm230, %v232, %v228
        %v234 = vmul.f32 %v219, %v233
        %vm235 = vweird.f32 %v119
        %v236 = vsel %vm235, %v219, %v234
        %237 = vst [vmem:[%s108] sm:$0xff] %v236
        %s238 = sand.u32 %s8, 1
        %s239 = sand.u32 %s8, 1
        %s240 = smul.addr %s239, 8
        %s241 = scalar_lea.vmem [#allocation1], %s240
        %s242 = sadd.s32 %s17, %s16
        %s243 = sadd.s32 %s242, %s15
        %s244 = sadd.s32 %s243, %s14
        %s245 = smul.addr %s244, 8
        %s246 = scalar_lea.vmem %s1, %s245
        // Predicated region
        $region55: #{custom-call.54} parent=53 // pred_check
          _
        $region56: #{custom-call.54} parent=53 // pred_check_branch
          %248 = sbr.rel (0) target = $region58
        $region57: #{custom-call.54} parent=53 // pred_region
          // Predicated region
          $region59: #{custom-call.54} parent=57 // pred_check
            _
          $region60: #{custom-call.54} parent=57 // pred_check_branch
            %250 = sbr.rel (0) target = $region62
          $region61: #{custom-call.54} parent=57 // pred_region
            // Predicated region
            $region74: #{custom-call.54} parent=61 // pred_check
              _
            $region75: #{custom-call.54} parent=61 // pred_check_branch
              %266 = sbr.rel (0) target = $region77
            $region76: #{custom-call.54} parent=61 // pred_region
              loop: start=0, step=1, limit=1
              $region78: #{custom-call.54} parent=76 // loop_pre_header
                _
              $region79: #{custom-call.54} parent=76 // loop_header
                %s268 = sphi 0, %s272
                %p269 = scmp.ge.s32.totalorder %s268, 1
                %s273 = sphi %s241, %s241
                %s274 = sphi %s246, %s246
              $region80: #{custom-call.54} parent=76 // loop_header_branch
                %271 = sbr.rel (%p269) target = $region84
              $region81: #{custom-call.54} parent=76 // loop_body
                %v275 = vld [vmem:[%s273] sm:$0xff]
                %276 = vst [vmem:[%s274] sm:$0xff] %v275
              $region82: #{custom-call.54} parent=76 // loop_footer
                %s272 = sadd.s32 1, %s268
              $region83: #{custom-call.54} parent=76 // loop_footer_branch
                %267 = sbr.rel target = $region79
              $region84: #{custom-call.54} parent=76 // loop_exit
                _
            $region77: #{custom-call.54} parent=61 // pred_fallthru
              _
            // Predicated region
            $region85: #{custom-call.54} parent=61 // pred_check
              _
            $region86: #{custom-call.54} parent=61 // pred_check_branch
              %278 = sbr.rel target = $region88
            $region87: #{custom-call.54} parent=61 // pred_region
              _
            $region88: #{custom-call.54} parent=61 // pred_fallthru
              _
          $region62: #{custom-call.54} parent=57 // pred_fallthru
            _
          // Predicated region
          $region63: #{custom-call.54} parent=57 // pred_check
            _
          $region64: #{custom-call.54} parent=57 // pred_check_branch
            %252 = sbr.rel target = $region66
          $region65: #{custom-call.54} parent=57 // pred_region
            %s254 = ssub.s32 256, 1
            loop: start=0, step=1, limit=1
            $region67: #{custom-call.54} parent=65 // loop_pre_header
              _
            $region68: #{custom-call.54} parent=65 // loop_header
              %s256 = sphi 0, %s260
              %p257 = scmp.ge.s32.totalorder %s256, 1
              %s261 = sphi %s241, %s241
              %s262 = sphi %s246, %s246
            $region69: #{custom-call.54} parent=65 // loop_header_branch
              %259 = sbr.rel (%p257) target = $region73
            $region70: #{custom-call.54} parent=65 // loop_body
              %v263 = vld [vmem:[%s261] sm:%s254]
              %264 = vst [vmem:[%s262] sm:%s254] %v263
            $region71: #{custom-call.54} parent=65 // loop_footer
              %s260 = sadd.s32 1, %s256
            $region72: #{custom-call.54} parent=65 // loop_footer_branch
              %255 = sbr.rel target = $region68
            $region73: #{custom-call.54} parent=65 // loop_exit
              _
          $region66: #{custom-call.54} parent=57 // pred_fallthru
            _
        $region58: #{custom-call.54} parent=53 // pred_fallthru
          _
        %279 = vnop
      $region54: #{custom-call.54} parent=5 // pred_fallthru
        _
      %p280 = scmp.le.s32.totalorder 2, %s3
      // Predicated region
      $region89: #{custom-call.54} parent=5 // pred_check
        %p281 = pneg %p280
      $region90: #{custom-call.54} parent=5 // pred_check_branch
        %283 = sbr.rel (%p281) target = $region92
      $region91: #{custom-call.54} parent=5 // pred_region
        %s284 = ssub.s32 %s3, 2
        %s285 = sand.u32 %s9, 1
        %s286 = sand.u32 %s9, 1
        %s287 = smul.addr %s286, 8
        %s288 = scalar_lea.vmem [#allocation1], %s287
      $region92: #{custom-call.54} parent=5 // pred_fallthru
        _
    $region6: #{custom-call.54} parent=1 // loop_footer
      %s7 = sadd.s32 1, %s3
    $region7: #{custom-call.54} parent=1 // loop_footer_branch
      %2 = sbr.rel target = $region3
    $region8: #{custom-call.54} parent=1 // loop_exit
      _

// kernel: cgd_spca_forward.1
$region0: #{cgd_spca_forward.1}
  #allocation0 [shape = 'u32[]', space=smem, size = 0x4, offset = 0x4, fixed_abs, tag = 'smem constant byte address 0x4 - core index']
  #allocation1 [shape = 'u32[72,128]{1,0:T(1,128)}', space=vmem, size = 0x9000, scoped, tag = 'internal scratch']
  #allocation2 [shape = 'f32[32,8]{1,0:T(8,128)}', space=vmem, size = 0x4000, scoped, tag = 'scratch operand']
  %s0 = inlined_call_operand.vmem [shape: f32[2], index: 0, kind: input, shape index: {}]
  %s1 = inlined_call_operand.vmem [shape: f32[2,8,32], index: 1, kind: input, shape index: {}]
  %s2 = inlined_call_operand.vmem [shape: f32[32,16], index: 2, kind: input, shape index: {}]
  %s3 = inlined_call_operand.vmem [shape: f32[2,8,32], index: 3, kind: output, shape index: {0}]
  %s4 = inlined_call_operand.vmem [shape: f32[2,1,1], index: 4, kind: output, shape index: {1}]
  %5 = xla_tuple %s3, %s4
  %s6 = sld [smem:[#allocation0]]
  $region61: #{cgd_spca_forward.1} parent=0
    _
  %s8 = ssub.s32 1, %s6
  %s9 = scalar_select 0, %s8, %s6
  $region1: #{cgd_spca_forward.1} parent=0
    #allocation3 [shape = 'u8[512]{0}', space=smem, size = 0x200, scoped, tag = 'input window, operand 0, single buffered']
    #allocation4 [shape = 's32[2]{0}', space=sflag, size = 0x8, scoped, tag = 'scoped memory for cgd_spca_forward.1']
    %10 = vsyncpa [#allocation4], 0
    loop: start=0, step=1, limit=4
    $region2: #{cgd_spca_forward.1} parent=1 // loop_pre_header
      _
    $region3: #{cgd_spca_forward.1} parent=1 // loop_header
      %s12 = sphi 0, %s16
      %p13 = scmp.ge.s32.totalorder %s12, 4
      %s19 = sphi 0, %s31
      %s20 = sphi 0, %s27
      %s21 = sphi 0, %s19
      %s22 = sphi 0, %s20
      %s23 = sphi 0, %s21
      %s24 = sphi 0, %s22
      %s32 = sphi 0, %s32
      %s34 = sphi 0, %s32
      %s35 = sphi 0, %s34
      %s49 = sphi 0, %s35
      %s57 = sphi 0, %s59
      %s60 = sphi 0, %s57
      %s61 = sphi 0, %s60
      %s77 = sphi 0, %s61
      %s81 = sphi 0, %s81
      %s83 = sphi 0, %s81
      %s84 = sphi 0, %s83
      %s98 = sphi 0, %s84
      %s104 = sphi 0, %s106
      %s107 = sphi 0, %s104
      %s108 = sphi 0, %s107
      %s124 = sphi 0, %s108
      %s130 = sphi 0, %s132
      %s133 = sphi 0, %s130
      %s134 = sphi 0, %s133
      %s150 = sphi 0, %s134
    $region4: #{cgd_spca_forward.1} parent=1 // loop_header_branch
      %15 = sbr.rel (%p13) target = $region8
    $region5: #{cgd_spca_forward.1} parent=1 // loop_body
      %s17 = ssub.s32 %s12, 1
      %s18 = ssub.s32 %s12, 2
      %s25 = sadd.s32 1, %s20
      %p26 = scmp.ge.s32.totalorder %s25, 1
      %s27 = scalar_select %p26, 0, %s25
      %s28 = sadd.s32 1, %s19
      %s29 = scalar_select %p26, %s28, %s19
      %p30 = scmp.ge.s32.totalorder %s29, 2
      %s31 = scalar_select %p30, 0, %s29
      %s33 = sadd.s32 %s32, 1
      %p36 = scmp.eq.s32.totalorder %s12, 1
      %p37 = scmp.ne.s32.totalorder %s32, %s34
      %p38 = scmp.eq.s32.totalorder %s12, 0
      %p39 = por %p37, %p38
      %p40 = scmp.ne.s32.totalorder %s32, %s34
      %p41 = scmp.eq.s32.totalorder %s17, 1
      %p42 = por %p40, %p41
      %p43 = scmp.ne.s32.totalorder %s34, %s35
      %p44 = scmp.eq.s32.totalorder %s17, 0
      %p45 = por %p43, %p44
      %p46 = scmp.ne.s32.totalorder %s34, %s35
      %p47 = scmp.eq.s32.totalorder %s18, 1
      %p48 = por %p46, %p47
      %p50 = scmp.ne.s32.totalorder %s35, %s49
      %p51 = scmp.eq.s32.totalorder %s18, 0
      %p52 = por %p50, %p51
      %s53 = ssub.s32 %s19, %s31
      %s54 = ssub.s32 %s20, %s27
      %s55 = sor.u32 %s53, %s54
      %p56 = scmp.eq.s32.totalorder %s55, 0
      %s58 = sadd.s32 %s57, 1
      %s59 = scalar_select %p56, %s57, %s58
      %p62 = pneg %p56
      %p63 = scmp.eq.s32.totalorder %s12, 1
      %p64 = por %p62, %p63
      %p65 = scmp.ne.s32.totalorder %s57, %s60
      %p66 = scmp.eq.s32.totalorder %s12, 0
      %p67 = por %p65, %p66
      %p68 = scmp.ne.s32.totalorder %s57, %s60
      %p69 = scmp.eq.s32.totalorder %s17, 1
      %p70 = por %p68, %p69
      %p71 = scmp.ne.s32.totalorder %s60, %s61
      %p72 = scmp.eq.s32.totalorder %s17, 0
      %p73 = por %p71, %p72
      %p74 = scmp.ne.s32.totalorder %s60, %s61
      %p75 = scmp.eq.s32.totalorder %s18, 1
      %p76 = por %p74, %p75
      %p78 = scmp.ne.s32.totalorder %s61, %s77
      %p79 = scmp.eq.s32.totalorder %s18, 0
      %p80 = por %p78, %p79
      %s82 = sadd.s32 %s81, 1
      %p85 = scmp.eq.s32.totalorder %s12, 1
      %p86 = scmp.ne.s32.totalorder %s81, %s83
      %p87 = scmp.eq.s32.totalorder %s12, 0
      %p88 = por %p86, %p87
      %p89 = scmp.ne.s32.totalorder %s81, %s83
      %p90 = scmp.eq.s32.totalorder %s17, 1
      %p91 = por %p89, %p90
      %p92 = scmp.ne.s32.totalorder %s83, %s84
      %p93 = scmp.eq.s32.totalorder %s17, 0
      %p94 = por %p92, %p93
      %p95 = scmp.ne.s32.totalorder %s83, %s84
      %p96 = scmp.eq.s32.totalorder %s18, 1
      %p97 = por %p95, %p96
      %p99 = scmp.ne.s32.totalorder %s84, %s98
      %p100 = scmp.eq.s32.totalorder %s18, 0
      %p101 = por %p99, %p100
      %s102 = ssub.s32 %s19, %s31
      %p103 = scmp.eq.s32.totalorder %s102, 0
      %s105 = sadd.s32 %s104, 1
      %s106 = scalar_select %p103, %s104, %s105
      %p109 = pneg %p103
      %p110 = scmp.eq.s32.totalorder %s12, 1
      %p111 = por %p109, %p110
      %p112 = scmp.ne.s32.totalorder %s104, %s107
      %p113 = scmp.eq.s32.totalorder %s12, 0
      %p114 = por %p112, %p113
      %p115 = scmp.ne.s32.totalorder %s104, %s107
      %p116 = scmp.eq.s32.totalorder %s17, 1
      %p117 = por %p115, %p116
      %p118 = scmp.ne.s32.totalorder %s107, %s108
      %p119 = scmp.eq.s32.totalorder %s17, 0
      %p120 = por %p118, %p119
      %p121 = scmp.ne.s32.totalorder %s107, %s108
      %p122 = scmp.eq.s32.totalorder %s18, 1
      %p123 = por %p121, %p122
      %p125 = scmp.ne.s32.totalorder %s108, %s124
      %p126 = scmp.eq.s32.totalorder %s18, 0
      %p127 = por %p125, %p126
      %s128 = ssub.s32 %s19, %s31
      %p129 = scmp.eq.s32.totalorder %s128, 0
      %s131 = sadd.s32 %s130, 1
      %s132 = scalar_select %p129, %s130, %s131
      %p135 = pneg %p129
      %p136 = scmp.eq.s32.totalorder %s12, 1
      %p137 = por %p135, %p136
      %p138 = scmp.ne.s32.totalorder %s130, %s133
      %p139 = scmp.eq.s32.totalorder %s12, 0
      %p140 = por %p138, %p139
      %p141 = scmp.ne.s32.totalorder %s130, %s133
      %p142 = scmp.eq.s32.totalorder %s17, 1
      %p143 = por %p141, %p142
      %p144 = scmp.ne.s32.totalorder %s133, %s134
      %p145 = scmp.eq.s32.totalorder %s17, 0
      %p146 = por %p144, %p145
      %p147 = scmp.ne.s32.totalorder %s133, %s134
      %p148 = scmp.eq.s32.totalorder %s18, 1
      %p149 = por %p147, %p148
      %p151 = scmp.ne.s32.totalorder %s134, %s150
      %p152 = scmp.eq.s32.totalorder %s18, 0
      %p153 = por %p151, %p152
      %p154 = scmp.le.s32.totalorder 1, %s12
      %p155 = scmp.lt.s32.totalorder %s12, 3
      %p156 = pnand %p154, %p155
      %p157 = pneg %p156
      // Predicated region
      $region9: #{cgd_spca_forward.1} parent=5 // pred_check
        _
      $region10: #{cgd_spca_forward.1} parent=5 // pred_check_branch
        %159 = sbr.rel (%p156) target = $region12
      $region11: #{cgd_spca_forward.1} parent=5 // pred_region
        %s160 = ssub.s32 %s12, 1
        // Predicated region
        $region13: #{cgd_spca_forward.1} parent=11 // pred_check
          %p161 = pneg %p45
        $region14: #{cgd_spca_forward.1} parent=11 // pred_check_branch
          %163 = sbr.rel (%p161) target = $region16
        $region15: #{cgd_spca_forward.1} parent=11 // pred_region
          %165 = vsyncadd [#allocation4], 0
          %s167 = sshll.u32 %s0, 4
          %s168 = int_to_ptr.vmem [resolvable:$true] %s167
          %170 = dma.vmem_to_smem %s168, 16, [#allocation3], [#allocation4]
        $region16: #{cgd_spca_forward.1} parent=11 // pred_fallthru
          _
        // Predicated region
        $region17: #{cgd_spca_forward.1} parent=11 // pred_check
          %p171 = pneg %p94
        $region18: #{cgd_spca_forward.1} parent=11 // pred_check_branch
          %173 = sbr.rel (%p171) target = $region20
        $region19: #{cgd_spca_forward.1} parent=11 // pred_region
          _
        $region20: #{cgd_spca_forward.1} parent=11 // pred_fallthru
          _
      $region12: #{cgd_spca_forward.1} parent=5 // pred_fallthru
        _
      %p174 = scmp.lt.s32.totalorder %s12, 2
      // Predicated region
      $region21: #{cgd_spca_forward.1} parent=5 // pred_check
        %p175 = pneg %p174
      $region22: #{cgd_spca_forward.1} parent=5 // pred_check_branch
        %177 = sbr.rel (%p175) target = $region24
      $region23: #{cgd_spca_forward.1} parent=5 // pred_region
        // Predicated region
        $region25: #{cgd_spca_forward.1} parent=23 // pred_check
          %p178 = pneg %p67
        $region26: #{cgd_spca_forward.1} parent=23 // pred_check_branch
          %180 = sbr.rel (%p178) target = $region28
        $region27: #{cgd_spca_forward.1} parent=23 // pred_region
          %p181 = scmp.lt.s32.totalorder %s19, 1
          %s182 = scalar_select %p181, %s19, 1
          %p183 = scmp.lt.s32.totalorder %s20, 0
          %s184 = scalar_select %p183, %s20, 0
          %s185 = sadd.s32 %s184, %s182
          %s186 = smul.addr %s185, 8
          %s187 = scalar_lea.vmem %s1, %s186
        $region28: #{cgd_spca_forward.1} parent=23 // pred_fallthru
          _
      $region24: #{cgd_spca_forward.1} parent=5 // pred_fallthru
        _
      %p188 = scmp.le.s32.totalorder 1, %s12
      %p189 = scmp.lt.s32.totalorder %s12, 3
      %p190 = pnand %p188, %p189
      %p191 = pneg %p190
      // Predicated region
      $region29: #{cgd_spca_forward.1} parent=5 // pred_check
        _
      $region30: #{cgd_spca_forward.1} parent=5 // pred_check_branch
        %193 = sbr.rel (%p190) target = $region32
      $region31: #{cgd_spca_forward.1} parent=5 // pred_region
        %s194 = ssub.s32 %s12, 1
        // Predicated region
        $region33: #{cgd_spca_forward.1} parent=31 // pred_check
          %p195 = pneg %p45
        $region34: #{cgd_spca_forward.1} parent=31 // pred_check_branch
          %197 = sbr.rel (%p195) target = $region36
        $region35: #{cgd_spca_forward.1} parent=31 // pred_region
          %199 = dma.done [#allocation4], 16
        $region36: #{cgd_spca_forward.1} parent=31 // pred_fallthru
          _
        %200 = sfence
        %p201 = pneg %p45
        %p202 = pneg %p42
        %p203 = scmp.lt.s32.totalorder %s21, 1
        %s204 = scalar_select %p203, %s21, 1
        %p205 = scmp.lt.s32.totalorder %s22, 0
        %s206 = scalar_select %p205, %s22, 0
        %s207 = sadd.s32 %s206, %s204
        %s208 = smul.addr %s207, 8
        %s209 = scalar_lea.vmem %s1, %s208
        %p210 = pneg %p73
        %p211 = pneg %p70
        %p212 = pneg %p94
        %p213 = pneg %p91
        %p214 = pneg %p120
        %p215 = pneg %p117
        %p216 = scmp.lt.s32.totalorder %s21, 1
        %s217 = scalar_select %p216, %s21, 1
        %s218 = smul.addr %s217, 8
        %s219 = scalar_lea.vmem %s3, %s218
        %p220 = pneg %p146
        %p221 = pneg %p143
        %p222 = scmp.lt.s32.totalorder %s21, 1
        %s223 = scalar_select %p222, %s21, 1
        %s224 = scalar_lea.vmem %s4, %s223
        %p225 = scmp.lt.s32.totalorder %s21, 1
        %s226 = scalar_select %p225, %s21, 1
        %p227 = scmp.lt.s32.totalorder %s22, 0
        %s228 = scalar_select %p227, %s22, 0
        %s229 = sadd.s32 %s228, %s226
        %s230 = smul.addr %s229, 8
        %s231 = scalar_lea.vmem %s1, %s230
        %p232 = scmp.lt.s32.totalorder %s21, 1
        %s233 = scalar_select %p232, %s21, 1
        %s234 = smul.addr %s233, 8
        %s235 = scalar_lea.vmem %s3, %s234
        %p236 = scmp.lt.s32.totalorder %s21, 1
        %s237 = scalar_select %p236, %s21, 1
        %s238 = scalar_lea.vmem %s4, %s237
        %p239 = scmp.eq.s32.totalorder %s22, 0
        // Predicated region
        $region37: #{cgd_spca_forward.1} parent=31 // pred_check
          %p240 = pneg %p239
        $region38: #{cgd_spca_forward.1} parent=31 // pred_check_branch
          %242 = sbr.rel (%p240) target = $region40
        $region39: #{cgd_spca_forward.1} parent=31 // pred_region
          %s243 = sld [smem:[#allocation3]]
          %s244 = sld [smem:[#allocation3 + $0x1]]
          %v245 = vld [vmem:[%s2] sm:$0xff]
          %v246 = vld [vmem:[%s2 + $0x8] sm:$0xff]
          %v247 = vld [vmem:[%s2 + $0x10] sm:$0xff]
          %v248 = vld [vmem:[%s2 + $0x18] sm:$0xff]
          %v249 = vmax.f32 %v245, 0.0
          %v250 = vmax.f32 %v246, 0.0
          %v251 = vmax.f32 %v247, 0.0
          %v252 = vmax.f32 %v248, 0.0
          %vm253 = vcmp.ne.f32.partialorder %v245, %v245
          %vm254 = vcmp.ne.f32.partialorder %v246, %v246
          %vm255 = vcmp.ne.f32.partialorder %v247, %v247
          %vm256 = vcmp.ne.f32.partialorder %v248, %v248
          %v257 = vadd.f32 %v245, 0.0
          %v258 = vadd.f32 %v246, 0.0
          %v259 = vadd.f32 %v247, 0.0
          %v260 = vadd.f32 %v248, 0.0
          %v261 = vand.u32 2147483647, %v245
          %v262 = vand.u32 2147483647, %v246
          %v263 = vand.u32 2147483647, %v247
          %v264 = vand.u32 2147483647, %v248
          %v265 = vsub.f32 0.0, %v261
          %v266 = vsub.f32 0.0, %v262
          %v267 = vsub.f32 0.0, %v263
          %v268 = vsub.f32 0.0, %v264
          %v269 = vmul.f32 %v265, 1.442695
          %v270 = vpow.pop %v269
          %v271 = vmul.f32 %v266, 1.442695
          %v272 = vpow.pop %v271
          %v273 = vmul.f32 %v267, 1.442695
          %v274 = vpow.pop %v273
          %v275 = vmul.f32 %v268, 1.442695
          %v276 = vpow.pop %v275
          %v277 = vadd.f32 %v270, 1.0
          %v278 = vlog2.pop %v277
          %v279 = vmul.f32 %v278, 0.6931472
          %v280 = vmul.f32 -0.5, %v270
          %v281 = vadd.f32 %v280, 1.0
          %v282 = vmul.f32 %v281, %v270
          %v283 = vand.u32 2147483647, %v270
          %vm284 = vcmp.lt.f32.partialorder %v283, 0.0004427343
          %v285 = vsel %vm284, %v282, %v279
          %v286 = vadd.f32 %v272, 1.0
          %v287 = vlog2.pop %v286
          %v288 = vmul.f32 %v287, 0.6931472
          %v289 = vmul.f32 -0.5, %v272
          %v290 = vadd.f32 %v289, 1.0
          %v291 = vmul.f32 %v290, %v272
          %v292 = vand.u32 2147483647, %v272
          %vm293 = vcmp.lt.f32.partialorder %v292, 0.0004427343
          %v294 = vsel %vm293, %v291, %v288
          %v295 = vadd.f32 %v274, 1.0
          %v296 = vlog2.pop %v295
          %v297 = vmul.f32 %v296, 0.6931472
          %v298 = vmul.f32 -0.5, %v274
          %v299 = vadd.f32 %v298, 1.0
          %v300 = vmul.f32 %v299, %v274
          %v301 = vand.u32 2147483647, %v274
          %vm302 = vcmp.lt.f32.partialorder %v301, 0.0004427343
          %v303 = vsel %vm302, %v300, %v297
          %v304 = vadd.f32 %v276, 1.0
          %v305 = vlog2.pop %v304
          %v306 = vmul.f32 %v305, 0.6931472
          %v307 = vmul.f32 -0.5, %v276
          %v308 = vadd.f32 %v307, 1.0
          %v309 = vmul.f32 %v308, %v276
          %v310 = vand.u32 2147483647, %v276
          %vm311 = vcmp.lt.f32.partialorder %v310, 0.0004427343
          %v312 = vsel %vm311, %v309, %v306
          %v313 = vadd.f32 %v249, %v285
          %v314 = vadd.f32 %v250, %v294
          %v315 = vadd.f32 %v251, %v303
          %v316 = vadd.f32 %v252, %v312
          %v317 = vsel %vm253, %v257, %v313
          %v318 = vsel %vm254, %v258, %v314
          %v319 = vsel %vm255, %v259, %v315
          %v320 = vsel %vm256, %v260, %v316
          %325 = vrot.lane.b32.xlu0 %v317, 120
          %v326 = vpop.permute.xlu0 %325
          %327 = vrot.lane.b32.xlu0 %v318, 120
          %v328 = vpop.permute.xlu0 %327
          %329 = vrot.lane.b32.xlu0 %v319, 120
          %v330 = vpop.permute.xlu0 %329
          %331 = vrot.lane.b32.xlu0 %v320, 120
          %v332 = vpop.permute.xlu0 %331
          %v337 = vsub.f32 %v317, %v326
          %v338 = vsub.f32 %v318, %v328
          %v339 = vsub.f32 %v319, %v330
          %v340 = vsub.f32 %v320, %v332
          %vm341 = vcmask 64512
          %342 = vst.msk [vmem:[#allocation2] sm:$0xff] %vm341, %v337
          %343 = vst.msk [vmem:[#allocation2 + $0x8] sm:$0xff] %vm341, %v338
          %344 = vst.msk [vmem:[#allocation2 + $0x10] sm:$0xff] %vm341, %v339
          %345 = vst.msk [vmem:[#allocation2 + $0x18] sm:$0xff] %vm341, %v340
          %vm346 = vcmask 261120
          %347 = vst.msk [vmem:[%s235] sm:$0xff] %vm346, 0.0
          %v348 = vstv %s243
          %v349 = vmul.f32 %v348, %v317
          %v350 = vmul.f32 %v348, %v318
          %v351 = vmul.f32 %v348, %v319
          %v352 = vmul.f32 %v348, %v320
          %v353 = vmul.f32 %v317, %v317
          %v354 = vmul.f32 %v318, %v318
          %v355 = vmul.f32 %v319, %v319
          %v356 = vmul.f32 %v320, %v320
          %v357 = vstv %s244
          %v358 = vmul.f32 %v357, %v353
          %v359 = vmul.f32 %v357, %v354
          %v360 = vmul.f32 %v357, %v355
          %v361 = vmul.f32 %v357, %v356
          %v362 = vadd.f32 %v349, %v358
          %v363 = vadd.f32 %v350, %v359
          %v364 = vadd.f32 %v351, %v360
          %v365 = vadd.f32 %v352, %v361
          %vm366 = vcmask 130048
          %v367 = vsel %vm366, %v362, 0.0
          %v368 = vsel %vm366, %v363, 0.0
          %v369 = vadd.f32 %v367, %v368
          %v370 = vsel %vm366, %v364, 0.0
          %v371 = vadd.f32 %v369, %v370
          %v372 = vsel %vm366, %v365, 0.0
          %v373 = vadd.f32 %v371, %v372
          %374 = vadd.xlane.f32.xlu0 %v373
          %v375 = vpop.xlane.xlu0 %374
          %v376 = vrot.slane %v375, 4
          %v377 = vadd.f32 %v375, %v376
          %v378 = vrot.slane %v377, 2
          %v379 = vadd.f32 %v377, %v378
          %v380 = vrot.slane %v379, 1
          %v381 = vadd.f32 %v379, %v380
          %s382 = vtos %v381
          %v383 = vstv %s382
          %p384 = scmp.eq.s32.totalorder %s21, 0
          %s385 = scalar_select %p384, 1, 0
          %v386 = vstv %s385
          %vm387 = vcmp.eq.s32.totalorder %v386, 1
          %v388 = vsel %vm387, %v383, 0.0
          %vm389 = vcmask 0
          %390 = vst.msk [vmem:[%s238] sm:$0x1] %vm389, %v388
        $region40: #{cgd_spca_forward.1} parent=31 // pred_fallthru
          _
        %v391 = vld [vmem:[%s231] sm:$0xff]
        %v392 = vld [vmem:[#allocation2] sm:$0xff]
        %v393 = vld [vmem:[#allocation2 + $0x8] sm:$0xff]
        %v394 = vld [vmem:[#allocation2 + $0x10] sm:$0xff]
        %v395 = vld [vmem:[#allocation2 + $0x18] sm:$0xff]
        %vm396 = vcmask 261120
        %v398 = vsel %vm396, %v391, 0
        %400 = vmatpush.msra.mxu0 0.0
        %401 = vmatpush.msra.mxu0 0.0
        %402 = vmatpush.msra.mxu0 0.0
        %403 = vmatpush.msra.mxu0 0.0
        %404 = vmatpush.msra.mxu0 0.0
        %405 = vmatpush.msra.mxu0 0.0
        %406 = vmatpush.msra.mxu0 0.0
        %407 = vmatpush.msra.mxu0 0.0
        %408 = vmatpush.msra.mxu0 0.0
        %409 = vmatpush.msra.mxu0 0.0
        %410 = vmatpush.msra.mxu0 0.0
        %411 = vmatpush.msra.mxu0 0.0
        %412 = vmatpush.msra.mxu0 %v395
        %413 = vmatpush.msra.mxu0 %v394
        %414 = vmatpush.msra.mxu0 %v393
        %415 = vmatpush.msra.mxu0 %v392
        %416 = vmatmul.f32.gmra.mxu0 %v398
        %v417 = vpop.f32.mrf.mxu0
        %v418 = vadd.f32 0.0, %v417
        %419 = vdwg.mxu0
        %420 = vxpose.xlu0.b32.start [1/16] %v418, 128
        %421 = vxpose.xlu0.b32.cont [2/16] 0.0, 128
        %422 = vxpose.xlu0.b32.cont [3/16] 0.0, 128
        %423 = vxpose.xlu0.b32.cont [4/16] 0.0, 128
        %424 = vxpose.xlu0.b32.cont [5/16] 0.0, 128
        %425 = vxpose.xlu0.b32.cont [6/16] 0.0, 128
        %426 = vxpose.xlu0.b32.cont [7/16] 0.0, 128
        %427 = vxpose.xlu0.b32.cont [8/16] 0.0, 128
        %428 = vxpose.xlu0.b32.cont [9/16] 0.0, 128
        %429 = vxpose.xlu0.b32.cont [10/16] 0.0, 128
        %430 = vxpose.xlu0.b32.cont [11/16] 0.0, 128
        %431 = vxpose.xlu0.b32.cont [12/16] 0.0, 128
        %432 = vxpose.xlu0.b32.cont [13/16] 0.0, 128
        %433 = vxpose.xlu0.b32.cont [14/16] 0.0, 128
        %434 = vxpose.xlu0.b32.cont [15/16] 0.0, 128
        %435 = vxpose.xlu0.b32.end [16/16] 0.0, 128
        %v436 = vpop.trf.xlu0
        %v437 = vpop.trf.xlu0
        %v438 = vpop.trf.xlu0
        %v439 = vpop.trf.xlu0
        %v440 = vpop.trf.xlu0
        %v441 = vpop.trf.xlu0
        %v442 = vpop.trf.xlu0
        %v443 = vpop.trf.xlu0
        %v444 = vpop.trf.xlu0
        %v445 = vpop.trf.xlu0
        %v446 = vpop.trf.xlu0
        %v447 = vpop.trf.xlu0
        %v448 = vpop.trf.xlu0
        %v449 = vpop.trf.xlu0
        %v450 = vpop.trf.xlu0
        %v451 = vpop.trf.xlu0
        %vm452 = vcmask 64512
        %v454 = vsel %vm452, %v436, 0
        %456 = vmatpush.msra.mxu0 0.0
        %457 = vmatpush.msra.mxu0 0.0
        %458 = vmatpush.msra.mxu0 0.0
        %459 = vmatpush.msra.mxu0 0.0
        %460 = vmatpush.msra.mxu0 0.0
        %461 = vmatpush.msra.mxu0 0.0
        %462 = vmatpush.msra.mxu0 0.0
        %463 = vmatpush.msra.mxu0 0.0
        %464 = vmatpush.msra.mxu0 0.0
        %465 = vmatpush.msra.mxu0 0.0
        %466 = vmatpush.msra.mxu0 0.0
        %467 = vmatpush.msra.mxu0 0.0
        %468 = vmatpush.msra.mxu0 0.0
        %469 = vmatpush.msra.mxu0 0.0
        %470 = vmatpush.msra.mxu0 0.0
        %471 = vmatpush.msra.mxu0 %v391
        %472 = vmatmul.f32.gmra.mxu0 %v454
        %v473 = vpop.f32.mrf.mxu0
        %v474 = vadd.f32 0.0, %v473
        %475 = vdwg.mxu0
        %v476 = vld [vmem:[%s235] sm:$0xff]
        %v477 = vadd.f32 %v476, %v474
        %478 = vst.msk [vmem:[%s235] sm:$0xff] %vm396, %v477
        %v479 = vld [vmem:[%s238] sm:$0x1]
        %v480 = vmul.f32 %v418, %v418
        %v481 = vsel %vm452, %v480, 0.0
        %482 = vadd.xlane.f32.xlu0 %v481
        %v483 = vpop.xlane.xlu0 %482
        %v484 = vrot.slane %v483, 4
        %v485 = vadd.f32 %v483, %v484
        %v486 = vrot.slane %v485, 2
        %v487 = vadd.f32 %v485, %v486
        %v488 = vrot.slane %v487, 1
        %v489 = vadd.f32 %v487, %v488
        %s490 = vtos %v489
        %v491 = vstv %s490
        %v492 = vadd.f32 %v479, %v491
        %vm493 = vcmask 0
        %494 = vst.msk [vmem:[%s238] sm:$0x1] %vm493, %v492
        %p495 = scmp.lt.s32.totalorder %s21, 1
        %s496 = scalar_select %p495, %s21, 1
        %s497 = smul.addr %s496, 8
        %s498 = scalar_lea.vmem %s3, %s497
        %p499 = scmp.lt.s32.totalorder %s21, 1
        %s500 = scalar_select %p499, %s21, 1
        %s501 = scalar_lea.vmem %s4, %s500
        // Predicated region
        $region41: #{cgd_spca_forward.1} parent=31 // pred_check
          %p502 = pneg %p117
        $region42: #{cgd_spca_forward.1} parent=31 // pred_check_branch
          %504 = sbr.rel (%p502) target = $region44
        $region43: #{cgd_spca_forward.1} parent=31 // pred_region
          _
        $region44: #{cgd_spca_forward.1} parent=31 // pred_fallthru
          _
        // Predicated region
        $region45: #{cgd_spca_forward.1} parent=31 // pred_check
          %p505 = pneg %p143
        $region46: #{cgd_spca_forward.1} parent=31 // pred_check_branch
          %507 = sbr.rel (%p505) target = $region48
        $region47: #{cgd_spca_forward.1} parent=31 // pred_region
          _
        $region48: #{cgd_spca_forward.1} parent=31 // pred_fallthru
          _
      $region32: #{cgd_spca_forward.1} parent=5 // pred_fallthru
        _
      %p508 = scmp.le.s32.totalorder 2, %s12
      // Predicated region
      $region49: #{cgd_spca_forward.1} parent=5 // pred_check
        %p509 = pneg %p508
      $region50: #{cgd_spca_forward.1} parent=5 // pred_check_branch
        %511 = sbr.rel (%p509) target = $region52
      $region51: #{cgd_spca_forward.1} parent=5 // pred_region
        %s512 = ssub.s32 %s12, 2
        // Predicated region
        $region53: #{cgd_spca_forward.1} parent=51 // pred_check
          %p513 = pneg %p123
        $region54: #{cgd_spca_forward.1} parent=51 // pred_check_branch
          %515 = sbr.rel (%p513) target = $region56
        $region55: #{cgd_spca_forward.1} parent=51 // pred_region
          %p516 = scmp.lt.s32.totalorder %s23, 1
          %s517 = scalar_select %p516, %s23, 1
          %s518 = smul.addr %s517, 8
          %s519 = scalar_lea.vmem %s3, %s518
        $region56: #{cgd_spca_forward.1} parent=51 // pred_fallthru
          _
        // Predicated region
        $region57: #{cgd_spca_forward.1} parent=51 // pred_check
          %p520 = pneg %p149
        $region58: #{cgd_spca_forward.1} parent=51 // pred_check_branch
          %522 = sbr.rel (%p520) target = $region60
        $region59: #{cgd_spca_forward.1} parent=51 // pred_region
          %p523 = scmp.lt.s32.totalorder %s23, 1
          %s524 = scalar_select %p523, %s23, 1
          %s525 = scalar_lea.vmem %s4, %s524
        $region60: #{cgd_spca_forward.1} parent=51 // pred_fallthru
          _
      $region52: #{cgd_spca_forward.1} parent=5 // pred_fallthru
        _
    $region6: #{cgd_spca_forward.1} parent=1 // loop_footer
      %s16 = sadd.s32 1, %s12
    $region7: #{cgd_spca_forward.1} parent=1 // loop_footer_branch
      %11 = sbr.rel target = $region3
    $region8: #{cgd_spca_forward.1} parent=1 // loop_exit
      _
    %526 = vsyncpa [#allocation4], 1
    %s527 = scalar_lea.sflag [#allocation4], 1
    %528 = vsyncpa %s527, 1

// kernel: reverse
$region0: #{reverse}
  %s0 = inlined_call_operand.vmem [shape: f32[2,8], index: 0, kind: input, shape index: {}]
  %s1 = inlined_call_operand.vmem [shape: f32[2,8], index: 1, kind: output, shape index: {}]
  %v2 = vlaneseq
  %v3 = vsub.s32 7, %v2
  %4 = vset.pattern.permute.xlu0 %v3
  $region1: #{reverse} parent=0
    #allocation0 [shape = 'u8[4096]{0}', space=vmem, size = 0x1000, scoped, tag = 'operand span for operand 0']
    #allocation1 [shape = 'u8[1024]{0}', space=vmem, size = 0x400, scoped, tag = 'packed  for operand 0']
    #allocation2 [shape = 'u8[4096]{0}', space=vmem, size = 0x1000, scoped, tag = 'operand span for operand 1']
    #allocation3 [shape = 'u8[1024]{0}', space=vmem, size = 0x400, scoped, tag = 'packed  for operand 1']
    // Predicated region
    $region2: #{reverse} parent=1 // pred_check
      _
    $region3: #{reverse} parent=1 // pred_check_branch
      %6 = sbr.rel (0) target = $region5
    $region4: #{reverse} parent=1 // pred_region
      // Predicated region
      $region6: #{reverse} parent=4 // pred_check
        _
      $region7: #{reverse} parent=4 // pred_check_branch
        %8 = sbr.rel target = $region9
      $region8: #{reverse} parent=4 // pred_region
        // Predicated region
        $region21: #{reverse} parent=8 // pred_check
          _
        $region22: #{reverse} parent=8 // pred_check_branch
          %24 = sbr.rel (0) target = $region24
        $region23: #{reverse} parent=8 // pred_region
          %s26 = ssub.s32 4, 1
          loop: start=0, step=1, limit=1
          $region25: #{reverse} parent=23 // loop_pre_header
            _
          $region26: #{reverse} parent=23 // loop_header
            %s28 = sphi 0, %s32
            %p29 = scmp.ge.s32.totalorder %s28, 1
            %s33 = sphi %s0, %s0
            %s34 = sphi [#allocation1], [#allocation1]
          $region27: #{reverse} parent=23 // loop_header_branch
            %31 = sbr.rel (%p29) target = $region31
          $region28: #{reverse} parent=23 // loop_body
            %v35 = vld [vmem:[%s33] sm:%s26]
            %36 = vst [vmem:[%s34] sm:%s26] %v35
          $region29: #{reverse} parent=23 // loop_footer
            %s32 = sadd.s32 1, %s28
          $region30: #{reverse} parent=23 // loop_footer_branch
            %27 = sbr.rel target = $region26
          $region31: #{reverse} parent=23 // loop_exit
            _
        $region24: #{reverse} parent=8 // pred_fallthru
          _
      $region9: #{reverse} parent=4 // pred_fallthru
        _
      // Predicated region
      $region10: #{reverse} parent=4 // pred_check
        _
      $region11: #{reverse} parent=4 // pred_check_branch
        %10 = sbr.rel (0) target = $region13
      $region12: #{reverse} parent=4 // pred_region
        %s12 = ssub.s32 4, 1
        loop: start=0, step=1, limit=1
        $region14: #{reverse} parent=12 // loop_pre_header
          _
        $region15: #{reverse} parent=12 // loop_header
          %s14 = sphi 0, %s18
          %p15 = scmp.ge.s32.totalorder %s14, 1
          %s19 = sphi %s0, %s0
          %s20 = sphi [#allocation1], [#allocation1]
        $region16: #{reverse} parent=12 // loop_header_branch
          %17 = sbr.rel (%p15) target = $region20
        $region17: #{reverse} parent=12 // loop_body
          %v21 = vld [vmem:[%s19] sm:%s12]
          %22 = vst [vmem:[%s20] sm:%s12] %v21
        $region18: #{reverse} parent=12 // loop_footer
          %s18 = sadd.s32 1, %s14
        $region19: #{reverse} parent=12 // loop_footer_branch
          %13 = sbr.rel target = $region15
        $region20: #{reverse} parent=12 // loop_exit
          _
      $region13: #{reverse} parent=4 // pred_fallthru
        _
    $region5: #{reverse} parent=1 // pred_fallthru
      _
    %37 = vnop
    %s39 = ssub.s32 4, 1
    %v40 = vld [vmem:[#allocation1] sm:%s39]
    %41 = vst [vmem:[#allocation0] sm:%s39] %v40
    %v42 = vld [vmem:[#allocation0] sm:$0xff]
    %43 = vperm.xlu0 %4, %v42
    %v44 = vpop.permute.xlu0 %43
    %45 = vst [vmem:[#allocation2] sm:$0xff] %v44
    %s47 = ssub.s32 4, 1
    %v48 = vld [vmem:[#allocation2] sm:%s47]
    %s50 = ssub.s32 4, 1
    %51 = vst [vmem:[#allocation3] sm:%s50] %v48
    // Predicated region
    $region32: #{reverse} parent=1 // pred_check
      _
    $region33: #{reverse} parent=1 // pred_check_branch
      %53 = sbr.rel (0) target = $region35
    $region34: #{reverse} parent=1 // pred_region
      // Predicated region
      $region36: #{reverse} parent=34 // pred_check
        _
      $region37: #{reverse} parent=34 // pred_check_branch
        %55 = sbr.rel target = $region39
      $region38: #{reverse} parent=34 // pred_region
        // Predicated region
        $region51: #{reverse} parent=38 // pred_check
          _
        $region52: #{reverse} parent=38 // pred_check_branch
          %71 = sbr.rel (0) target = $region54
        $region53: #{reverse} parent=38 // pred_region
          %s73 = ssub.s32 4, 1
          loop: start=0, step=1, limit=1
          $region55: #{reverse} parent=53 // loop_pre_header
            _
          $region56: #{reverse} parent=53 // loop_header
            %s75 = sphi 0, %s79
            %p76 = scmp.ge.s32.totalorder %s75, 1
            %s80 = sphi [#allocation3], [#allocation3]
            %s81 = sphi %s1, %s1
          $region57: #{reverse} parent=53 // loop_header_branch
            %78 = sbr.rel (%p76) target = $region61
          $region58: #{reverse} parent=53 // loop_body
            %v82 = vld [vmem:[%s80] sm:%s73]
            %83 = vst [vmem:[%s81] sm:%s73] %v82
          $region59: #{reverse} parent=53 // loop_footer
            %s79 = sadd.s32 1, %s75
          $region60: #{reverse} parent=53 // loop_footer_branch
            %74 = sbr.rel target = $region56
          $region61: #{reverse} parent=53 // loop_exit
            _
        $region54: #{reverse} parent=38 // pred_fallthru
          _
      $region39: #{reverse} parent=34 // pred_fallthru
        _
      // Predicated region
      $region40: #{reverse} parent=34 // pred_check
        _
      $region41: #{reverse} parent=34 // pred_check_branch
        %57 = sbr.rel (0) target = $region43
      $region42: #{reverse} parent=34 // pred_region
        %s59 = ssub.s32 4, 1
        loop: start=0, step=1, limit=1
        $region44: #{reverse} parent=42 // loop_pre_header
          _
        $region45: #{reverse} parent=42 // loop_header
          %s61 = sphi 0, %s65
          %p62 = scmp.ge.s32.totalorder %s61, 1
          %s66 = sphi [#allocation3], [#allocation3]
          %s67 = sphi %s1, %s1
        $region46: #{reverse} parent=42 // loop_header_branch
          %64 = sbr.rel (%p62) target = $region50
        $region47: #{reverse} parent=42 // loop_body
          %v68 = vld [vmem:[%s66] sm:%s59]
          %69 = vst [vmem:[%s67] sm:%s59] %v68
        $region48: #{reverse} parent=42 // loop_footer
          %s65 = sadd.s32 1, %s61
        $region49: #{reverse} parent=42 // loop_footer_branch
          %60 = sbr.rel target = $region45
        $region50: #{reverse} parent=42 // loop_exit
          _
      $region43: #{reverse} parent=34 // pred_fallthru
        _
    $region35: #{reverse} parent=1 // pred_fallthru
      _
    %84 = vnop

// kernel: custom-call.24
$region0: #{custom-call.24}
  %s0 = inlined_call_operand.vmem [shape: f32[2,4,4], index: 0, kind: input, shape index: {}]
  %s1 = inlined_call_operand.vmem [shape: f32[2,4,4], index: 1, kind: input, shape index: {}]
  %s2 = inlined_call_operand.vmem [shape: f32[2,4,4], index: 2, kind: input, shape index: {}]
  %s3 = inlined_call_operand.vmem [shape: f32[2,4,4], index: 3, kind: input, shape index: {}]
  %s4 = inlined_call_operand.vmem [shape: f32[2,4], index: 4, kind: output, shape index: {0}]
  %s5 = inlined_call_operand.vmem [shape: f32[2,4], index: 5, kind: output, shape index: {1}]
  %s6 = inlined_call_operand.hbm [shape: f32[2,4,4], index: 6, kind: output, shape index: {2}]
  %s7 = inlined_call_operand.hbm [shape: f32[2,4,4], index: 7, kind: output, shape index: {3}]
  %s8 = inlined_call_operand.hbm [shape: f32[2,4,4], index: 8, kind: output, shape index: {4}]
  %s9 = inlined_call_operand.hbm [shape: f32[2,4,4], index: 9, kind: output, shape index: {5}]
  %10 = xla_tuple %s4, %s5, %s6, %s7, %s8, %s9
  $region1: #{custom-call.24} parent=0
    #allocation0 [shape = 'u8[4096]{0}', space=vmem, size = 0x1000, scoped, tag = 'operand span for operand 0']
    #allocation1 [shape = 'u8[4096]{0}', space=vmem, size = 0x1000, scoped, tag = 'packed  for operand 0']
    #allocation2 [shape = 'u8[4096]{0}', space=vmem, size = 0x1000, scoped, tag = 'operand span for operand 1']
    #allocation3 [shape = 'u8[4096]{0}', space=vmem, size = 0x1000, scoped, tag = 'packed  for operand 1']
    #allocation4 [shape = 'u8[4096]{0}', space=vmem, size = 0x1000, scoped, tag = 'operand span for operand 2']
    #allocation5 [shape = 'u8[4096]{0}', space=vmem, size = 0x1000, scoped, tag = 'packed  for operand 2']
    #allocation6 [shape = 'u8[4096]{0}', space=vmem, size = 0x1000, scoped, tag = 'operand span for operand 3']
    #allocation7 [shape = 'u8[4096]{0}', space=vmem, size = 0x1000, scoped, tag = 'packed  for operand 3']
    #allocation8 [shape = 'u8[4096]{0}', space=vmem, size = 0x1000, scoped, tag = 'operand span for operand 4']
    #allocation9 [shape = 'u8[2048]{0}', space=vmem, size = 0x800, scoped, tag = 'packed  for operand 4']
    #allocation10 [shape = 'u8[4096]{0}', space=vmem, size = 0x1000, scoped, tag = 'operand span for operand 5']
    #allocation11 [shape = 'u8[2048]{0}', space=vmem, size = 0x800, scoped, tag = 'packed  for operand 5']
    #allocation12 [shape = 'u8[4096]{0}', space=vmem, size = 0x1000, scoped, tag = 'operand span for operand 6']
    #allocation13 [shape = 'u8[4096]{0}', space=vmem, size = 0x1000, scoped, tag = 'packed  for operand 6']
    #allocation14 [shape = 's32[2]{0}', space=sflag, size = 0x8, scoped, tag = 'scoped memory for custom-call.24']
    #allocation15 [shape = 'u8[4096]{0}', space=vmem, size = 0x1000, scoped, tag = 'operand span for operand 7']
    #allocation16 [shape = 'u8[4096]{0}', space=vmem, size = 0x1000, scoped, tag = 'packed  for operand 7']
    #allocation17 [shape = 's32[2]{0}', space=sflag, size = 0x8, scoped, tag = 'scoped memory for custom-call.24']
    #allocation18 [shape = 'u8[4096]{0}', space=vmem, size = 0x1000, scoped, tag = 'operand span for operand 8']
    #allocation19 [shape = 'u8[4096]{0}', space=vmem, size = 0x1000, scoped, tag = 'packed  for operand 8']
    #allocation20 [shape = 'u8[4096]{0}', space=vmem, size = 0x1000, scoped, tag = 'operand span for operand 9']
    #allocation21 [shape = 'u8[4096]{0}', space=vmem, size = 0x1000, scoped, tag = 'packed  for operand 9']
    #allocation22 [shape = 's32[2]{0}', space=sflag, size = 0x8, scoped, tag = 'scoped memory for custom-call.24']
    %11 = vsyncpa [#allocation14], 0
    %s12 = scalar_lea.sflag [#allocation14], 1
    %13 = vsyncpa %s12, 0
    %14 = vsyncpa [#allocation17], 0
    %s15 = scalar_lea.sflag [#allocation17], 1
    %16 = vsyncpa %s15, 0
    %17 = vsyncpa [#allocation22], 0
    %s18 = scalar_lea.sflag [#allocation22], 1
    %19 = vsyncpa %s18, 0
    loop: start=0, step=1, limit=4
    $region2: #{custom-call.24} parent=1 // loop_pre_header
      _
    $region3: #{custom-call.24} parent=1 // loop_header
      %s21 = sphi 0, %s25
      %p22 = scmp.ge.s32.totalorder %s21, 4
      %s33 = sphi 0, %s35
      %s36 = sphi 0, %s33
      %s37 = sphi 0, %s36
      %s53 = sphi 0, %s37
      %s61 = sphi 0, %s63
      %s64 = sphi 0, %s61
      %s65 = sphi 0, %s64
      %s81 = sphi 0, %s65
    $region4: #{custom-call.24} parent=1 // loop_header_branch
      %24 = sbr.rel (%p22) target = $region8
    $region5: #{custom-call.24} parent=1 // loop_body
      %s26 = ssub.s32 %s21, 1
      %s27 = ssub.s32 %s21, 2
      %s28 = sadd.s32 %s21, 1
      %s29 = sshrl.u32 %s21, 3
      %s30 = sshrl.u32 %s28, 3
      %s31 = ssub.s32 %s29, %s30
      %p32 = scmp.eq.s32.totalorder %s31, 0
      %s34 = sadd.s32 %s33, 1
      %s35 = scalar_select %p32, %s33, %s34
      %p38 = pneg %p32
      %p39 = scmp.eq.s32.totalorder %s21, 1
      %p40 = por %p38, %p39
      %p41 = scmp.ne.s32.totalorder %s33, %s36
      %p42 = scmp.eq.s32.totalorder %s21, 0
      %p43 = por %p41, %p42
      %p44 = scmp.ne.s32.totalorder %s33, %s36
      %p45 = scmp.eq.s32.totalorder %s26, 1
      %p46 = por %p44, %p45
      %p47 = scmp.ne.s32.totalorder %s36, %s37
      %p48 = scmp.eq.s32.totalorder %s26, 0
      %p49 = por %p47, %p48
      %p50 = scmp.ne.s32.totalorder %s36, %s37
      %p51 = scmp.eq.s32.totalorder %s27, 1
      %p52 = por %p50, %p51
      %p54 = scmp.ne.s32.totalorder %s37, %s53
      %p55 = scmp.eq.s32.totalorder %s27, 0
      %p56 = por %p54, %p55
      %s57 = sshrl.u32 %s21, 3
      %s58 = sshrl.u32 %s28, 3
      %s59 = ssub.s32 %s57, %s58
      %p60 = scmp.eq.s32.totalorder %s59, 0
      %s62 = sadd.s32 %s61, 1
      %s63 = scalar_select %p60, %s61, %s62
      %p66 = pneg %p60
      %p67 = scmp.eq.s32.totalorder %s21, 1
      %p68 = por %p66, %p67
      %p69 = scmp.ne.s32.totalorder %s61, %s64
      %p70 = scmp.eq.s32.totalorder %s21, 0
      %p71 = por %p69, %p70
      %p72 = scmp.ne.s32.totalorder %s61, %s64
      %p73 = scmp.eq.s32.totalorder %s26, 1
      %p74 = por %p72, %p73
      %p75 = scmp.ne.s32.totalorder %s64, %s65
      %p76 = scmp.eq.s32.totalorder %s26, 0
      %p77 = por %p75, %p76
      %p78 = scmp.ne.s32.totalorder %s64, %s65
      %p79 = scmp.eq.s32.totalorder %s27, 1
      %p80 = por %p78, %p79
      %p82 = scmp.ne.s32.totalorder %s65, %s81
      %p83 = scmp.eq.s32.totalorder %s27, 0
      %p84 = por %p82, %p83
      %p85 = scmp.le.s32.totalorder 1, %s21
      %p86 = scmp.lt.s32.totalorder %s21, 3
      %p87 = pnand %p85, %p86
      %p88 = pneg %p87
      // Predicated region
      $region9: #{custom-call.24} parent=5 // pred_check
        _
      $region10: #{custom-call.24} parent=5 // pred_check_branch
        %90 = sbr.rel (%p87) target = $region12
      $region11: #{custom-call.24} parent=5 // pred_region
        %s91 = ssub.s32 %s21, 1
      $region12: #{custom-call.24} parent=5 // pred_fallthru
        _
      %p92 = scmp.lt.s32.totalorder %s21, 2
      // Predicated region
      $region13: #{custom-call.24} parent=5 // pred_check
        %p93 = pneg %p92
      $region14: #{custom-call.24} parent=5 // pred_check_branch
        %95 = sbr.rel (%p93) target = $region16
      $region15: #{custom-call.24} parent=5 // pred_region
        %s96 = sand.u32 %s21, 1
        %s97 = sand.u32 %s21, 1
        %s98 = smul.addr %s97, 4
        %s99 = scalar_lea.vmem [#allocation1], %s98
        %s100 = smul.addr %s21, 4
        %s101 = scalar_lea.vmem %s0, %s100
        // Predicated region
        $region17: #{custom-call.24} parent=15 // pred_check
          _
        $region18: #{custom-call.24} parent=15 // pred_check_branch
          %103 = sbr.rel (0) target = $region20
        $region19: #{custom-call.24} parent=15 // pred_region
          // Predicated region
          $region21: #{custom-call.24} parent=19 // pred_check
            _
          $region22: #{custom-call.24} parent=19 // pred_check_branch
            %105 = sbr.rel target = $region24
          $region23: #{custom-call.24} parent=19 // pred_region
            // Predicated region
            $region36: #{custom-call.24} parent=23 // pred_check
              _
            $region37: #{custom-call.24} parent=23 // pred_check_branch
              %121 = sbr.rel (0) target = $region39
            $region38: #{custom-call.24} parent=23 // pred_region
              %s123 = ssub.s32 16, 1
              loop: start=0, step=1, limit=1
              $region40: #{custom-call.24} parent=38 // loop_pre_header
                _
              $region41: #{custom-call.24} parent=38 // loop_header
                %s125 = sphi 0, %s129
                %p126 = scmp.ge.s32.totalorder %s125, 1
                %s130 = sphi %s101, %s101
                %s131 = sphi %s99, %s99
              $region42: #{custom-call.24} parent=38 // loop_header_branch
                %128 = sbr.rel (%p126) target = $region46
              $region43: #{custom-call.24} parent=38 // loop_body
                %v132 = vld [vmem:[%s130] sm:%s123]
                %133 = vst [vmem:[%s131] sm:%s123] %v132
              $region44: #{custom-call.24} parent=38 // loop_footer
                %s129 = sadd.s32 1, %s125
              $region45: #{custom-call.24} parent=38 // loop_footer_branch
                %124 = sbr.rel target = $region41
              $region46: #{custom-call.24} parent=38 // loop_exit
                _
            $region39: #{custom-call.24} parent=23 // pred_fallthru
              _
          $region24: #{custom-call.24} parent=19 // pred_fallthru
            _
          // Predicated region
          $region25: #{custom-call.24} parent=19 // pred_check
            _
          $region26: #{custom-call.24} parent=19 // pred_check_branch
            %107 = sbr.rel (0) target = $region28
          $region27: #{custom-call.24} parent=19 // pred_region
            %s109 = ssub.s32 16, 1
            loop: start=0, step=1, limit=1
            $region29: #{custom-call.24} parent=27 // loop_pre_header
              _
            $region30: #{custom-call.24} parent=27 // loop_header
              %s111 = sphi 0, %s115
              %p112 = scmp.ge.s32.totalorder %s111, 1
              %s116 = sphi %s101, %s101
              %s117 = sphi %s99, %s99
            $region31: #{custom-call.24} parent=27 // loop_header_branch
              %114 = sbr.rel (%p112) target = $region35
            $region32: #{custom-call.24} parent=27 // loop_body
              %v118 = vld [vmem:[%s116] sm:%s109]
              %119 = vst [vmem:[%s117] sm:%s109] %v118
            $region33: #{custom-call.24} parent=27 // loop_footer
              %s115 = sadd.s32 1, %s111
            $region34: #{custom-call.24} parent=27 // loop_footer_branch
              %110 = sbr.rel target = $region30
            $region35: #{custom-call.24} parent=27 // loop_exit
              _
          $region28: #{custom-call.24} parent=19 // pred_fallthru
            _
        $region20: #{custom-call.24} parent=15 // pred_fallthru
          _
        %134 = vnop
        %s135 = sand.u32 %s21, 1
        %s136 = sand.u32 %s21, 1
        %s137 = smul.addr %s136, 4
        %s138 = scalar_lea.vmem [#allocation3], %s137
        %s139 = smul.addr %s21, 4
        %s140 = scalar_lea.vmem %s1, %s139
        // Predicated region
        $region47: #{custom-call.24} parent=15 // pred_check
          _
        $region48: #{custom-call.24} parent=15 // pred_check_branch
          %142 = sbr.rel (0) target = $region50
        $region49: #{custom-call.24} parent=15 // pred_region
          // Predicated region
          $region51: #{custom-call.24} parent=49 // pred_check
            _
          $region52: #{custom-call.24} parent=49 // pred_check_branch
            %144 = sbr.rel target = $region54
          $region53: #{custom-call.24} parent=49 // pred_region
            // Predicated region
            $region66: #{custom-call.24} parent=53 // pred_check
              _
            $region67: #{custom-call.24} parent=53 // pred_check_branch
              %160 = sbr.rel (0) target = $region69
            $region68: #{custom-call.24} parent=53 // pred_region
              %s162 = ssub.s32 16, 1
              loop: start=0, step=1, limit=1
              $region70: #{custom-call.24} parent=68 // loop_pre_header
                _
              $region71: #{custom-call.24} parent=68 // loop_header
                %s164 = sphi 0, %s168
                %p165 = scmp.ge.s32.totalorder %s164, 1
                %s169 = sphi %s140, %s140
                %s170 = sphi %s138, %s138
              $region72: #{custom-call.24} parent=68 // loop_header_branch
                %167 = sbr.rel (%p165) target = $region76
              $region73: #{custom-call.24} parent=68 // loop_body
                %v171 = vld [vmem:[%s169] sm:%s162]
                %172 = vst [vmem:[%s170] sm:%s162] %v171
              $region74: #{custom-call.24} parent=68 // loop_footer
                %s168 = sadd.s32 1, %s164
              $region75: #{custom-call.24} parent=68 // loop_footer_branch
                %163 = sbr.rel target = $region71
              $region76: #{custom-call.24} parent=68 // loop_exit
                _
            $region69: #{custom-call.24} parent=53 // pred_fallthru
              _
          $region54: #{custom-call.24} parent=49 // pred_fallthru
            _
          // Predicated region
          $region55: #{custom-call.24} parent=49 // pred_check
            _
          $region56: #{custom-call.24} parent=49 // pred_check_branch
            %146 = sbr.rel (0) target = $region58
          $region57: #{custom-call.24} parent=49 // pred_region
            %s148 = ssub.s32 16, 1
            loop: start=0, step=1, limit=1
            $region59: #{custom-call.24} parent=57 // loop_pre_header
              _
            $region60: #{custom-call.24} parent=57 // loop_header
              %s150 = sphi 0, %s154
              %p151 = scmp.ge.s32.totalorder %s150, 1
              %s155 = sphi %s140, %s140
              %s156 = sphi %s138, %s138
            $region61: #{custom-call.24} parent=57 // loop_header_branch
              %153 = sbr.rel (%p151) target = $region65
            $region62: #{custom-call.24} parent=57 // loop_body
              %v157 = vld [vmem:[%s155] sm:%s148]
              %158 = vst [vmem:[%s156] sm:%s148] %v157
            $region63: #{custom-call.24} parent=57 // loop_footer
              %s154 = sadd.s32 1, %s150
            $region64: #{custom-call.24} parent=57 // loop_footer_branch
              %149 = sbr.rel target = $region60
            $region65: #{custom-call.24} parent=57 // loop_exit
              _
          $region58: #{custom-call.24} parent=49 // pred_fallthru
            _
        $region50: #{custom-call.24} parent=15 // pred_fallthru
          _
        %173 = vnop
        %s174 = sand.u32 %s21, 1
        %s175 = sand.u32 %s21, 1
        %s176 = smul.addr %s175, 4
        %s177 = scalar_lea.vmem [#allocation5], %s176
        %s178 = smul.addr %s21, 4
        %s179 = scalar_lea.vmem %s2, %s178
        // Predicated region
        $region77: #{custom-call.24} parent=15 // pred_check
          _
        $region78: #{custom-call.24} parent=15 // pred_check_branch
          %181 = sbr.rel (0) target = $region80
        $region79: #{custom-call.24} parent=15 // pred_region
          // Predicated region
          $region81: #{custom-call.24} parent=79 // pred_check
            _
          $region82: #{custom-call.24} parent=79 // pred_check_branch
            %183 = sbr.rel target = $region84
          $region83: #{custom-call.24} parent=79 // pred_region
            // Predicated region
            $region96: #{custom-call.24} parent=83 // pred_check
              _
            $region97: #{custom-call.24} parent=83 // pred_check_branch
              %199 = sbr.rel (0) target = $region99
            $region98: #{custom-call.24} parent=83 // pred_region
              %s201 = ssub.s32 16, 1
              loop: start=0, step=1, limit=1
              $region100: #{custom-call.24} parent=98 // loop_pre_header
                _
              $region101: #{custom-call.24} parent=98 // loop_header
                %s203 = sphi 0, %s207
                %p204 = scmp.ge.s32.totalorder %s203, 1
                %s208 = sphi %s179, %s179
                %s209 = sphi %s177, %s177
              $region102: #{custom-call.24} parent=98 // loop_header_branch
                %206 = sbr.rel (%p204) target = $region106
              $region103: #{custom-call.24} parent=98 // loop_body
                %v210 = vld [vmem:[%s208] sm:%s201]
                %211 = vst [vmem:[%s209] sm:%s201] %v210
              $region104: #{custom-call.24} parent=98 // loop_footer
                %s207 = sadd.s32 1, %s203
              $region105: #{custom-call.24} parent=98 // loop_footer_branch
                %202 = sbr.rel target = $region101
              $region106: #{custom-call.24} parent=98 // loop_exit
                _
            $region99: #{custom-call.24} parent=83 // pred_fallthru
              _
          $region84: #{custom-call.24} parent=79 // pred_fallthru
            _
          // Predicated region
          $region85: #{custom-call.24} parent=79 // pred_check
            _
          $region86: #{custom-call.24} parent=79 // pred_check_branch
            %185 = sbr.rel (0) target = $region88
          $region87: #{custom-call.24} parent=79 // pred_region
            %s187 = ssub.s32 16, 1
            loop: start=0, step=1, limit=1
            $region89: #{custom-call.24} parent=87 // loop_pre_header
              _
            $region90: #{custom-call.24} parent=87 // loop_header
              %s189 = sphi 0, %s193
              %p190 = scmp.ge.s32.totalorder %s189, 1
              %s194 = sphi %s179, %s179
              %s195 = sphi %s177, %s177
            $region91: #{custom-call.24} parent=87 // loop_header_branch
              %192 = sbr.rel (%p190) target = $region95
            $region92: #{custom-call.24} parent=87 // loop_body
              %v196 = vld [vmem:[%s194] sm:%s187]
              %197 = vst [vmem:[%s195] sm:%s187] %v196
            $region93: #{custom-call.24} parent=87 // loop_footer
              %s193 = sadd.s32 1, %s189
            $region94: #{custom-call.24} parent=87 // loop_footer_branch
              %188 = sbr.rel target = $region90
            $region95: #{custom-call.24} parent=87 // loop_exit
              _
          $region88: #{custom-call.24} parent=79 // pred_fallthru
            _
        $region80: #{custom-call.24} parent=15 // pred_fallthru
          _
        %212 = vnop
        %s213 = sand.u32 %s21, 1
        %s214 = sand.u32 %s21, 1
        %s215 = smul.addr %s214, 4
        %s216 = scalar_lea.vmem [#allocation7], %s215
        %s217 = smul.addr %s21, 4
        %s218 = scalar_lea.vmem %s3, %s217
        // Predicated region
        $region107: #{custom-call.24} parent=15 // pred_check
          _
        $region108: #{custom-call.24} parent=15 // pred_check_branch
          %220 = sbr.rel (0) target = $region110
        $region109: #{custom-call.24} parent=15 // pred_region
          // Predicated region
          $region111: #{custom-call.24} parent=109 // pred_check
            _
          $region112: #{custom-call.24} parent=109 // pred_check_branch
            %222 = sbr.rel target = $region114
          $region113: #{custom-call.24} parent=109 // pred_region
            // Predicated region
            $region126: #{custom-call.24} parent=113 // pred_check
              _
            $region127: #{custom-call.24} parent=113 // pred_check_branch
              %238 = sbr.rel (0) target = $region129
            $region128: #{custom-call.24} parent=113 // pred_region
              %s240 = ssub.s32 16, 1
              loop: start=0, step=1, limit=1
              $region130: #{custom-call.24} parent=128 // loop_pre_header
                _
              $region131: #{custom-call.24} parent=128 // loop_header
                %s242 = sphi 0, %s246
                %p243 = scmp.ge.s32.totalorder %s242, 1
                %s247 = sphi %s218, %s218
                %s248 = sphi %s216, %s216
              $region132: #{custom-call.24} parent=128 // loop_header_branch
                %245 = sbr.rel (%p243) target = $region136
              $region133: #{custom-call.24} parent=128 // loop_body
                %v249 = vld [vmem:[%s247] sm:%s240]
                %250 = vst [vmem:[%s248] sm:%s240] %v249
              $region134: #{custom-call.24} parent=128 // loop_footer
                %s246 = sadd.s32 1, %s242
              $region135: #{custom-call.24} parent=128 // loop_footer_branch
                %241 = sbr.rel target = $region131
              $region136: #{custom-call.24} parent=128 // loop_exit
                _
            $region129: #{custom-call.24} parent=113 // pred_fallthru
              _
          $region114: #{custom-call.24} parent=109 // pred_fallthru
            _
          // Predicated region
          $region115: #{custom-call.24} parent=109 // pred_check
            _
          $region116: #{custom-call.24} parent=109 // pred_check_branch
            %224 = sbr.rel (0) target = $region118
          $region117: #{custom-call.24} parent=109 // pred_region
            %s226 = ssub.s32 16, 1
            loop: start=0, step=1, limit=1
            $region119: #{custom-call.24} parent=117 // loop_pre_header
              _
            $region120: #{custom-call.24} parent=117 // loop_header
              %s228 = sphi 0, %s232
              %p229 = scmp.ge.s32.totalorder %s228, 1
              %s233 = sphi %s218, %s218
              %s234 = sphi %s216, %s216
            $region121: #{custom-call.24} parent=117 // loop_header_branch
              %231 = sbr.rel (%p229) target = $region125
            $region122: #{custom-call.24} parent=117 // loop_body
              %v235 = vld [vmem:[%s233] sm:%s226]
              %236 = vst [vmem:[%s234] sm:%s226] %v235
            $region123: #{custom-call.24} parent=117 // loop_footer
              %s232 = sadd.s32 1, %s228
            $region124: #{custom-call.24} parent=117 // loop_footer_branch
              %227 = sbr.rel target = $region120
            $region125: #{custom-call.24} parent=117 // loop_exit
              _
          $region118: #{custom-call.24} parent=109 // pred_fallthru
            _
        $region110: #{custom-call.24} parent=15 // pred_fallthru
          _
        %251 = vnop
      $region16: #{custom-call.24} parent=5 // pred_fallthru
        _
      %p252 = scmp.le.s32.totalorder 1, %s21
      %p253 = scmp.lt.s32.totalorder %s21, 3
      %p254 = pnand %p252, %p253
      %p255 = pneg %p254
      // Predicated region
      $region137: #{custom-call.24} parent=5 // pred_check
        _
      $region138: #{custom-call.24} parent=5 // pred_check_branch
        %257 = sbr.rel (%p254) target = $region140
      $region139: #{custom-call.24} parent=5 // pred_region
        #allocation23 [shape = 'f32[4,4]{1,0}', space=vmem, size = 0x1000, scoped, tag = 'a top-left matrix']
        #allocation24 [shape = 'f32[4,4]{1,0}', space=vmem, size = 0x1000, scoped, tag = 'a top-right matrix']
        #allocation25 [shape = 'f32[4,4]{1,0}', space=vmem, size = 0x1000, scoped, tag = 'a bottom-left matrix']
        #allocation26 [shape = 'f32[4,4]{1,0}', space=vmem, size = 0x1000, scoped, tag = 'a bottom-right matrix']
        %s258 = ssub.s32 %s21, 1
        %s259 = sand.u32 %s26, 1
        %s260 = sand.u32 %s26, 1
        %s261 = smul.addr %s260, 4
        %s262 = scalar_lea.vmem [#allocation1], %s261
        %s263 = sand.u32 %s26, 1
        %s264 = sand.u32 %s26, 1
        %s265 = smul.addr %s264, 4
        %s266 = scalar_lea.vmem [#allocation3], %s265
        %s267 = sand.u32 %s26, 1
        %s268 = sand.u32 %s26, 1
        %s269 = smul.addr %s268, 4
        %s270 = scalar_lea.vmem [#allocation5], %s269
        %s271 = sand.u32 %s26, 1
        %s272 = sand.u32 %s26, 1
        %s273 = smul.addr %s272, 4
        %s274 = scalar_lea.vmem [#allocation7], %s273
        %s275 = sand.u32 %s26, 1
        %s276 = sand.u32 %s26, 1
        %s277 = smul.addr %s276, 4
        %s278 = scalar_lea.vmem [#allocation1], %s277
        %s279 = sand.u32 %s26, 1
        %s280 = sand.u32 %s26, 1
        %s281 = smul.addr %s280, 4
        %s282 = scalar_lea.vmem [#allocation3], %s281
        %s283 = sand.u32 %s26, 1
        %s284 = sand.u32 %s26, 1
        %s285 = smul.addr %s284, 4
        %s286 = scalar_lea.vmem [#allocation5], %s285
        %s287 = sand.u32 %s26, 1
        %s288 = sand.u32 %s26, 1
        %s289 = smul.addr %s288, 4
        %s290 = scalar_lea.vmem [#allocation7], %s289
        %p291 = pneg %p49
        %p292 = pneg %p46
        %s293 = sand.u32 %s36, 1
        %s294 = sand.u32 %s36, 1
        %s295 = smul.addr %s294, 2
        %s296 = scalar_lea.vmem [#allocation9], %s295
        %p297 = pneg %p77
        %p298 = pneg %p74
        %s299 = sand.u32 %s64, 1
        %s300 = sand.u32 %s64, 1
        %s301 = smul.addr %s300, 2
        %s302 = scalar_lea.vmem [#allocation11], %s301
        %s303 = sand.u32 %s26, 1
        %s304 = scalar_lea.sflag [#allocation14], %s303
        %s305 = sand.u32 %s26, 1
        %s306 = smul.addr %s305, 4
        %s307 = scalar_lea.vmem [#allocation13], %s306
        %s308 = sand.u32 %s26, 1
        %s309 = scalar_lea.sflag [#allocation17], %s308
        %s310 = sand.u32 %s26, 1
        %s311 = smul.addr %s310, 4
        %s312 = scalar_lea.vmem [#allocation16], %s311
        %s313 = sand.u32 %s26, 1
        %s314 = scalar_lea.sflag [#allocation17], %s313
        %s315 = sand.u32 %s26, 1
        %s316 = smul.addr %s315, 4
        %s317 = scalar_lea.vmem [#allocation19], %s316
        %s318 = sand.u32 %s26, 1
        %s319 = scalar_lea.sflag [#allocation22], %s318
        %s320 = sand.u32 %s26, 1
        %s321 = smul.addr %s320, 4
        %s322 = scalar_lea.vmem [#allocation21], %s321
        %s324 = ssub.s32 16, 1
        %v325 = vld [vmem:[%s278] sm:%s324]
        %326 = vst [vmem:[#allocation0] sm:%s324] %v325
        %s328 = ssub.s32 16, 1
        %v329 = vld [vmem:[%s282] sm:%s328]
        %330 = vst [vmem:[#allocation2] sm:%s328] %v329
        %s332 = ssub.s32 16, 1
        %v333 = vld [vmem:[%s286] sm:%s332]
        %334 = vst [vmem:[#allocation4] sm:%s332] %v333
        %s336 = ssub.s32 16, 1
        %v337 = vld [vmem:[%s290] sm:%s336]
        %338 = vst [vmem:[#allocation6] sm:%s336] %v337
        %s339 = sshrl.u32 %s26, 3
        %s340 = sshrl.u32 %s26, 3
        %s341 = smov [#allocation23]
        %v342 = vld [vmem:[#allocation0] sm:$0xff]
        %343 = vst [vmem:[%s341] sm:$0xff] %v342
        %s344 = smov [#allocation24]
        %v345 = vld [vmem:[#allocation2] sm:$0xff]
        %346 = vst [vmem:[%s344] sm:$0xff] %v345
        %s347 = smov [#allocation25]
        %v348 = vld [vmem:[#allocation4] sm:$0xff]
        %349 = vst [vmem:[%s347] sm:$0xff] %v348
        %s350 = smov [#allocation26]
        %v351 = vld [vmem:[#allocation6] sm:$0xff]
        %352 = vst [vmem:[%s350] sm:$0xff] %v351
        %353 = vst [vmem:[#allocation12] sm:$0xff] 0.0
        %354 = vst [vmem:[#allocation15] sm:$0xff] 0.0
        %355 = vst [vmem:[#allocation18] sm:$0xff] 0.0
        %356 = vst [vmem:[#allocation20] sm:$0xff] 0.0
        %s357 = smov [#allocation12]
        %v358 = vlaneseq
        %v359 = vand.u32 %v358, 127
        %v360 = vmov %v359
        %v361 = vlaneseq
        %v362 = vshrl.u32 %v361, 7
        %v363 = vmov %v362
        %v364 = vld [vmem:[%s357] sm:$0xf]
        %vm367 = vcmp.eq.s32.totalorder %v363, %v360
        %v368 = vsel %vm367, 1.0, %v364
        %369 = vst [vmem:[%s357] sm:$0xf] %v368
        %s370 = smov [#allocation20]
        %v371 = vlaneseq
        %v372 = vand.u32 %v371, 127
        %v373 = vmov %v372
        %v374 = vlaneseq
        %v375 = vshrl.u32 %v374, 7
        %v376 = vmov %v375
        %v377 = vld [vmem:[%s370] sm:$0xf]
        %vm380 = vcmp.eq.s32.totalorder %v376, %v373
        %v381 = vsel %vm380, 1.0, %v377
        %382 = vst [vmem:[%s370] sm:$0xf] %v381
        // While loop
        $region141: #{custom-call.24} parent=139 // loop_pre_header
          _
        $region142: #{custom-call.24} parent=139 // loop_header
          %s384 = sphi 0, %s966
          %v385 = vlaneseq
          %v386 = vand.u32 %v385, 127
          %v387 = vmov %v386
          %v388 = vlaneseq
          %v389 = vshrl.u32 %v388, 7
          %v390 = vmov %v389
          %s391 = smov [#allocation23]
          %v392 = vlaneseq
          %v393 = vand.u32 %v392, 127
          %vm394 = vcmp.ge.s32.totalorder %v393, 0
          %vm395 = vcmp.lt.s32.totalorder %v393, 4
          %vm396 = vmand %vm394, %vm395
          %v397 = vld [vmem:[%s391] sm:$0xf]
          %v398 = vsel %vm396, %v397, 0.0
          %v399 = vmul.f32 %v398, %v398
          %vm402 = vcmp.eq.s32.totalorder %v390, %v387
          %v403 = vsel %vm402, 0.0, %v399
          %v404 = vlaneseq
          %v405 = vand.u32 %v404, 127
          %v406 = vmov %v405
          %v407 = vlaneseq
          %v408 = vshrl.u32 %v407, 7
          %v409 = vmov %v408
          %s410 = smov [#allocation24]
          %v411 = vlaneseq
          %v412 = vand.u32 %v411, 127
          %vm413 = vcmp.ge.s32.totalorder %v412, 0
          %vm414 = vcmp.lt.s32.totalorder %v412, 4
          %vm415 = vmand %vm413, %vm414
          %v416 = vld [vmem:[%s410] sm:$0xf]
          %v417 = vsel %vm415, %v416, 0.0
          %v418 = vmul.f32 %v417, %v417
          %v419 = vadd.f32 %v403, %v418
          %v420 = vadd.f32 %v399, %v418
          %v421 = vlaneseq
          %v422 = vand.u32 %v421, 127
          %v423 = vmov %v422
          %v424 = vlaneseq
          %v425 = vshrl.u32 %v424, 7
          %v426 = vmov %v425
          %s427 = smov [#allocation25]
          %v428 = vlaneseq
          %v429 = vand.u32 %v428, 127
          %vm430 = vcmp.ge.s32.totalorder %v429, 0
          %vm431 = vcmp.lt.s32.totalorder %v429, 4
          %vm432 = vmand %vm430, %vm431
          %v433 = vld [vmem:[%s427] sm:$0xf]
          %v434 = vsel %vm432, %v433, 0.0
          %v435 = vmul.f32 %v434, %v434
          %v436 = vadd.f32 %v419, %v435
          %v437 = vadd.f32 %v420, %v435
          %v438 = vlaneseq
          %v439 = vand.u32 %v438, 127
          %v440 = vmov %v439
          %v441 = vlaneseq
          %v442 = vshrl.u32 %v441, 7
          %v443 = vmov %v442
          %s444 = smov [#allocation26]
          %v445 = vlaneseq
          %v446 = vand.u32 %v445, 127
          %vm447 = vcmp.ge.s32.totalorder %v446, 0
          %vm448 = vcmp.lt.s32.totalorder %v446, 4
          %vm449 = vmand %vm447, %vm448
          %v450 = vld [vmem:[%s444] sm:$0xf]
          %v451 = vsel %vm449, %v450, 0.0
          %v452 = vmul.f32 %v451, %v451
          %vm455 = vcmp.eq.s32.totalorder %v443, %v440
          %v456 = vsel %vm455, 0.0, %v452
          %v457 = vadd.f32 %v436, %v456
          %v458 = vadd.f32 %v437, %v452
          %459 = vadd.xlane.f32.xlu0 %v458
          %v460 = vpop.xlane.xlu0 %459
          %v461 = vrot.slane %v460, 4
          %v462 = vadd.f32 %v460, %v461
          %v463 = vrot.slane %v462, 2
          %v464 = vadd.f32 %v462, %v463
          %v465 = vrot.slane %v464, 1
          %v466 = vadd.f32 %v464, %v465
          %467 = vadd.xlane.f32.xlu0 %v457
          %v468 = vpop.xlane.xlu0 %467
          %v469 = vrot.slane %v468, 4
          %v470 = vadd.f32 %v468, %v469
          %v471 = vrot.slane %v470, 2
          %v472 = vadd.f32 %v470, %v471
          %v473 = vrot.slane %v472, 1
          %v474 = vadd.f32 %v472, %v473
          %s475 = vtos %v474
          %s476 = vtos %v466
          %s477 = smul.f32 1e-10, %s476
          %p478 = scmp.le.f32.partialorder %s475, %s477
          %p479 = scmp.ge.s32.totalorder %s384, 15
          %p480 = por %p478, %p479
        $region143: #{custom-call.24} parent=139 // loop_header_branch
          %968 = sbr.rel (%p480) target = $region147
        $region144: #{custom-call.24} parent=139 // loop_body
          loop: start=0, step=1, limit=7
          $region148: #{custom-call.24} parent=144 // loop_pre_header
            _
          $region149: #{custom-call.24} parent=144 // loop_header
            %s482 = sphi 0, %s486
            %p483 = scmp.ge.s32.totalorder %s482, 7
          $region150: #{custom-call.24} parent=144 // loop_header_branch
            %485 = sbr.rel (%p483) target = $region154
          $region151: #{custom-call.24} parent=144 // loop_body
            #allocation27 [shape = 'f32[1024]{0}', space=vmem, size = 0x1000, scoped, tag = 'a_tl_diag vmem']
            #allocation28 [shape = 'f32[1024]{0}', space=vmem, size = 0x1000, scoped, tag = 'a_tr_diag vmem']
            #allocation29 [shape = 'f32[1024]{0}', space=vmem, size = 0x1000, scoped, tag = 'a_br_diag vmem']
            #allocation30 [shape = 'f32[1024]{0}', space=vmem, size = 0x1000, scoped, tag = 'rt1 vmem']
            #allocation31 [shape = 'f32[1024]{0}', space=vmem, size = 0x1000, scoped, tag = 'rt2 vmem']
            #allocation32 [shape = 'f32[1024]{0}', space=vmem, size = 0x1000, scoped, tag = 'c vmem']
            #allocation33 [shape = 'f32[1024]{0}', space=vmem, size = 0x1000, scoped, tag = 's vmem']
            #allocation34 [shape = 'f32[4096]{0}', space=vmem, size = 0x4000, scoped, tag = 'c broadcast']
            #allocation35 [shape = 'f32[4096]{0}', space=vmem, size = 0x4000, scoped, tag = 's broadcast']
            %s487 = smov [#allocation23]
            %s488 = smov [#allocation27]
            %v489 = vlaneseq
            %v490 = vand.u32 %v489, 127
            %v491 = vmov %v490
            %v492 = vlaneseq
            %v493 = vshrl.u32 %v492, 7
            %v494 = vmov %v493
            %v495 = vld [vmem:[%s487] sm:$0xf]
            %vm498 = vcmp.eq.s32.totalorder %v494, %v491
            %v499 = vsel %vm498, %v495, 0.0
            %v500 = vrot.slane %v499, 4
            %v501 = vadd.f32 %v499, %v500
            %v502 = vrot.slane %v501, 2
            %v503 = vadd.f32 %v501, %v502
            %v504 = vrot.slane %v503, 1
            %v505 = vadd.f32 %v503, %v504
            %506 = vst [vmem:[%s488] sm:$0x1] %v505
            %s507 = smov [#allocation24]
            %s508 = smov [#allocation28]
            %v509 = vlaneseq
            %v510 = vand.u32 %v509, 127
            %v511 = vmov %v510
            %v512 = vlaneseq
            %v513 = vshrl.u32 %v512, 7
            %v514 = vmov %v513
            %v515 = vld [vmem:[%s507] sm:$0xf]
            %vm518 = vcmp.eq.s32.totalorder %v514, %v511
            %v519 = vsel %vm518, %v515, 0.0
            %v520 = vrot.slane %v519, 4
            %v521 = vadd.f32 %v519, %v520
            %v522 = vrot.slane %v521, 2
            %v523 = vadd.f32 %v521, %v522
            %v524 = vrot.slane %v523, 1
            %v525 = vadd.f32 %v523, %v524
            %526 = vst [vmem:[%s508] sm:$0x1] %v525
            %s527 = smov [#allocation26]
            %s528 = smov [#allocation29]
            %v529 = vlaneseq
            %v530 = vand.u32 %v529, 127
            %v531 = vmov %v530
            %v532 = vlaneseq
            %v533 = vshrl.u32 %v532, 7
            %v534 = vmov %v533
            %v535 = vld [vmem:[%s527] sm:$0xf]
            %vm538 = vcmp.eq.s32.totalorder %v534, %v531
            %v539 = vsel %vm538, %v535, 0.0
            %v540 = vrot.slane %v539, 4
            %v541 = vadd.f32 %v539, %v540
            %v542 = vrot.slane %v541, 2
            %v543 = vadd.f32 %v541, %v542
            %v544 = vrot.slane %v543, 1
            %v545 = vadd.f32 %v543, %v544
            %546 = vst [vmem:[%s528] sm:$0x1] %v545
            %s547 = smov [#allocation32]
            %s548 = smov [#allocation33]
            %s549 = smov [#allocation27]
            %v550 = vld [vmem:[%s549] sm:$0xff]
            %s551 = smov [#allocation28]
            %v552 = vld [vmem:[%s551] sm:$0xff]
            %s553 = smov [#allocation29]
            %v554 = vld [vmem:[%s553] sm:$0xff]
            %v555 = vsub.f32 %v554, %v550
            %v556 = vmul.f32 2.0, %v552
            %v557 = vrcp.pop %v556
            %v558 = vmul.f32 %v556, %v557
            %v559 = vsub.f32 1.0, %v558
            %v560 = vmul.f32 %v557, %v559
            %v561 = vadd.f32 %v557, %v560
            %vm562 = vweird.f32 %v556
            %vm563 = vweird.f32 %v557
            %vm564 = vmor %vm562, %vm563
            %v565 = vsel %vm564, %v557, %v561
            %v566 = vand.u32 2147483647, %v556
            %vm567 = vcmp.eq.f32.partialorder %v566, 8.507059e+37
            %v568 = vand.u32 %v556, 2147483648
            %v569 = vor.u32 1.1754944e-38, %v568
            %v570 = vsel %vm567, %v569, %v565
            %v571 = vmul.f32 %v555, %v570
            %vm572 = vcmp.ge.f32.partialorder %v571, 0.0
            %v573 = vmul.f32 %v571, %v571
            %v574 = vadd.f32 1.0, %v573
            %v575 = vrsqrt.pop %v574
            %v576 = vmul.f32 %v575, %v574
            %v577 = vmul.f32 %v576, %v575
            %v578 = vmul.f32 0.5, %v577
            %v579 = vsub.f32 1.5, %v578
            %v580 = vmul.f32 %v575, %v579
            %v581 = vmul.f32 %v574, %v580
            %vm582 = vcmp.eq.f32.partialorder %v574, inf
            %v583 = vsel %vm582, %v574, %v581
            %vm584 = vcmp.eq.f32.partialorder %v574, 0.0
            %v585 = vand.u32 %v574, 2147483648
            %v586 = vsel %vm584, %v585, %v583
            %v587 = vxor.u32 %v586, 2147483648
            %v588 = vsel %vm572, %v586, %v587
            %v589 = vadd.f32 %v571, %v588
            %v590 = vrcp.pop %v589
            %v591 = vmul.f32 %v589, %v590
            %v592 = vsub.f32 1.0, %v591
            %v593 = vmul.f32 %v590, %v592
            %v594 = vadd.f32 %v590, %v593
            %vm595 = vweird.f32 %v589
            %vm596 = vweird.f32 %v590
            %vm597 = vmor %vm595, %vm596
            %v598 = vsel %vm597, %v590, %v594
            %v599 = vand.u32 2147483647, %v589
            %vm600 = vcmp.eq.f32.partialorder %v599, 8.507059e+37
            %v601 = vand.u32 %v589, 2147483648
            %v602 = vor.u32 1.1754944e-38, %v601
            %v603 = vsel %vm600, %v602, %v598
            %v604 = vand.u32 2147483647, %v550
            %v605 = vand.u32 2147483647, %v552
            %v606 = vand.u32 2147483647, %v554
            %v607 = vmin.f32 %v604, %v606
            %v608 = vmul.f32 1.1920929e-08, %v607
            %vm609 = vcmp.le.f32.partialorder %v605, %v608
            %v610 = vsel %vm609, 0.0, %v603
            %v611 = vmul.f32 %v610, %v610
            %v612 = vadd.f32 1.0, %v611
            %v613 = vrsqrt.pop %v612
            %v614 = vmul.f32 %v613, %v612
            %v615 = vmul.f32 %v614, %v613
            %v616 = vmul.f32 0.5, %v615
            %v617 = vsub.f32 1.5, %v616
            %v618 = vmul.f32 %v613, %v617
            %vm619 = vweird.f32 %v612
            %vm620 = vweird.f32 %v613
            %vm621 = vmor %vm619, %vm620
            %v622 = vsel %vm621, %v613, %v618
            %v623 = vmul.f32 %v610, %v622
            %v624 = vmul.f32 %v610, %v552
            %v625 = vsub.f32 %v550, %v624
            %v626 = vmul.f32 %v610, %v552
            %v627 = vadd.f32 %v554, %v626
            %s628 = smov [#allocation30]
            %629 = vst [vmem:[%s628] sm:$0xff] %v625
            %s630 = smov [#allocation31]
            %631 = vst [vmem:[%s630] sm:$0xff] %v627
            %s632 = smov %s547
            %633 = vst [vmem:[%s632] sm:$0xff] %v622
            %s634 = smov %s548
            %635 = vst [vmem:[%s634] sm:$0xff] %v623
            %s636 = smov [#allocation32]
            %v637 = vld [vmem:[%s636] ss:$0 sm:$0xff]
            %v638 = vlaneseq
            %v639 = vand.u32 %v638, 127
            %v640 = vmov %v639
            %v641 = vlaneseq
            %v642 = vshrl.u32 %v641, 7
            %v643 = vmov %v642
            %vm645 = vcmp.eq.s32.totalorder %v643, %v640
            %v646 = vsel %vm645, %v637, 0.0
            %647 = vadd.xlane.f32.xlu0 %v646
            %v648 = vpop.xlane.xlu0 %647
            %s649 = smov [#allocation34]
            %650 = vst [vmem:[%s649] sm:$0xff] %v648
            %s651 = smov [#allocation33]
            %v652 = vld [vmem:[%s651] ss:$0 sm:$0xff]
            %v653 = vlaneseq
            %v654 = vand.u32 %v653, 127
            %v655 = vmov %v654
            %v656 = vlaneseq
            %v657 = vshrl.u32 %v656, 7
            %v658 = vmov %v657
            %vm660 = vcmp.eq.s32.totalorder %v658, %v655
            %v661 = vsel %vm660, %v652, 0.0
            %662 = vadd.xlane.f32.xlu0 %v661
            %v663 = vpop.xlane.xlu0 %662
            %s664 = smov [#allocation35]
            %665 = vst [vmem:[%s664] sm:$0xff] %v663
            %s666 = smov [#allocation34]
            %v667 = vld [vmem:[%s666] sm:$0xff]
            %s668 = smov [#allocation35]
            %v669 = vld [vmem:[%s668] sm:$0xff]
            %s670 = smov [#allocation23]
            %s671 = smov [#allocation24]
            %s672 = smov [#allocation25]
            %s673 = smov [#allocation26]
            %v674 = vld [vmem:[%s670] sm:$0xf]
            %v675 = vld [vmem:[%s671] sm:$0xf]
            %v676 = vld [vmem:[%s672] sm:$0xf]
            %v677 = vld [vmem:[%s673] sm:$0xf]
            %v678 = vmul.f32 %v667, %v674
            %v679 = vmul.f32 %v669, %v676
            %v680 = vsub.f32 %v678, %v679
            %v681 = vmul.f32 %v667, %v675
            %v682 = vmul.f32 %v669, %v677
            %v683 = vsub.f32 %v681, %v682
            %v684 = vmul.f32 %v669, %v674
            %v685 = vmul.f32 %v667, %v676
            %v686 = vadd.f32 %v684, %v685
            %v687 = vmul.f32 %v669, %v675
            %v688 = vmul.f32 %v667, %v677
            %v689 = vadd.f32 %v687, %v688
            %690 = vst [vmem:[%s670] sm:$0xf] %v680
            %691 = vst [vmem:[%s671] sm:$0xf] %v683
            %692 = vst [vmem:[%s672] sm:$0xf] %v686
            %693 = vst [vmem:[%s673] sm:$0xf] %v689
            %s694 = smov [#allocation32]
            %v695 = vld [vmem:[%s694] ss:$0 sm:$0xff]
            %s696 = smov [#allocation33]
            %v697 = vld [vmem:[%s696] ss:$0 sm:$0xff]
            %s698 = smov [#allocation23]
            %s699 = smov [#allocation24]
            %s700 = smov [#allocation25]
            %s701 = smov [#allocation26]
            %v702 = vld [vmem:[%s698] sm:$0xf]
            %v703 = vld [vmem:[%s699] sm:$0xf]
            %v704 = vld [vmem:[%s700] sm:$0xf]
            %v705 = vld [vmem:[%s701] sm:$0xf]
            %v706 = vmul.f32 %v695, %v702
            %v707 = vmul.f32 %v697, %v703
            %v708 = vsub.f32 %v706, %v707
            %v709 = vmul.f32 %v697, %v702
            %v710 = vmul.f32 %v695, %v703
            %v711 = vadd.f32 %v709, %v710
            %v712 = vmul.f32 %v695, %v704
            %v713 = vmul.f32 %v697, %v705
            %v714 = vsub.f32 %v712, %v713
            %v715 = vmul.f32 %v697, %v704
            %v716 = vmul.f32 %v695, %v705
            %v717 = vadd.f32 %v715, %v716
            %718 = vst [vmem:[%s698] sm:$0xf] %v708
            %719 = vst [vmem:[%s699] sm:$0xf] %v711
            %720 = vst [vmem:[%s700] sm:$0xf] %v714
            %721 = vst [vmem:[%s701] sm:$0xf] %v717
            %s722 = smov [#allocation23]
            %s723 = smov [#allocation30]
            %v724 = vlaneseq
            %v725 = vand.u32 %v724, 127
            %v726 = vmov %v725
            %v727 = vlaneseq
            %v728 = vshrl.u32 %v727, 7
            %v729 = vmov %v728
            %v730 = vld [vmem:[%s723] ss:$0 sm:$0xff]
            %v731 = vld [vmem:[%s722] sm:$0xf]
            %vm734 = vcmp.eq.s32.totalorder %v729, %v726
            %v735 = vsel %vm734, %v730, %v731
            %736 = vst [vmem:[%s722] sm:$0xf] %v735
            %s737 = smov [#allocation24]
            %v738 = vlaneseq
            %v739 = vand.u32 %v738, 127
            %v740 = vmov %v739
            %v741 = vlaneseq
            %v742 = vshrl.u32 %v741, 7
            %v743 = vmov %v742
            %v744 = vld [vmem:[%s737] sm:$0xf]
            %vm747 = vcmp.eq.s32.totalorder %v743, %v740
            %v748 = vsel %vm747, 0.0, %v744
            %749 = vst [vmem:[%s737] sm:$0xf] %v748
            %s750 = smov [#allocation25]
            %v751 = vlaneseq
            %v752 = vand.u32 %v751, 127
            %v753 = vmov %v752
            %v754 = vlaneseq
            %v755 = vshrl.u32 %v754, 7
            %v756 = vmov %v755
            %v757 = vld [vmem:[%s750] sm:$0xf]
            %vm760 = vcmp.eq.s32.totalorder %v756, %v753
            %v761 = vsel %vm760, 0.0, %v757
            %762 = vst [vmem:[%s750] sm:$0xf] %v761
            %s763 = smov [#allocation26]
            %s764 = smov [#allocation31]
            %v765 = vlaneseq
            %v766 = vand.u32 %v765, 127
            %v767 = vmov %v766
            %v768 = vlaneseq
            %v769 = vshrl.u32 %v768, 7
            %v770 = vmov %v769
            %v771 = vld [vmem:[%s764] ss:$0 sm:$0xff]
            %v772 = vld [vmem:[%s763] sm:$0xf]
            %vm775 = vcmp.eq.s32.totalorder %v770, %v767
            %v776 = vsel %vm775, %v771, %v772
            %777 = vst [vmem:[%s763] sm:$0xf] %v776
            %s778 = smov [#allocation23]
            %s779 = smov [#allocation24]
            %v780 = vld [vmem:[%s779] sm:$0xf]
            %781 = vrot.lane.b32.xlu0 %v780, 1
            %v782 = vpop.permute.xlu0 %781
            %v783 = vld [vmem:[%s778] sm:$0xf]
            %v784 = vld [vmem:[%s778] sm:$0xf]
            %785 = vrot.lane.b32.xlu0 %v784, 1
            %v786 = vpop.permute.xlu0 %785
            %v787 = vlaneseq
            %v788 = vand.u32 %v787, 127
            %vm789 = vcmp.eq.s32.totalorder %v788, 0
            %v790 = vsel %vm789, %v784, %v786
            %v791 = vlaneseq
            %v792 = vand.u32 %v791, 127
            %vm793 = vcmp.eq.s32.totalorder %v792, 1
            %v794 = vsel %vm793, %v782, %v790
            %v795 = vlaneseq
            %v796 = vand.u32 %v795, 127
            %vm797 = vcmp.ge.s32.totalorder %v796, 0
            %vm798 = vcmp.lt.s32.totalorder %v796, 4
            %vm799 = vmand %vm797, %vm798
            %v800 = vsel %vm799, %v794, 0.0
            %v801 = vld [vmem:[%s779] sm:$0xf]
            %802 = vrot.lane.b32.xlu0 %v801, 127
            %v803 = vpop.permute.xlu0 %802
            %v804 = vlaneseq
            %v805 = vand.u32 %v804, 127
            %vm806 = vcmp.eq.s32.totalorder %v805, 3
            %v807 = vsel %vm806, %v783, %v803
            %808 = vst [vmem:[%s778] sm:$0xf] %v800
            %809 = vst [vmem:[%s779] sm:$0xf] %v807
            %s810 = smov [#allocation25]
            %s811 = smov [#allocation26]
            %v812 = vld [vmem:[%s811] sm:$0xf]
            %813 = vrot.lane.b32.xlu0 %v812, 1
            %v814 = vpop.permute.xlu0 %813
            %v815 = vld [vmem:[%s810] sm:$0xf]
            %v816 = vld [vmem:[%s810] sm:$0xf]
            %817 = vrot.lane.b32.xlu0 %v816, 1
            %v818 = vpop.permute.xlu0 %817
            %v819 = vlaneseq
            %v820 = vand.u32 %v819, 127
            %vm821 = vcmp.eq.s32.totalorder %v820, 0
            %v822 = vsel %vm821, %v816, %v818
            %v823 = vlaneseq
            %v824 = vand.u32 %v823, 127
            %vm825 = vcmp.eq.s32.totalorder %v824, 1
            %v826 = vsel %vm825, %v814, %v822
            %v827 = vlaneseq
            %v828 = vand.u32 %v827, 127
            %vm829 = vcmp.ge.s32.totalorder %v828, 0
            %vm830 = vcmp.lt.s32.totalorder %v828, 4
            %vm831 = vmand %vm829, %vm830
            %v832 = vsel %vm831, %v826, 0.0
            %v833 = vld [vmem:[%s811] sm:$0xf]
            %834 = vrot.lane.b32.xlu0 %v833, 127
            %v835 = vpop.permute.xlu0 %834
            %v836 = vlaneseq
            %v837 = vand.u32 %v836, 127
            %vm838 = vcmp.eq.s32.totalorder %v837, 3
            %v839 = vsel %vm838, %v815, %v835
            %840 = vst [vmem:[%s810] sm:$0xf] %v832
            %841 = vst [vmem:[%s811] sm:$0xf] %v839
            %s842 = smov [#allocation23]
            %s843 = smov [#allocation25]
            %v844 = vld [vmem:[%s842] ss:$0 sm:$0xff]
            %s846 = scalar_lea.vmem %s842, 4294967295
            %v847 = vld [vmem:[%s846] sm:$0xe]
            %v848 = vlaneseq
            %v849 = vshrl.u32 %v848, 7
            %vm850 = vcmp.eq.s32.totalorder %v849, 0
            %v851 = vsel %vm850, %v844, %v847
            %s852 = scalar_lea.vmem %s842, 3
            %v853 = vld [vmem:[%s852] ss:$0 sm:$0xff]
            %854 = vst [vmem:[%s842] sm:$0xf] %v851
            %v855 = vld [vmem:[%s843] ss:$0 sm:$0xff]
            %s856 = scalar_lea.vmem %s842, 1
            %857 = vst [vmem:[%s856] sm:$0x1] %v855
            %s858 = scalar_lea.vmem %s843, 1
            %v859 = vld [vmem:[%s858] sm:$0x7]
            %v860 = vlaneseq
            %v861 = vshrl.u32 %v860, 7
            %vm862 = vcmp.eq.s32.totalorder %v861, 3
            %v863 = vsel %vm862, %v853, %v859
            %v864 = vld [vmem:[%s843] ss:$0 sm:$0xff]
            %865 = vst [vmem:[%s843] sm:$0xf] %v863
            %s866 = smov [#allocation24]
            %s867 = smov [#allocation26]
            %v868 = vld [vmem:[%s866] ss:$0 sm:$0xff]
            %s870 = scalar_lea.vmem %s866, 4294967295
            %v871 = vld [vmem:[%s870] sm:$0xe]
            %v872 = vlaneseq
            %v873 = vshrl.u32 %v872, 7
            %vm874 = vcmp.eq.s32.totalorder %v873, 0
            %v875 = vsel %vm874, %v868, %v871
            %s876 = scalar_lea.vmem %s866, 3
            %v877 = vld [vmem:[%s876] ss:$0 sm:$0xff]
            %878 = vst [vmem:[%s866] sm:$0xf] %v875
            %v879 = vld [vmem:[%s867] ss:$0 sm:$0xff]
            %s880 = scalar_lea.vmem %s866, 1
            %881 = vst [vmem:[%s880] sm:$0x1] %v879
            %s882 = scalar_lea.vmem %s867, 1
            %v883 = vld [vmem:[%s882] sm:$0x7]
            %v884 = vlaneseq
            %v885 = vshrl.u32 %v884, 7
            %vm886 = vcmp.eq.s32.totalorder %v885, 3
            %v887 = vsel %vm886, %v877, %v883
            %v888 = vld [vmem:[%s867] ss:$0 sm:$0xff]
            %889 = vst [vmem:[%s867] sm:$0xf] %v887
            %s890 = smov [#allocation34]
            %v891 = vld [vmem:[%s890] sm:$0xff]
            %s892 = smov [#allocation35]
            %v893 = vld [vmem:[%s892] sm:$0xff]
            %s894 = smov [#allocation12]
            %s895 = smov [#allocation15]
            %s896 = smov [#allocation18]
            %s897 = smov [#allocation20]
            %v898 = vld [vmem:[%s894] sm:$0xf]
            %v899 = vld [vmem:[%s895] sm:$0xf]
            %v900 = vld [vmem:[%s896] sm:$0xf]
            %v901 = vld [vmem:[%s897] sm:$0xf]
            %v902 = vmul.f32 %v891, %v898
            %v903 = vmul.f32 %v893, %v900
            %v904 = vsub.f32 %v902, %v903
            %v905 = vmul.f32 %v891, %v899
            %v906 = vmul.f32 %v893, %v901
            %v907 = vsub.f32 %v905, %v906
            %v908 = vmul.f32 %v893, %v898
            %v909 = vmul.f32 %v891, %v900
            %v910 = vadd.f32 %v908, %v909
            %v911 = vmul.f32 %v893, %v899
            %v912 = vmul.f32 %v891, %v901
            %v913 = vadd.f32 %v911, %v912
            %914 = vst [vmem:[%s894] sm:$0xf] %v904
            %915 = vst [vmem:[%s895] sm:$0xf] %v907
            %916 = vst [vmem:[%s896] sm:$0xf] %v910
            %917 = vst [vmem:[%s897] sm:$0xf] %v913
            %s918 = smov [#allocation12]
            %s919 = smov [#allocation18]
            %v920 = vld [vmem:[%s918] ss:$0 sm:$0xff]
            %s922 = scalar_lea.vmem %s918, 4294967295
            %v923 = vld [vmem:[%s922] sm:$0xe]
            %v924 = vlaneseq
            %v925 = vshrl.u32 %v924, 7
            %vm926 = vcmp.eq.s32.totalorder %v925, 0
            %v927 = vsel %vm926, %v920, %v923
            %s928 = scalar_lea.vmem %s918, 3
            %v929 = vld [vmem:[%s928] ss:$0 sm:$0xff]
            %930 = vst [vmem:[%s918] sm:$0xf] %v927
            %v931 = vld [vmem:[%s919] ss:$0 sm:$0xff]
            %s932 = scalar_lea.vmem %s918, 1
            %933 = vst [vmem:[%s932] sm:$0x1] %v931
            %s934 = scalar_lea.vmem %s919, 1
            %v935 = vld [vmem:[%s934] sm:$0x7]
            %v936 = vlaneseq
            %v937 = vshrl.u32 %v936, 7
            %vm938 = vcmp.eq.s32.totalorder %v937, 3
            %v939 = vsel %vm938, %v929, %v935
            %v940 = vld [vmem:[%s919] ss:$0 sm:$0xff]
            %941 = vst [vmem:[%s919] sm:$0xf] %v939
            %s942 = smov [#allocation15]
            %s943 = smov [#allocation20]
            %v944 = vld [vmem:[%s942] ss:$0 sm:$0xff]
            %s946 = scalar_lea.vmem %s942, 4294967295
            %v947 = vld [vmem:[%s946] sm:$0xe]
            %v948 = vlaneseq
            %v949 = vshrl.u32 %v948, 7
            %vm950 = vcmp.eq.s32.totalorder %v949, 0
            %v951 = vsel %vm950, %v944, %v947
            %s952 = scalar_lea.vmem %s942, 3
            %v953 = vld [vmem:[%s952] ss:$0 sm:$0xff]
            %954 = vst [vmem:[%s942] sm:$0xf] %v951
            %v955 = vld [vmem:[%s943] ss:$0 sm:$0xff]
            %s956 = scalar_lea.vmem %s942, 1
            %957 = vst [vmem:[%s956] sm:$0x1] %v955
            %s958 = scalar_lea.vmem %s943, 1
            %v959 = vld [vmem:[%s958] sm:$0x7]
            %v960 = vlaneseq
            %v961 = vshrl.u32 %v960, 7
            %vm962 = vcmp.eq.s32.totalorder %v961, 3
            %v963 = vsel %vm962, %v953, %v959
            %v964 = vld [vmem:[%s943] ss:$0 sm:$0xff]
            %965 = vst [vmem:[%s943] sm:$0xf] %v963
          $region152: #{custom-call.24} parent=144 // loop_footer
            %s486 = sadd.s32 1, %s482
          $region153: #{custom-call.24} parent=144 // loop_footer_branch
            %481 = sbr.rel target = $region149
          $region154: #{custom-call.24} parent=144 // loop_exit
            _
          %s966 = sadd.s32 %s384, 1
        $region145: #{custom-call.24} parent=139 // loop_footer
          _
        $region146: #{custom-call.24} parent=139 // loop_footer_branch
          %383 = sbr.rel target = $region142
        $region147: #{custom-call.24} parent=139 // loop_exit
          _
        %s969 = sand.u32 %s26, 7
        %s970 = scalar_lea.vmem [#allocation8], %s969
        %s971 = sand.u32 %s26, 7
        %s972 = scalar_lea.vmem [#allocation10], %s971
        %s973 = smov [#allocation23]
        %s974 = smov %s970
        %v975 = vlaneseq
        %v976 = vand.u32 %v975, 127
        %v977 = vmov %v976
        %v978 = vlaneseq
        %v979 = vshrl.u32 %v978, 7
        %v980 = vmov %v979
        %v981 = vld [vmem:[%s973] sm:$0xf]
        %vm984 = vcmp.eq.s32.totalorder %v980, %v977
        %v985 = vsel %vm984, %v981, 0.0
        %v986 = vrot.slane %v985, 4
        %v987 = vadd.f32 %v985, %v986
        %v988 = vrot.slane %v987, 2
        %v989 = vadd.f32 %v987, %v988
        %v990 = vrot.slane %v989, 1
        %v991 = vadd.f32 %v989, %v990
        %992 = vst [vmem:[%s974] sm:$0x1] %v991
        %s993 = smov [#allocation26]
        %s994 = smov %s972
        %v995 = vlaneseq
        %v996 = vand.u32 %v995, 127
        %v997 = vmov %v996
        %v998 = vlaneseq
        %v999 = vshrl.u32 %v998, 7
        %v1000 = vmov %v999
        %v1001 = vld [vmem:[%s993] sm:$0xf]
        %vm1004 = vcmp.eq.s32.totalorder %v1000, %v997
        %v1005 = vsel %vm1004, %v1001, 0.0
        %v1006 = vrot.slane %v1005, 4
        %v1007 = vadd.f32 %v1005, %v1006
        %v1008 = vrot.slane %v1007, 2
        %v1009 = vadd.f32 %v1007, %v1008
        %v1010 = vrot.slane %v1009, 1
        %v1011 = vadd.f32 %v1009, %v1010
        %1012 = vst [vmem:[%s994] sm:$0x1] %v1011
        %s1014 = ssub.s32 4, 1
        %v1015 = vld [vmem:[#allocation8] sm:%s1014]
        %s1017 = ssub.s32 4, 1
        %1018 = vst [vmem:[%s296] sm:%s1017] %v1015
        %s1020 = ssub.s32 4, 1
        %v1021 = vld [vmem:[#allocation10] sm:%s1020]
        %s1023 = ssub.s32 4, 1
        %1024 = vst [vmem:[%s302] sm:%s1023] %v1021
        %s1026 = ssub.s32 16, 1
        %v1027 = vld [vmem:[#allocation12] sm:%s1026]
        %s1029 = ssub.s32 16, 1
        %1030 = vst [vmem:[%s307] sm:%s1029] %v1027
        %s1032 = ssub.s32 16, 1
        %v1033 = vld [vmem:[#allocation15] sm:%s1032]
        %s1035 = ssub.s32 16, 1
        %1036 = vst [vmem:[%s312] sm:%s1035] %v1033
        %s1038 = ssub.s32 16, 1
        %v1039 = vld [vmem:[#allocation18] sm:%s1038]
        %s1041 = ssub.s32 16, 1
        %1042 = vst [vmem:[%s317] sm:%s1041] %v1039
        %s1044 = ssub.s32 16, 1
        %v1045 = vld [vmem:[#allocation20] sm:%s1044]
        %s1047 = ssub.s32 16, 1
        %1048 = vst [vmem:[%s322] sm:%s1047] %v1045
        %s1049 = sand.u32 %s36, 1
        %s1050 = sand.u32 %s36, 1
        %s1051 = smul.addr %s1050, 2
        %s1052 = scalar_lea.vmem [#allocation9], %s1051
        %s1053 = sand.u32 %s64, 1
        %s1054 = sand.u32 %s64, 1
        %s1055 = smul.addr %s1054, 2
        %s1056 = scalar_lea.vmem [#allocation11], %s1055
        %s1057 = sand.u32 %s26, 1
        %s1058 = scalar_lea.sflag [#allocation14], %s1057
        %s1059 = sand.u32 %s26, 1
        %s1060 = smul.addr %s1059, 4
        %s1061 = scalar_lea.vmem [#allocation13], %s1060
        %s1062 = sand.u32 %s26, 1
        %s1063 = scalar_lea.sflag [#allocation17], %s1062
        %s1064 = sand.u32 %s26, 1
        %s1065 = smul.addr %s1064, 4
        %s1066 = scalar_lea.vmem [#allocation16], %s1065
        %s1067 = sand.u32 %s26, 1
        %s1068 = scalar_lea.sflag [#allocation17], %s1067
        %s1069 = sand.u32 %s26, 1
        %s1070 = smul.addr %s1069, 4
        %s1071 = scalar_lea.vmem [#allocation19], %s1070
        %s1072 = sand.u32 %s26, 1
        %s1073 = scalar_lea.sflag [#allocation22], %s1072
        %s1074 = sand.u32 %s26, 1
        %s1075 = smul.addr %s1074, 4
        %s1076 = scalar_lea.vmem [#allocation21], %s1075
        // Predicated region
        $region155: #{custom-call.24} parent=139 // pred_check
          %p1077 = pneg %p46
        $region156: #{custom-call.24} parent=139 // pred_check_branch
          %1079 = sbr.rel (%p1077) target = $region158
        $region157: #{custom-call.24} parent=139 // pred_region
          %s1080 = sshrl.u32 %s26, 3
          %s1081 = smul.addr %s1080, 2
          %s1082 = scalar_lea.vmem %s4, %s1081
          // Predicated region
          $region159: #{custom-call.24} parent=157 // pred_check
            _
          $region160: #{custom-call.24} parent=157 // pred_check_branch
            %1084 = sbr.rel (0) target = $region162
          $region161: #{custom-call.24} parent=157 // pred_region
            // Predicated region
            $region163: #{custom-call.24} parent=161 // pred_check
              _
            $region164: #{custom-call.24} parent=161 // pred_check_branch
              %1086 = sbr.rel target = $region166
            $region165: #{custom-call.24} parent=161 // pred_region
              // Predicated region
              $region178: #{custom-call.24} parent=165 // pred_check
                _
              $region179: #{custom-call.24} parent=165 // pred_check_branch
                %1102 = sbr.rel (0) target = $region181
              $region180: #{custom-call.24} parent=165 // pred_region
                %s1104 = ssub.s32 4, 1
                loop: start=0, step=1, limit=1
                $region182: #{custom-call.24} parent=180 // loop_pre_header
                  _
                $region183: #{custom-call.24} parent=180 // loop_header
                  %s1106 = sphi 0, %s1110
                  %p1107 = scmp.ge.s32.totalorder %s1106, 1
                  %s1111 = sphi %s1052, %s1052
                  %s1112 = sphi %s1082, %s1082
                $region184: #{custom-call.24} parent=180 // loop_header_branch
                  %1109 = sbr.rel (%p1107) target = $region188
                $region185: #{custom-call.24} parent=180 // loop_body
                  %v1113 = vld [vmem:[%s1111] sm:%s1104]
                  %1114 = vst [vmem:[%s1112] sm:%s1104] %v1113
                $region186: #{custom-call.24} parent=180 // loop_footer
                  %s1110 = sadd.s32 1, %s1106
                $region187: #{custom-call.24} parent=180 // loop_footer_branch
                  %1105 = sbr.rel target = $region183
                $region188: #{custom-call.24} parent=180 // loop_exit
                  _
              $region181: #{custom-call.24} parent=165 // pred_fallthru
                _
            $region166: #{custom-call.24} parent=161 // pred_fallthru
              _
            // Predicated region
            $region167: #{custom-call.24} parent=161 // pred_check
              _
            $region168: #{custom-call.24} parent=161 // pred_check_branch
              %1088 = sbr.rel (0) target = $region170
            $region169: #{custom-call.24} parent=161 // pred_region
              %s1090 = ssub.s32 4, 1
              loop: start=0, step=1, limit=1
              $region171: #{custom-call.24} parent=169 // loop_pre_header
                _
              $region172: #{custom-call.24} parent=169 // loop_header
                %s1092 = sphi 0, %s1096
                %p1093 = scmp.ge.s32.totalorder %s1092, 1
                %s1097 = sphi %s1052, %s1052
                %s1098 = sphi %s1082, %s1082
              $region173: #{custom-call.24} parent=169 // loop_header_branch
                %1095 = sbr.rel (%p1093) target = $region177
              $region174: #{custom-call.24} parent=169 // loop_body
                %v1099 = vld [vmem:[%s1097] sm:%s1090]
                %1100 = vst [vmem:[%s1098] sm:%s1090] %v1099
              $region175: #{custom-call.24} parent=169 // loop_footer
                %s1096 = sadd.s32 1, %s1092
              $region176: #{custom-call.24} parent=169 // loop_footer_branch
                %1091 = sbr.rel target = $region172
              $region177: #{custom-call.24} parent=169 // loop_exit
                _
            $region170: #{custom-call.24} parent=161 // pred_fallthru
              _
          $region162: #{custom-call.24} parent=157 // pred_fallthru
            _
          %1115 = vnop
        $region158: #{custom-call.24} parent=139 // pred_fallthru
          _
        // Predicated region
        $region189: #{custom-call.24} parent=139 // pred_check
          %p1116 = pneg %p74
        $region190: #{custom-call.24} parent=139 // pred_check_branch
          %1118 = sbr.rel (%p1116) target = $region192
        $region191: #{custom-call.24} parent=139 // pred_region
          %s1119 = sshrl.u32 %s26, 3
          %s1120 = smul.addr %s1119, 2
          %s1121 = scalar_lea.vmem %s5, %s1120
          // Predicated region
          $region193: #{custom-call.24} parent=191 // pred_check
            _
          $region194: #{custom-call.24} parent=191 // pred_check_branch
            %1123 = sbr.rel (0) target = $region196
          $region195: #{custom-call.24} parent=191 // pred_region
            // Predicated region
            $region197: #{custom-call.24} parent=195 // pred_check
              _
            $region198: #{custom-call.24} parent=195 // pred_check_branch
              %1125 = sbr.rel target = $region200
            $region199: #{custom-call.24} parent=195 // pred_region
              // Predicated region
              $region212: #{custom-call.24} parent=199 // pred_check
                _
              $region213: #{custom-call.24} parent=199 // pred_check_branch
                %1141 = sbr.rel (0) target = $region215
              $region214: #{custom-call.24} parent=199 // pred_region
                %s1143 = ssub.s32 4, 1
                loop: start=0, step=1, limit=1
                $region216: #{custom-call.24} parent=214 // loop_pre_header
                  _
                $region217: #{custom-call.24} parent=214 // loop_header
                  %s1145 = sphi 0, %s1149
                  %p1146 = scmp.ge.s32.totalorder %s1145, 1
                  %s1150 = sphi %s1056, %s1056
                  %s1151 = sphi %s1121, %s1121
                $region218: #{custom-call.24} parent=214 // loop_header_branch
                  %1148 = sbr.rel (%p1146) target = $region222
                $region219: #{custom-call.24} parent=214 // loop_body
                  %v1152 = vld [vmem:[%s1150] sm:%s1143]
                  %1153 = vst [vmem:[%s1151] sm:%s1143] %v1152
                $region220: #{custom-call.24} parent=214 // loop_footer
                  %s1149 = sadd.s32 1, %s1145
                $region221: #{custom-call.24} parent=214 // loop_footer_branch
                  %1144 = sbr.rel target = $region217
                $region222: #{custom-call.24} parent=214 // loop_exit
                  _
              $region215: #{custom-call.24} parent=199 // pred_fallthru
                _
            $region200: #{custom-call.24} parent=195 // pred_fallthru
              _
            // Predicated region
            $region201: #{custom-call.24} parent=195 // pred_check
              _
            $region202: #{custom-call.24} parent=195 // pred_check_branch
              %1127 = sbr.rel (0) target = $region204
            $region203: #{custom-call.24} parent=195 // pred_region
              %s1129 = ssub.s32 4, 1
              loop: start=0, step=1, limit=1
              $region205: #{custom-call.24} parent=203 // loop_pre_header
                _
              $region206: #{custom-call.24} parent=203 // loop_header
                %s1131 = sphi 0, %s1135
                %p1132 = scmp.ge.s32.totalorder %s1131, 1
                %s1136 = sphi %s1056, %s1056
                %s1137 = sphi %s1121, %s1121
              $region207: #{custom-call.24} parent=203 // loop_header_branch
                %1134 = sbr.rel (%p1132) target = $region211
              $region208: #{custom-call.24} parent=203 // loop_body
                %v1138 = vld [vmem:[%s1136] sm:%s1129]
                %1139 = vst [vmem:[%s1137] sm:%s1129] %v1138
              $region209: #{custom-call.24} parent=203 // loop_footer
                %s1135 = sadd.s32 1, %s1131
              $region210: #{custom-call.24} parent=203 // loop_footer_branch
                %1130 = sbr.rel target = $region206
              $region211: #{custom-call.24} parent=203 // loop_exit
                _
            $region204: #{custom-call.24} parent=195 // pred_fallthru
              _
          $region196: #{custom-call.24} parent=191 // pred_fallthru
            _
          %1154 = vnop
        $region192: #{custom-call.24} parent=139 // pred_fallthru
          _
        %1156 = vsyncadd %s1058, 0
        %s1157 = smul.addr %s26, 4
        %s1158 = scalar_lea.hbm %s6, %s1157
        %s1160 = sshll.u32 %s1061, 4
        %s1161 = int_to_ptr.vmem [resolvable:$true] %s1160
        %s1162 = sshll.u32 %s1158, 4
        %s1163 = int_to_ptr.hbm [resolvable:$true] %s1162
        %1165 = dma.vmem_to_hbm [thread:$0]  %s1161, 64, %s1163, %s1058
        %1167 = vsyncadd %s1063, 0
        %s1168 = smul.addr %s26, 4
        %s1169 = scalar_lea.hbm %s7, %s1168
        %s1171 = sshll.u32 %s1066, 4
        %s1172 = int_to_ptr.vmem [resolvable:$true] %s1171
        %s1173 = sshll.u32 %s1169, 4
        %s1174 = int_to_ptr.hbm [resolvable:$true] %s1173
        %1176 = dma.vmem_to_hbm [thread:$0]  %s1172, 64, %s1174, %s1063
        %1178 = vsyncadd %s1068, 0
        %s1179 = smul.addr %s26, 4
        %s1180 = scalar_lea.hbm %s8, %s1179
        %s1182 = sshll.u32 %s1071, 4
        %s1183 = int_to_ptr.vmem [resolvable:$true] %s1182
        %s1184 = sshll.u32 %s1180, 4
        %s1185 = int_to_ptr.hbm [resolvable:$true] %s1184
        %1187 = dma.vmem_to_hbm [thread:$0]  %s1183, 64, %s1185, %s1068
        %1189 = vsyncadd %s1073, 0
        %s1190 = smul.addr %s26, 4
        %s1191 = scalar_lea.hbm %s9, %s1190
        %s1193 = sshll.u32 %s1076, 4
        %s1194 = int_to_ptr.vmem [resolvable:$true] %s1193
        %s1195 = sshll.u32 %s1191, 4
        %s1196 = int_to_ptr.hbm [resolvable:$true] %s1195
        %1198 = dma.vmem_to_hbm [thread:$0]  %s1194, 64, %s1196, %s1073
      $region140: #{custom-call.24} parent=5 // pred_fallthru
        _
      %p1199 = scmp.le.s32.totalorder 2, %s21
      // Predicated region
      $region223: #{custom-call.24} parent=5 // pred_check
        %p1200 = pneg %p1199
      $region224: #{custom-call.24} parent=5 // pred_check_branch
        %1202 = sbr.rel (%p1200) target = $region226
      $region225: #{custom-call.24} parent=5 // pred_region
        %s1203 = ssub.s32 %s21, 2
        // Predicated region
        $region227: #{custom-call.24} parent=225 // pred_check
          %p1204 = pneg %p52
        $region228: #{custom-call.24} parent=225 // pred_check_branch
          %1206 = sbr.rel (%p1204) target = $region230
        $region229: #{custom-call.24} parent=225 // pred_region
          %s1207 = sand.u32 %s37, 1
          %s1208 = sand.u32 %s37, 1
          %s1209 = smul.addr %s1208, 2
          %s1210 = scalar_lea.vmem [#allocation9], %s1209
        $region230: #{custom-call.24} parent=225 // pred_fallthru
          _
        // Predicated region
        $region231: #{custom-call.24} parent=225 // pred_check
          %p1211 = pneg %p80
        $region232: #{custom-call.24} parent=225 // pred_check_branch
          %1213 = sbr.rel (%p1211) target = $region234
        $region233: #{custom-call.24} parent=225 // pred_region
          %s1214 = sand.u32 %s65, 1
          %s1215 = sand.u32 %s65, 1
          %s1216 = smul.addr %s1215, 2
          %s1217 = scalar_lea.vmem [#allocation11], %s1216
        $region234: #{custom-call.24} parent=225 // pred_fallthru
          _
        %s1218 = sand.u32 %s27, 1
        %s1219 = scalar_lea.sflag [#allocation14], %s1218
        %s1220 = sand.u32 %s27, 1
        %s1221 = smul.addr %s1220, 4
        %s1222 = scalar_lea.vmem [#allocation13], %s1221
        %1224 = dma.done %s1219, 64
        %s1225 = sand.u32 %s27, 1
        %s1226 = scalar_lea.sflag [#allocation17], %s1225
        %s1227 = sand.u32 %s27, 1
        %s1228 = smul.addr %s1227, 4
        %s1229 = scalar_lea.vmem [#allocation16], %s1228
        %1231 = dma.done %s1226, 64
        %s1232 = sand.u32 %s27, 1
        %s1233 = scalar_lea.sflag [#allocation17], %s1232
        %s1234 = sand.u32 %s27, 1
        %s1235 = smul.addr %s1234, 4
        %s1236 = scalar_lea.vmem [#allocation19], %s1235
        %1238 = dma.done %s1233, 64
        %s1239 = sand.u32 %s27, 1
        %s1240 = scalar_lea.sflag [#allocation22], %s1239
        %s1241 = sand.u32 %s27, 1
        %s1242 = smul.addr %s1241, 4
        %s1243 = scalar_lea.vmem [#allocation21], %s1242
        %1245 = dma.done %s1240, 64
      $region226: #{custom-call.24} parent=5 // pred_fallthru
        _
    $region6: #{custom-call.24} parent=1 // loop_footer
      %s25 = sadd.s32 1, %s21
    $region7: #{custom-call.24} parent=1 // loop_footer_branch
      %20 = sbr.rel target = $region3
    $region8: #{custom-call.24} parent=1 // loop_exit
      _
    %1246 = vsyncpa [#allocation14], 1
    %s1247 = scalar_lea.sflag [#allocation14], 1
    %1248 = vsyncpa %s1247, 1
    %1249 = vsyncpa [#allocation17], 1
    %s1250 = scalar_lea.sflag [#allocation17], 1
    %1251 = vsyncpa %s1250, 1
    %1252 = vsyncpa [#allocation22], 1
    %s1253 = scalar_lea.sflag [#allocation22], 1
    %1254 = vsyncpa %s1253, 1

</llo_original>
